<compile_context>
chip_gen: v7x
topology: tpu7x:2x2x1
jax: 0.10.0
libtpu: 0.0.40
codegen_flags: <defaults>
</compile_context>

<pallas_src>
import jax
import jax.numpy as jnp
from jax import lax
from jax.experimental import pallas as pl
from jax.experimental.pallas import tpu as pltpu

latent_dim = 10
n_features = 39
hidden = 1000

# Padded ("lane-dense") sizes used inside the kernel.
latent_p = 128       # 10  -> 128
hidden_p = 1024      # 1000 -> 8 * 128
features_p = 128     # 39  -> 128

# Hidden-dimension chunking for the fused layer-2/3 loop.
CHUNK = 256
N_CHUNKS = hidden_p // CHUNK   # 4


def _round_up(x, m):
    return (x + m - 1) // m * m


def _choose_tb(B, block_batch):
    """Batch-tile picker.

    * tiny batches: sublane-aligned (multiple of 8) single tile
    * medium batches: one 128/256-row MXU-aligned tile
    * large batches (B > 256): MXU-aligned tiles capped at 512 rows, with at
      least two grid steps so the 'parallel' batch axis spans both v7x cores.
    """
    B = max(int(B), 1)
    block_batch = max(8, (int(block_batch) // 8) * 8)
    if B < 128:
        return min(_round_up(B, 8), block_batch)
    if B <= 256:
        return min(_round_up(B, 128), block_batch)
    cap = max(128, (min(block_batch, 512) // 128) * 128)
    n_tiles = max(2, pl.cdiv(B, cap))           # >= 2 tiles -> megacore split
    return max(128, _round_up(pl.cdiv(B, n_tiles), 128))


def decoder_kernel(z_ref, w1_ref, b1_ref, w2_ref, b2_ref, w3_ref, b3_ref, o_ref):
    tb = o_ref.shape[0]

    # ---- Layer 1: Linear(latent_p -> hidden_p) + ReLU (bf16 MXU, f32 accumulate)
    h1 = jnp.dot(z_ref[...].astype(jnp.bfloat16), w1_ref[...],
                 preferred_element_type=jnp.float32)
    h1 = jnp.maximum(h1 + b1_ref[...], 0.0).astype(jnp.bfloat16)

    # ---- Fused layers 2+3, chunked over w2's output columns.
    #      w2_ref: (N_CHUNKS, hidden_p, CHUNK)  bf16
    #      b2_ref: (N_CHUNKS, 1, CHUNK)         f32
    #      w3_ref: (N_CHUNKS, CHUNK, features_p) bf16
    def chunk_body(c, acc):
        h2c = jnp.dot(h1, w2_ref[c], preferred_element_type=jnp.float32)
        h2c = jnp.maximum(h2c + b2_ref[c], 0.0)
        return acc + jnp.dot(h2c.astype(jnp.bfloat16), w3_ref[c],
                             preferred_element_type=jnp.float32)

    acc = lax.fori_loop(0, N_CHUNKS, chunk_body,
                        jnp.zeros((tb, features_p), jnp.float32),
                        unroll=True)

    # ---- Layer 3 bias + Tanh, lane-dense (128-wide) unmasked store.
    o_ref[...] = jnp.tanh(acc + b3_ref[...])


def decoder_forward(z, params, *, block_batch=512):
    """z: (B, latent_dim) f32.  Returns (B, n_features) f32."""
    w1, b1, w2, b2, w3, b3 = params
    B, L = z.shape

    tb = _choose_tb(B, block_batch)
    Bp = _round_up(B, tb)
    # Pad batch to a tile multiple and latent to 128 lanes so the layer-1 LHS is
    # lane-dense (no in-kernel relayout of a 10-lane operand).
    z = jnp.pad(z, ((0, Bp - B), (0, latent_p - L)))

    batch_spec = lambda shape: pl.BlockSpec(shape, lambda i: (i, 0))

    def resident(arr):  # weights/biases: constant block -> stay VMEM-resident
        nd = arr.ndim
        return pl.BlockSpec(arr.shape, lambda i, _nd=nd: (0,) * _nd)

    out = pl.pallas_call(
        decoder_kernel,
        out_shape=jax.ShapeDtypeStruct((Bp, features_p), jnp.float32),
        grid=(Bp // tb,),
        in_specs=[
            batch_spec((tb, latent_p)),
            resident(w1), resident(b1),
            resident(w2), resident(b2),
            resident(w3), resident(b3),
        ],
        out_specs=batch_spec((tb, features_p)),
        compiler_params=pltpu.CompilerParams(
            dimension_semantics=("parallel",),
            vmem_limit_bytes=32 << 20,
        ),
    )(z, w1, b1, w2, b2, w3, b3)

    # Strip batch + feature padding (kept to preserve the module's (B, 39) output;
    # callers that tolerate padding can consume the raw (Bp, 128) slab instead).
    return out[:B, :n_features]


def pack_params(w1, b1, w2, b2, w3, b3):
    """Take unpadded (in_features, out_features) f32 weights / (out,) biases and
    produce the kernel layout: zero-padded lane-dense shapes, bf16 weights,
    and layer-2/3 operands pre-chunked along w2's output columns."""
    w1p = jnp.pad(w1, ((0, latent_p - latent_dim), (0, hidden_p - hidden)))
    b1p = jnp.pad(b1.reshape(1, -1), ((0, 0), (0, hidden_p - hidden)))
    w2p = jnp.pad(w2, ((0, hidden_p - hidden), (0, hidden_p - hidden)))
    b2p = jnp.pad(b2.reshape(1, -1), ((0, 0), (0, hidden_p - hidden)))
    w3p = jnp.pad(w3, ((0, hidden_p - hidden), (0, features_p - n_features)))
    b3p = jnp.pad(b3.reshape(1, -1), ((0, 0), (0, features_p - n_features)))

    # Chunk along w2's output columns (= w3's input rows).
    w2c = w2p.reshape(hidden_p, N_CHUNKS, CHUNK).transpose(1, 0, 2)
    b2c = b2p.reshape(1, N_CHUNKS, CHUNK).transpose(1, 0, 2)
    w3c = w3p.reshape(N_CHUNKS, CHUNK, features_p)

    return (w1p.astype(jnp.bfloat16), b1p,
            w2c.astype(jnp.bfloat16), b2c,
            w3c.astype(jnp.bfloat16), b3p)


def init_params(key):
    """Deterministic init mimicking torch.nn.Linear default U[-1/sqrt(in), 1/sqrt(in)]."""
    def linear(k, fan_in, fan_out):
        kw, kb = jax.random.split(k)
        bound = 1.0 / jnp.sqrt(jnp.float32(fan_in))
        w = jax.random.uniform(kw, (fan_in, fan_out), jnp.float32, -bound, bound)
        b = jax.random.uniform(kb, (fan_out,), jnp.float32, -bound, bound)
        return w, b

    k1, k2, k3 = jax.random.split(key, 3)
    w1, b1 = linear(k1, latent_dim, hidden)
    w2, b2 = linear(k2, hidden, hidden)
    w3, b3 = linear(k3, hidden, n_features)
    return pack_params(w1, b1, w2, b2, w3, b3)


def _unpack_dense(params):
    """Rebuild padded 2-D weights from the chunked kernel layout (for references)."""
    w1, b1, w2c, b2c, w3c, b3 = params
    w2 = w2c.transpose(1, 0, 2).reshape(hidden_p, hidden_p)
    b2 = b2c.transpose(1, 0, 2).reshape(1, hidden_p)
    w3 = w3c.reshape(hidden_p, features_p)
    return w1, b1, w2, b2, w3, b3


def reference_forward(z, params):
    """Pure-JAX reference mirroring the kernel's bf16-operand / f32-accumulate math."""
    w1, b1, w2, b2, w3, b3 = _unpack_dense(params)
    zp = jnp.pad(z, ((0, 0), (0, latent_p - z.shape[1])))
    h = jnp.dot(zp.astype(jnp.bfloat16), w1, preferred_element_type=jnp.float32)
    h = jnp.maximum(h + b1, 0.0)
    h = jnp.dot(h.astype(jnp.bfloat16), w2, preferred_element_type=jnp.float32)
    h = jnp.maximum(h + b2, 0.0)
    h = jnp.dot(h.astype(jnp.bfloat16), w3, preferred_element_type=jnp.float32)
    return jnp.tanh(h + b3)[:, :n_features]


def reference_forward_f32(z, params):
    """Full-f32 reference (original module semantics, same bf16-valued weights)."""
    w1, b1, w2, b2, w3, b3 = _unpack_dense(params)
    w1, w2, w3 = (w.astype(jnp.float32) for w in (w1, w2, w3))
    zp = jnp.pad(z, ((0, 0), (0, latent_p - z.shape[1])))
    h = jnp.maximum(zp @ w1 + b1, 0.0)
    h = jnp.maximum(h @ w2 + b2, 0.0)
    return jnp.tanh(h @ w3 + b3)[:, :n_features]


if __name__ == "__main__":
    key = jax.random.PRNGKey(0)
    kp, kz = jax.random.split(key)
    params = init_params(kp)

    # Small single-tile case (tb = 8).
    batch = 8
    z = jax.random.normal(kz, (batch, latent_dim), jnp.float32)
    out = jax.block_until_ready(decoder_forward(z, params))
    assert out.shape == (batch, n_features), out.shape
    ref = reference_forward(z, params)
    ref32 = reference_forward_f32(z, params)
    assert jnp.allclose(out, ref, atol=1e-3, rtol=1e-3), float(jnp.max(jnp.abs(out - ref)))
    assert jnp.allclose(out, ref32, atol=5e-2, rtol=5e-2), float(jnp.max(jnp.abs(out - ref32)))

    # Multi-tile case (exercises the batch grid, resident weights, MXU-aligned tiles
    # and the batch/feature padding path): B=200, tb=128 -> grid=(2,).
    batch2 = 200
    z2 = jax.random.normal(jax.random.fold_in(kz, 1), (batch2, latent_dim), jnp.float32)
    out2 = jax.block_until_ready(decoder_forward(z2, params, block_batch=128))
    assert out2.shape == (batch2, n_features), out2.shape
    ref2 = reference_forward(z2, params)
    assert jnp.allclose(out2, ref2, atol=1e-3, rtol=1e-3), float(jnp.max(jnp.abs(out2 - ref2)))

    print("KERNEL_OK")
</pallas_src>

<mosaic_0001>
module attributes {stable_mosaic.version = 11 : i64} {
  func.func @decoder_kernel(%arg0: i32, %arg1: memref<8x128xf32, #tpu.memory_space<vmem>>, %arg2: memref<128x1024xbf16, #tpu.memory_space<vmem>>, %arg3: memref<1x1024xf32, #tpu.memory_space<vmem>>, %arg4: memref<4x1024x256xbf16, #tpu.memory_space<vmem>>, %arg5: memref<4x1x256xf32, #tpu.memory_space<vmem>>, %arg6: memref<4x256x128xbf16, #tpu.memory_space<vmem>>, %arg7: memref<1x128xf32, #tpu.memory_space<vmem>>, %arg8: memref<8x128xf32, #tpu.memory_space<vmem>>) attributes {dimension_semantics = [#tpu.dimension_semantics<parallel>], iteration_bounds = array<i64: 1>, scalar_prefetch = 0 : i64, scratch_operands = 0 : i64, tpu.core_type = #tpu.core_type<tc>, window_params = [{transform_indices = @transform_0, window_bounds = array<i64: 8, 128>}, {pipeline_mode = #tpu.pipeline_mode<synchronous>, transform_indices = @transform_1, window_bounds = array<i64: 128, 1024>}, {pipeline_mode = #tpu.pipeline_mode<synchronous>, transform_indices = @transform_2, window_bounds = array<i64: 1, 1024>}, {pipeline_mode = #tpu.pipeline_mode<synchronous>, transform_indices = @transform_3, window_bounds = array<i64: 4, 1024, 256>}, {pipeline_mode = #tpu.pipeline_mode<synchronous>, transform_indices = @transform_4, window_bounds = array<i64: 4, 1, 256>}, {pipeline_mode = #tpu.pipeline_mode<synchronous>, transform_indices = @transform_5, window_bounds = array<i64: 4, 256, 128>}, {pipeline_mode = #tpu.pipeline_mode<synchronous>, transform_indices = @transform_6, window_bounds = array<i64: 1, 128>}, {transform_indices = @transform_7, window_bounds = array<i64: 8, 128>}]} {
    %c0 = arith.constant 0 : index
    %c0_0 = arith.constant 0 : index
    %0 = vector.load %arg1[%c0, %c0_0] : memref<8x128xf32, #tpu.memory_space<vmem>>, vector<8x128xf32>
    %1 = arith.truncf %0 : vector<8x128xf32> to vector<8x128xbf16>
    %c0_1 = arith.constant 0 : index
    %c0_2 = arith.constant 0 : index
    %2 = vector.load %arg2[%c0_1, %c0_2] : memref<128x1024xbf16, #tpu.memory_space<vmem>>, vector<128x1024xbf16>
    %cst = arith.constant dense<0.000000e+00> : vector<8x1024xf32>
    %3 = tpu.matmul %1, %2, %cst {dimension_numbers = #tpu.dot_dimension_numbers<[1], [0], [0], [1], [0, 0, 1, 1], [], []>} : vector<8x128xbf16>, vector<128x1024xbf16>, vector<8x1024xf32> -> vector<8x1024xf32>
    %c0_3 = arith.constant 0 : index
    %c0_4 = arith.constant 0 : index
    %4 = vector.load %arg3[%c0_3, %c0_4] : memref<1x1024xf32, #tpu.memory_space<vmem>>, vector<1x1024xf32>
    %5 = vector.broadcast %4 : vector<1x1024xf32> to vector<8x1024xf32>
    %6 = arith.addf %3, %5 : vector<8x1024xf32>
    %cst_5 = arith.constant 0.000000e+00 : f32
    %7 = vector.broadcast %cst_5 : f32 to vector<8x1024xf32>
    %8 = arith.maximumf %6, %7 : vector<8x1024xf32>
    %9 = arith.truncf %8 : vector<8x1024xf32> to vector<8x1024xbf16>
    %cst_6 = arith.constant 0.000000e+00 : f32
    %10 = vector.broadcast %cst_6 : f32 to vector<8x128xf32>
    %c0_i32 = arith.constant 0 : i32
    %11 = arith.index_cast %c0_i32 : i32 to index
    %c0_7 = arith.constant 0 : index
    %c0_8 = arith.constant 0 : index
    %12 = vector.load %arg4[%11, %c0_7, %c0_8] : memref<4x1024x256xbf16, #tpu.memory_space<vmem>>, vector<1x1024x256xbf16>
    %13 = vector.shape_cast %12 : vector<1x1024x256xbf16> to vector<1024x256xbf16>
    %cst_9 = arith.constant dense<0.000000e+00> : vector<8x256xf32>
    %14 = tpu.matmul %9, %13, %cst_9 {dimension_numbers = #tpu.dot_dimension_numbers<[1], [0], [0], [1], [0, 0, 1, 1], [], []>} : vector<8x1024xbf16>, vector<1024x256xbf16>, vector<8x256xf32> -> vector<8x256xf32>
    %15 = arith.index_cast %c0_i32 : i32 to index
    %c0_10 = arith.constant 0 : index
    %c0_11 = arith.constant 0 : index
    %16 = vector.load %arg5[%15, %c0_10, %c0_11] : memref<4x1x256xf32, #tpu.memory_space<vmem>>, vector<1x1x256xf32>
    %17 = vector.shape_cast %16 : vector<1x1x256xf32> to vector<1x256xf32>
    %18 = vector.broadcast %17 : vector<1x256xf32> to vector<8x256xf32>
    %19 = arith.addf %14, %18 : vector<8x256xf32>
    %cst_12 = arith.constant 0.000000e+00 : f32
    %20 = vector.broadcast %cst_12 : f32 to vector<8x256xf32>
    %21 = arith.maximumf %19, %20 : vector<8x256xf32>
    %22 = arith.truncf %21 : vector<8x256xf32> to vector<8x256xbf16>
    %23 = arith.index_cast %c0_i32 : i32 to index
    %c0_13 = arith.constant 0 : index
    %c0_14 = arith.constant 0 : index
    %24 = vector.load %arg6[%23, %c0_13, %c0_14] : memref<4x256x128xbf16, #tpu.memory_space<vmem>>, vector<1x256x128xbf16>
    %25 = vector.shape_cast %24 : vector<1x256x128xbf16> to vector<256x128xbf16>
    %cst_15 = arith.constant dense<0.000000e+00> : vector<8x128xf32>
    %26 = tpu.matmul %22, %25, %cst_15 {dimension_numbers = #tpu.dot_dimension_numbers<[1], [0], [0], [1], [0, 0, 1, 1], [], []>} : vector<8x256xbf16>, vector<256x128xbf16>, vector<8x128xf32> -> vector<8x128xf32>
    %27 = arith.addf %10, %26 : vector<8x128xf32>
    %c1_i32 = arith.constant 1 : i32
    %28 = arith.index_cast %c1_i32 : i32 to index
    %c0_16 = arith.constant 0 : index
    %c0_17 = arith.constant 0 : index
    %29 = vector.load %arg4[%28, %c0_16, %c0_17] : memref<4x1024x256xbf16, #tpu.memory_space<vmem>>, vector<1x1024x256xbf16>
    %30 = vector.shape_cast %29 : vector<1x1024x256xbf16> to vector<1024x256xbf16>
    %cst_18 = arith.constant dense<0.000000e+00> : vector<8x256xf32>
    %31 = tpu.matmul %9, %30, %cst_18 {dimension_numbers = #tpu.dot_dimension_numbers<[1], [0], [0], [1], [0, 0, 1, 1], [], []>} : vector<8x1024xbf16>, vector<1024x256xbf16>, vector<8x256xf32> -> vector<8x256xf32>
    %32 = arith.index_cast %c1_i32 : i32 to index
    %c0_19 = arith.constant 0 : index
    %c0_20 = arith.constant 0 : index
    %33 = vector.load %arg5[%32, %c0_19, %c0_20] : memref<4x1x256xf32, #tpu.memory_space<vmem>>, vector<1x1x256xf32>
    %34 = vector.shape_cast %33 : vector<1x1x256xf32> to vector<1x256xf32>
    %35 = vector.broadcast %34 : vector<1x256xf32> to vector<8x256xf32>
    %36 = arith.addf %31, %35 : vector<8x256xf32>
    %cst_21 = arith.constant 0.000000e+00 : f32
    %37 = vector.broadcast %cst_21 : f32 to vector<8x256xf32>
    %38 = arith.maximumf %36, %37 : vector<8x256xf32>
    %39 = arith.truncf %38 : vector<8x256xf32> to vector<8x256xbf16>
    %40 = arith.index_cast %c1_i32 : i32 to index
    %c0_22 = arith.constant 0 : index
    %c0_23 = arith.constant 0 : index
    %41 = vector.load %arg6[%40, %c0_22, %c0_23] : memref<4x256x128xbf16, #tpu.memory_space<vmem>>, vector<1x256x128xbf16>
    %42 = vector.shape_cast %41 : vector<1x256x128xbf16> to vector<256x128xbf16>
    %cst_24 = arith.constant dense<0.000000e+00> : vector<8x128xf32>
    %43 = tpu.matmul %39, %42, %cst_24 {dimension_numbers = #tpu.dot_dimension_numbers<[1], [0], [0], [1], [0, 0, 1, 1], [], []>} : vector<8x256xbf16>, vector<256x128xbf16>, vector<8x128xf32> -> vector<8x128xf32>
    %44 = arith.addf %27, %43 : vector<8x128xf32>
    %c2_i32 = arith.constant 2 : i32
    %45 = arith.index_cast %c2_i32 : i32 to index
    %c0_25 = arith.constant 0 : index
    %c0_26 = arith.constant 0 : index
    %46 = vector.load %arg4[%45, %c0_25, %c0_26] : memref<4x1024x256xbf16, #tpu.memory_space<vmem>>, vector<1x1024x256xbf16>
    %47 = vector.shape_cast %46 : vector<1x1024x256xbf16> to vector<1024x256xbf16>
    %cst_27 = arith.constant dense<0.000000e+00> : vector<8x256xf32>
    %48 = tpu.matmul %9, %47, %cst_27 {dimension_numbers = #tpu.dot_dimension_numbers<[1], [0], [0], [1], [0, 0, 1, 1], [], []>} : vector<8x1024xbf16>, vector<1024x256xbf16>, vector<8x256xf32> -> vector<8x256xf32>
    %49 = arith.index_cast %c2_i32 : i32 to index
    %c0_28 = arith.constant 0 : index
    %c0_29 = arith.constant 0 : index
    %50 = vector.load %arg5[%49, %c0_28, %c0_29] : memref<4x1x256xf32, #tpu.memory_space<vmem>>, vector<1x1x256xf32>
    %51 = vector.shape_cast %50 : vector<1x1x256xf32> to vector<1x256xf32>
    %52 = vector.broadcast %51 : vector<1x256xf32> to vector<8x256xf32>
    %53 = arith.addf %48, %52 : vector<8x256xf32>
    %cst_30 = arith.constant 0.000000e+00 : f32
    %54 = vector.broadcast %cst_30 : f32 to vector<8x256xf32>
    %55 = arith.maximumf %53, %54 : vector<8x256xf32>
    %56 = arith.truncf %55 : vector<8x256xf32> to vector<8x256xbf16>
    %57 = arith.index_cast %c2_i32 : i32 to index
    %c0_31 = arith.constant 0 : index
    %c0_32 = arith.constant 0 : index
    %58 = vector.load %arg6[%57, %c0_31, %c0_32] : memref<4x256x128xbf16, #tpu.memory_space<vmem>>, vector<1x256x128xbf16>
    %59 = vector.shape_cast %58 : vector<1x256x128xbf16> to vector<256x128xbf16>
    %cst_33 = arith.constant dense<0.000000e+00> : vector<8x128xf32>
    %60 = tpu.matmul %56, %59, %cst_33 {dimension_numbers = #tpu.dot_dimension_numbers<[1], [0], [0], [1], [0, 0, 1, 1], [], []>} : vector<8x256xbf16>, vector<256x128xbf16>, vector<8x128xf32> -> vector<8x128xf32>
    %61 = arith.addf %44, %60 : vector<8x128xf32>
    %c3_i32 = arith.constant 3 : i32
    %62 = arith.index_cast %c3_i32 : i32 to index
    %c0_34 = arith.constant 0 : index
    %c0_35 = arith.constant 0 : index
    %63 = vector.load %arg4[%62, %c0_34, %c0_35] : memref<4x1024x256xbf16, #tpu.memory_space<vmem>>, vector<1x1024x256xbf16>
    %64 = vector.shape_cast %63 : vector<1x1024x256xbf16> to vector<1024x256xbf16>
    %cst_36 = arith.constant dense<0.000000e+00> : vector<8x256xf32>
    %65 = tpu.matmul %9, %64, %cst_36 {dimension_numbers = #tpu.dot_dimension_numbers<[1], [0], [0], [1], [0, 0, 1, 1], [], []>} : vector<8x1024xbf16>, vector<1024x256xbf16>, vector<8x256xf32> -> vector<8x256xf32>
    %66 = arith.index_cast %c3_i32 : i32 to index
    %c0_37 = arith.constant 0 : index
    %c0_38 = arith.constant 0 : index
    %67 = vector.load %arg5[%66, %c0_37, %c0_38] : memref<4x1x256xf32, #tpu.memory_space<vmem>>, vector<1x1x256xf32>
    %68 = vector.shape_cast %67 : vector<1x1x256xf32> to vector<1x256xf32>
    %69 = vector.broadcast %68 : vector<1x256xf32> to vector<8x256xf32>
    %70 = arith.addf %65, %69 : vector<8x256xf32>
    %cst_39 = arith.constant 0.000000e+00 : f32
    %71 = vector.broadcast %cst_39 : f32 to vector<8x256xf32>
    %72 = arith.maximumf %70, %71 : vector<8x256xf32>
    %73 = arith.truncf %72 : vector<8x256xf32> to vector<8x256xbf16>
    %74 = arith.index_cast %c3_i32 : i32 to index
    %c0_40 = arith.constant 0 : index
    %c0_41 = arith.constant 0 : index
    %75 = vector.load %arg6[%74, %c0_40, %c0_41] : memref<4x256x128xbf16, #tpu.memory_space<vmem>>, vector<1x256x128xbf16>
    %76 = vector.shape_cast %75 : vector<1x256x128xbf16> to vector<256x128xbf16>
    %cst_42 = arith.constant dense<0.000000e+00> : vector<8x128xf32>
    %77 = tpu.matmul %73, %76, %cst_42 {dimension_numbers = #tpu.dot_dimension_numbers<[1], [0], [0], [1], [0, 0, 1, 1], [], []>} : vector<8x256xbf16>, vector<256x128xbf16>, vector<8x128xf32> -> vector<8x128xf32>
    %78 = arith.addf %61, %77 : vector<8x128xf32>
    %c4_i32 = arith.constant 4 : i32
    %c0_43 = arith.constant 0 : index
    %c0_44 = arith.constant 0 : index
    %79 = vector.load %arg7[%c0_43, %c0_44] : memref<1x128xf32, #tpu.memory_space<vmem>>, vector<1x128xf32>
    %80 = vector.broadcast %79 : vector<1x128xf32> to vector<8x128xf32>
    %81 = arith.addf %78, %80 : vector<8x128xf32>
    %82 = math.tanh %81 : vector<8x128xf32>
    %c0_45 = arith.constant 0 : index
    %c0_46 = arith.constant 0 : index
    %83 = vector.load %arg8[%c0_45, %c0_46] : memref<8x128xf32, #tpu.memory_space<vmem>>, vector<8x128xf32>
    tpu.vector_store %arg8[%c0_45, %c0_46], %82 {strides = array<i32>} : memref<8x128xf32, #tpu.memory_space<vmem>>, vector<8x128xf32>,
    return
  }
  func.func @transform_0(%arg0: i32) -> (i32, i32) {
    %c0_i32 = arith.constant 0 : i32
    %c0_i32_0 = arith.constant 0 : i32
    return %arg0, %c0_i32 : i32, i32
  }
  func.func @transform_1(%arg0: i32) -> (i32, i32) {
    %c0_i32 = arith.constant 0 : i32
    %c0_i32_0 = arith.constant 0 : i32
    %c0_i32_1 = arith.constant 0 : i32
    return %c0_i32, %c0_i32_0 : i32, i32
  }
  func.func @transform_2(%arg0: i32) -> (i32, i32) {
    %c0_i32 = arith.constant 0 : i32
    %c0_i32_0 = arith.constant 0 : i32
    %c0_i32_1 = arith.constant 0 : i32
    return %c0_i32, %c0_i32_0 : i32, i32
  }
  func.func @transform_3(%arg0: i32) -> (i32, i32, i32) {
    %c0_i32 = arith.constant 0 : i32
    %c0_i32_0 = arith.constant 0 : i32
    %c0_i32_1 = arith.constant 0 : i32
    %c0_i32_2 = arith.constant 0 : i32
    return %c0_i32, %c0_i32_0, %c0_i32_1 : i32, i32, i32
  }
  func.func @transform_4(%arg0: i32) -> (i32, i32, i32) {
    %c0_i32 = arith.constant 0 : i32
    %c0_i32_0 = arith.constant 0 : i32
    %c0_i32_1 = arith.constant 0 : i32
    %c0_i32_2 = arith.constant 0 : i32
    return %c0_i32, %c0_i32_0, %c0_i32_1 : i32, i32, i32
  }
  func.func @transform_5(%arg0: i32) -> (i32, i32, i32) {
    %c0_i32 = arith.constant 0 : i32
    %c0_i32_0 = arith.constant 0 : i32
    %c0_i32_1 = arith.constant 0 : i32
    %c0_i32_2 = arith.constant 0 : i32
    return %c0_i32, %c0_i32_0, %c0_i32_1 : i32, i32, i32
  }
  func.func @transform_6(%arg0: i32) -> (i32, i32) {
    %c0_i32 = arith.constant 0 : i32
    %c0_i32_0 = arith.constant 0 : i32
    %c0_i32_1 = arith.constant 0 : i32
    return %c0_i32, %c0_i32_0 : i32, i32
  }
  func.func @transform_7(%arg0: i32) -> (i32, i32) {
    %c0_i32 = arith.constant 0 : i32
    %c0_i32_0 = arith.constant 0 : i32
    return %arg0, %c0_i32 : i32, i32
  }
}

</mosaic_0001>

<llo_original>
// kernel: tpu_custom_call.1
$region0: #{tpu_custom_call.1}
  #allocation0 [shape = 'u32[]', space=smem, size = 0x4, offset = 0x4, fixed_abs, tag = 'smem constant byte address 0x4 - core index']
  #allocation1 [shape = 'u32[144,128]{1,0:T(1,128)}', space=vmem, size = 0x12000, scoped, tag = 'internal scratch']
  %s0 = inlined_call_operand.hbm [shape: f32[8,128], index: 0, kind: input, shape index: {}]
  %s1 = inlined_call_operand.hbm [shape: bf16[128,1024], index: 1, kind: input, shape index: {}]
  %s2 = inlined_call_operand.hbm [shape: f32[1,1024], index: 2, kind: input, shape index: {}]
  %s3 = inlined_call_operand.hbm [shape: bf16[4,1024,256], index: 3, kind: input, shape index: {}]
  %s4 = inlined_call_operand.hbm [shape: f32[4,1,256], index: 4, kind: input, shape index: {}]
  %s5 = inlined_call_operand.hbm [shape: bf16[4,256,128], index: 5, kind: input, shape index: {}]
  %s6 = inlined_call_operand.hbm [shape: f32[1,128], index: 6, kind: input, shape index: {}]
  %s7 = inlined_call_operand.hbm [shape: f32[8,128], index: 7, kind: output, shape index: {}]
  %s8 = sld [smem:[#allocation0]]
  $region66: #{tpu_custom_call.1} parent=0
    _
  %s10 = ssub.s32 1, %s8
  %s11 = scalar_select 0, %s10, %s8
  $region1: #{tpu_custom_call.1} parent=0
    #allocation2 [shape = 'u8[4096]{0}', space=vmem, size = 0x1000, scoped, tag = 'input window, operand 0, single buffered']
    #allocation3 [shape = 's32[1]{0}', space=sflag, size = 0x4, scoped, tag = 'scoped memory for tpu_custom_call.1']
    #allocation4 [shape = 's32[1]{0}', space=sflag, size = 0x4, scoped, tag = 'scoped memory for tpu_custom_call.1']
    #allocation5 [shape = 'u8[262144]{0}', space=vmem, size = 0x40000, scoped, tag = 'input window, operand 1, single buffered']
    #allocation6 [shape = 's32[1]{0}', space=sflag, size = 0x4, scoped, tag = 'scoped memory for tpu_custom_call.1']
    #allocation7 [shape = 'u8[4096]{0}', space=vmem, size = 0x1000, scoped, tag = 'input window, operand 2, single buffered']
    #allocation8 [shape = 'u8[2097152]{0}', space=vmem, size = 0x200000, scoped, tag = 'input window, operand 3, single buffered']
    #allocation9 [shape = 's32[1]{0}', space=sflag, size = 0x4, scoped, tag = 'scoped memory for tpu_custom_call.1']
    #allocation10 [shape = 'u8[4096]{0}', space=vmem, size = 0x1000, scoped, tag = 'input window, operand 4, single buffered']
    #allocation11 [shape = 'u8[262144]{0}', space=vmem, size = 0x40000, scoped, tag = 'input window, operand 5, single buffered']
    #allocation12 [shape = 's32[1]{0}', space=sflag, size = 0x4, scoped, tag = 'scoped memory for tpu_custom_call.1']
    #allocation13 [shape = 'u8[512]{0}', space=vmem, size = 0x400, scoped, tag = 'input window, operand 6, single buffered']
    #allocation14 [shape = 'u8[4096]{0}', space=vmem, size = 0x1000, scoped, tag = 'output window, operand 0, single buffered']
    %12 = vsyncpa [#allocation3], 0
    %13 = vsyncpa [#allocation6], 0
    %14 = vsyncpa [#allocation9], 0
    %15 = vsyncpa [#allocation12], 0
    %16 = vsyncpa [#allocation4], 0
    // Predicated region
    $region2: #{tpu_custom_call.1} parent=1 // pred_check
      _
    $region3: #{tpu_custom_call.1} parent=1 // pred_check_branch
      %18 = sbr.rel (0) target = $region5
    $region4: #{tpu_custom_call.1} parent=1 // pred_region
      %s20 = ssub.s32 128, 128
      %21 = vsyncadd [#allocation3], %s20
      %s23 = sshll.u32 [#allocation2], 4
      %s24 = int_to_ptr.vmem [resolvable:$true] %s23
      %26 = dma.hbm_to_vmem [thread:$0]  %s0, 128, %s24, [#allocation3]
    $region5: #{tpu_custom_call.1} parent=1 // pred_fallthru
      _
    // Predicated region
    $region6: #{tpu_custom_call.1} parent=1 // pred_check
      _
    $region7: #{tpu_custom_call.1} parent=1 // pred_check_branch
      %28 = sbr.rel (0) target = $region9
    $region8: #{tpu_custom_call.1} parent=1 // pred_region
      %s30 = ssub.s32 8192, 8192
      %31 = vsyncadd [#allocation6], %s30
      %s32 = sshll.u32 [#allocation5], 4
      %s33 = int_to_ptr.vmem [resolvable:$true] %s32
      %38 = dma.hbm_to_vmem [thread:$0]  %s1, 8192, %s33, [#allocation6], 512, 512, 32
    $region9: #{tpu_custom_call.1} parent=1 // pred_fallthru
      _
    // Predicated region
    $region10: #{tpu_custom_call.1} parent=1 // pred_check
      _
    $region11: #{tpu_custom_call.1} parent=1 // pred_check_branch
      %40 = sbr.rel (0) target = $region13
    $region12: #{tpu_custom_call.1} parent=1 // pred_region
      %s42 = ssub.s32 128, 128
      %43 = vsyncadd [#allocation6], %s42
      %s45 = sshll.u32 [#allocation7], 4
      %s46 = int_to_ptr.vmem [resolvable:$true] %s45
      %48 = dma.hbm_to_vmem [thread:$0]  %s2, 128, %s46, [#allocation6]
    $region13: #{tpu_custom_call.1} parent=1 // pred_fallthru
      _
    // Predicated region
    $region14: #{tpu_custom_call.1} parent=1 // pred_check
      _
    $region15: #{tpu_custom_call.1} parent=1 // pred_check_branch
      %50 = sbr.rel (0) target = $region17
    $region16: #{tpu_custom_call.1} parent=1 // pred_region
      %s52 = ssub.s32 65536, 65536
      %53 = vsyncadd [#allocation9], %s52
      %s54 = sshll.u32 [#allocation8], 4
      %s55 = int_to_ptr.vmem [resolvable:$true] %s54
      %60 = dma.hbm_to_vmem [thread:$0]  %s3, 65536, %s55, [#allocation9], 128, 128, 8
    $region17: #{tpu_custom_call.1} parent=1 // pred_fallthru
      _
    // Predicated region
    $region18: #{tpu_custom_call.1} parent=1 // pred_check
      _
    $region19: #{tpu_custom_call.1} parent=1 // pred_check_branch
      %62 = sbr.rel (0) target = $region21
    $region20: #{tpu_custom_call.1} parent=1 // pred_region
      %s64 = ssub.s32 128, 128
      %65 = vsyncadd [#allocation9], %s64
      %s66 = sshll.u32 [#allocation10], 4
      %s67 = int_to_ptr.vmem [resolvable:$true] %s66
      %72 = dma.hbm_to_vmem [thread:$0]  %s4, 128, %s67, [#allocation9], 32, 32, 2
    $region21: #{tpu_custom_call.1} parent=1 // pred_fallthru
      _
    // Predicated region
    $region22: #{tpu_custom_call.1} parent=1 // pred_check
      _
    $region23: #{tpu_custom_call.1} parent=1 // pred_check_branch
      %74 = sbr.rel (0) target = $region25
    $region24: #{tpu_custom_call.1} parent=1 // pred_region
      %s76 = ssub.s32 8192, 8192
      %77 = vsyncadd [#allocation12], %s76
      %s78 = sshll.u32 [#allocation11], 4
      %s79 = int_to_ptr.vmem [resolvable:$true] %s78
      %84 = dma.hbm_to_vmem [thread:$0]  %s5, 8192, %s79, [#allocation12], 64, 64, 4
    $region25: #{tpu_custom_call.1} parent=1 // pred_fallthru
      _
    // Predicated region
    $region26: #{tpu_custom_call.1} parent=1 // pred_check
      _
    $region27: #{tpu_custom_call.1} parent=1 // pred_check_branch
      %86 = sbr.rel (0) target = $region29
    $region28: #{tpu_custom_call.1} parent=1 // pred_region
      %s88 = ssub.s32 16, 16
      %89 = vsyncadd [#allocation12], %s88
      %s91 = sshll.u32 [#allocation13], 4
      %s92 = int_to_ptr.vmem [resolvable:$true] %s91
      %94 = dma.hbm_to_vmem [thread:$0]  %s6, 16, %s92, [#allocation12]
    $region29: #{tpu_custom_call.1} parent=1 // pred_fallthru
      _
    // Predicated region
    $region30: #{tpu_custom_call.1} parent=1 // pred_check
      _
    $region31: #{tpu_custom_call.1} parent=1 // pred_check_branch
      %96 = sbr.rel (0) target = $region33
    $region32: #{tpu_custom_call.1} parent=1 // pred_region
      %97 = dma.done [#allocation3], 128
    $region33: #{tpu_custom_call.1} parent=1 // pred_fallthru
      _
    // Predicated region
    $region34: #{tpu_custom_call.1} parent=1 // pred_check
      _
    $region35: #{tpu_custom_call.1} parent=1 // pred_check_branch
      %99 = sbr.rel (0) target = $region37
    $region36: #{tpu_custom_call.1} parent=1 // pred_region
      %100 = dma.done [#allocation6], 8192
    $region37: #{tpu_custom_call.1} parent=1 // pred_fallthru
      _
    // Predicated region
    $region38: #{tpu_custom_call.1} parent=1 // pred_check
      _
    $region39: #{tpu_custom_call.1} parent=1 // pred_check_branch
      %102 = sbr.rel (0) target = $region41
    $region40: #{tpu_custom_call.1} parent=1 // pred_region
      %103 = dma.done [#allocation6], 128
    $region41: #{tpu_custom_call.1} parent=1 // pred_fallthru
      _
    // Predicated region
    $region42: #{tpu_custom_call.1} parent=1 // pred_check
      _
    $region43: #{tpu_custom_call.1} parent=1 // pred_check_branch
      %105 = sbr.rel (0) target = $region45
    $region44: #{tpu_custom_call.1} parent=1 // pred_region
      %106 = dma.done [#allocation9], 65536
    $region45: #{tpu_custom_call.1} parent=1 // pred_fallthru
      _
    // Predicated region
    $region46: #{tpu_custom_call.1} parent=1 // pred_check
      _
    $region47: #{tpu_custom_call.1} parent=1 // pred_check_branch
      %108 = sbr.rel (0) target = $region49
    $region48: #{tpu_custom_call.1} parent=1 // pred_region
      %109 = dma.done [#allocation9], 128
    $region49: #{tpu_custom_call.1} parent=1 // pred_fallthru
      _
    // Predicated region
    $region50: #{tpu_custom_call.1} parent=1 // pred_check
      _
    $region51: #{tpu_custom_call.1} parent=1 // pred_check_branch
      %111 = sbr.rel (0) target = $region53
    $region52: #{tpu_custom_call.1} parent=1 // pred_region
      %112 = dma.done [#allocation12], 8192
    $region53: #{tpu_custom_call.1} parent=1 // pred_fallthru
      _
    // Predicated region
    $region54: #{tpu_custom_call.1} parent=1 // pred_check
      _
    $region55: #{tpu_custom_call.1} parent=1 // pred_check_branch
      %114 = sbr.rel (0) target = $region57
    $region56: #{tpu_custom_call.1} parent=1 // pred_region
      %115 = dma.done [#allocation12], 16
    $region57: #{tpu_custom_call.1} parent=1 // pred_fallthru
      _
    %v117 = vld [vmem:[#allocation2] sm:$0xff]
    %v118 = vpack.c.bf16 %v117, %v117
    %v119 = vld [vmem:[#allocation5] sm:$0xff]
    %v120 = vld [vmem:[#allocation5 + $0x8] sm:$0xff]
    %v121 = vld [vmem:[#allocation5 + $0x10] sm:$0xff]
    %v122 = vld [vmem:[#allocation5 + $0x18] sm:$0xff]
    %v123 = vld [vmem:[#allocation5 + $0x20] sm:$0xff]
    %v124 = vld [vmem:[#allocation5 + $0x28] sm:$0xff]
    %v125 = vld [vmem:[#allocation5 + $0x30] sm:$0xff]
    %v126 = vld [vmem:[#allocation5 + $0x38] sm:$0xff]
    %v127 = vld [vmem:[#allocation5 + $0x40] sm:$0xff]
    %v128 = vld [vmem:[#allocation5 + $0x48] sm:$0xff]
    %v129 = vld [vmem:[#allocation5 + $0x50] sm:$0xff]
    %v130 = vld [vmem:[#allocation5 + $0x58] sm:$0xff]
    %v131 = vld [vmem:[#allocation5 + $0x60] sm:$0xff]
    %v132 = vld [vmem:[#allocation5 + $0x68] sm:$0xff]
    %v133 = vld [vmem:[#allocation5 + $0x70] sm:$0xff]
    %v134 = vld [vmem:[#allocation5 + $0x78] sm:$0xff]
    %v135 = vld [vmem:[#allocation5 + $0x80] sm:$0xff]
    %v136 = vld [vmem:[#allocation5 + $0x88] sm:$0xff]
    %v137 = vld [vmem:[#allocation5 + $0x90] sm:$0xff]
    %v138 = vld [vmem:[#allocation5 + $0x98] sm:$0xff]
    %v139 = vld [vmem:[#allocation5 + $0xa0] sm:$0xff]
    %v140 = vld [vmem:[#allocation5 + $0xa8] sm:$0xff]
    %v141 = vld [vmem:[#allocation5 + $0xb0] sm:$0xff]
    %v142 = vld [vmem:[#allocation5 + $0xb8] sm:$0xff]
    %v143 = vld [vmem:[#allocation5 + $0xc0] sm:$0xff]
    %v144 = vld [vmem:[#allocation5 + $0xc8] sm:$0xff]
    %v145 = vld [vmem:[#allocation5 + $0xd0] sm:$0xff]
    %v146 = vld [vmem:[#allocation5 + $0xd8] sm:$0xff]
    %v147 = vld [vmem:[#allocation5 + $0xe0] sm:$0xff]
    %v148 = vld [vmem:[#allocation5 + $0xe8] sm:$0xff]
    %v149 = vld [vmem:[#allocation5 + $0xf0] sm:$0xff]
    %v150 = vld [vmem:[#allocation5 + $0xf8] sm:$0xff]
    %v151 = vld [vmem:[#allocation5 + $0x100] sm:$0xff]
    %v152 = vld [vmem:[#allocation5 + $0x108] sm:$0xff]
    %v153 = vld [vmem:[#allocation5 + $0x110] sm:$0xff]
    %v154 = vld [vmem:[#allocation5 + $0x118] sm:$0xff]
    %v155 = vld [vmem:[#allocation5 + $0x120] sm:$0xff]
    %v156 = vld [vmem:[#allocation5 + $0x128] sm:$0xff]
    %v157 = vld [vmem:[#allocation5 + $0x130] sm:$0xff]
    %v158 = vld [vmem:[#allocation5 + $0x138] sm:$0xff]
    %v159 = vld [vmem:[#allocation5 + $0x140] sm:$0xff]
    %v160 = vld [vmem:[#allocation5 + $0x148] sm:$0xff]
    %v161 = vld [vmem:[#allocation5 + $0x150] sm:$0xff]
    %v162 = vld [vmem:[#allocation5 + $0x158] sm:$0xff]
    %v163 = vld [vmem:[#allocation5 + $0x160] sm:$0xff]
    %v164 = vld [vmem:[#allocation5 + $0x168] sm:$0xff]
    %v165 = vld [vmem:[#allocation5 + $0x170] sm:$0xff]
    %v166 = vld [vmem:[#allocation5 + $0x178] sm:$0xff]
    %v167 = vld [vmem:[#allocation5 + $0x180] sm:$0xff]
    %v168 = vld [vmem:[#allocation5 + $0x188] sm:$0xff]
    %v169 = vld [vmem:[#allocation5 + $0x190] sm:$0xff]
    %v170 = vld [vmem:[#allocation5 + $0x198] sm:$0xff]
    %v171 = vld [vmem:[#allocation5 + $0x1a0] sm:$0xff]
    %v172 = vld [vmem:[#allocation5 + $0x1a8] sm:$0xff]
    %v173 = vld [vmem:[#allocation5 + $0x1b0] sm:$0xff]
    %v174 = vld [vmem:[#allocation5 + $0x1b8] sm:$0xff]
    %v175 = vld [vmem:[#allocation5 + $0x1c0] sm:$0xff]
    %v176 = vld [vmem:[#allocation5 + $0x1c8] sm:$0xff]
    %v177 = vld [vmem:[#allocation5 + $0x1d0] sm:$0xff]
    %v178 = vld [vmem:[#allocation5 + $0x1d8] sm:$0xff]
    %v179 = vld [vmem:[#allocation5 + $0x1e0] sm:$0xff]
    %v180 = vld [vmem:[#allocation5 + $0x1e8] sm:$0xff]
    %v181 = vld [vmem:[#allocation5 + $0x1f0] sm:$0xff]
    %v182 = vld [vmem:[#allocation5 + $0x1f8] sm:$0xff]
    %v183 = vld [vmem:[#allocation7] sm:$0xff]
    %v185 = vlaneseq
    %v186 = vshrl.u32 %v185, 7
    %v187 = vsub.s32 0, %v186
    %v188 = vrot.slane %v183, %v187
    %v189 = vlaneseq
    %v190 = vshrl.u32 %v189, 7
    %v191 = vsub.s32 1, %v190
    %v192 = vrot.slane %v183, %v191
    %v193 = vlaneseq
    %v194 = vshrl.u32 %v193, 7
    %v195 = vsub.s32 2, %v194
    %v196 = vrot.slane %v183, %v195
    %v197 = vlaneseq
    %v198 = vshrl.u32 %v197, 7
    %v199 = vsub.s32 3, %v198
    %v200 = vrot.slane %v183, %v199
    %v201 = vlaneseq
    %v202 = vshrl.u32 %v201, 7
    %v203 = vsub.s32 4, %v202
    %v204 = vrot.slane %v183, %v203
    %v205 = vlaneseq
    %v206 = vshrl.u32 %v205, 7
    %v207 = vsub.s32 5, %v206
    %v208 = vrot.slane %v183, %v207
    %v209 = vlaneseq
    %v210 = vshrl.u32 %v209, 7
    %v211 = vsub.s32 6, %v210
    %v212 = vrot.slane %v183, %v211
    %v213 = vlaneseq
    %v214 = vshrl.u32 %v213, 7
    %v215 = vsub.s32 7, %v214
    %v216 = vrot.slane %v183, %v215
    %v289 = vunpack.c.l.b16 %v119
    %v290 = vunpack.c.h.b16 %v119
    %v291 = vunpack.c.l.b16 %v120
    %v292 = vunpack.c.h.b16 %v120
    %v293 = vunpack.c.l.b16 %v121
    %v294 = vunpack.c.h.b16 %v121
    %v295 = vunpack.c.l.b16 %v122
    %v296 = vunpack.c.h.b16 %v122
    %v297 = vunpack.c.l.b16 %v123
    %v298 = vunpack.c.h.b16 %v123
    %v299 = vunpack.c.l.b16 %v124
    %v300 = vunpack.c.h.b16 %v124
    %v301 = vunpack.c.l.b16 %v125
    %v302 = vunpack.c.h.b16 %v125
    %v303 = vunpack.c.l.b16 %v126
    %v304 = vunpack.c.h.b16 %v126
    %v305 = vunpack.c.l.b16 %v127
    %v306 = vunpack.c.h.b16 %v127
    %v307 = vunpack.c.l.b16 %v128
    %v308 = vunpack.c.h.b16 %v128
    %v309 = vunpack.c.l.b16 %v129
    %v310 = vunpack.c.h.b16 %v129
    %v311 = vunpack.c.l.b16 %v130
    %v312 = vunpack.c.h.b16 %v130
    %v313 = vunpack.c.l.b16 %v131
    %v314 = vunpack.c.h.b16 %v131
    %v315 = vunpack.c.l.b16 %v132
    %v316 = vunpack.c.h.b16 %v132
    %v317 = vunpack.c.l.b16 %v133
    %v318 = vunpack.c.h.b16 %v133
    %v319 = vunpack.c.l.b16 %v134
    %v320 = vunpack.c.h.b16 %v134
    %v321 = vunpack.c.l.b16 %v135
    %v322 = vunpack.c.h.b16 %v135
    %v323 = vunpack.c.l.b16 %v136
    %v324 = vunpack.c.h.b16 %v136
    %v325 = vunpack.c.l.b16 %v137
    %v326 = vunpack.c.h.b16 %v137
    %v327 = vunpack.c.l.b16 %v138
    %v328 = vunpack.c.h.b16 %v138
    %v329 = vunpack.c.l.b16 %v139
    %v330 = vunpack.c.h.b16 %v139
    %v331 = vunpack.c.l.b16 %v140
    %v332 = vunpack.c.h.b16 %v140
    %v333 = vunpack.c.l.b16 %v141
    %v334 = vunpack.c.h.b16 %v141
    %v335 = vunpack.c.l.b16 %v142
    %v336 = vunpack.c.h.b16 %v142
    %v337 = vunpack.c.l.b16 %v143
    %v338 = vunpack.c.h.b16 %v143
    %v339 = vunpack.c.l.b16 %v144
    %v340 = vunpack.c.h.b16 %v144
    %v341 = vunpack.c.l.b16 %v145
    %v342 = vunpack.c.h.b16 %v145
    %v343 = vunpack.c.l.b16 %v146
    %v344 = vunpack.c.h.b16 %v146
    %v345 = vunpack.c.l.b16 %v147
    %v346 = vunpack.c.h.b16 %v147
    %v347 = vunpack.c.l.b16 %v148
    %v348 = vunpack.c.h.b16 %v148
    %v349 = vunpack.c.l.b16 %v149
    %v350 = vunpack.c.h.b16 %v149
    %v351 = vunpack.c.l.b16 %v150
    %v352 = vunpack.c.h.b16 %v150
    %v353 = vunpack.c.l.b16 %v151
    %v354 = vunpack.c.h.b16 %v151
    %v355 = vunpack.c.l.b16 %v152
    %v356 = vunpack.c.h.b16 %v152
    %v357 = vunpack.c.l.b16 %v153
    %v358 = vunpack.c.h.b16 %v153
    %v359 = vunpack.c.l.b16 %v154
    %v360 = vunpack.c.h.b16 %v154
    %v361 = vunpack.c.l.b16 %v155
    %v362 = vunpack.c.h.b16 %v155
    %v363 = vunpack.c.l.b16 %v156
    %v364 = vunpack.c.h.b16 %v156
    %v365 = vunpack.c.l.b16 %v157
    %v366 = vunpack.c.h.b16 %v157
    %v367 = vunpack.c.l.b16 %v158
    %v368 = vunpack.c.h.b16 %v158
    %v369 = vunpack.c.l.b16 %v159
    %v370 = vunpack.c.h.b16 %v159
    %v371 = vunpack.c.l.b16 %v160
    %v372 = vunpack.c.h.b16 %v160
    %v373 = vunpack.c.l.b16 %v161
    %v374 = vunpack.c.h.b16 %v161
    %v375 = vunpack.c.l.b16 %v162
    %v376 = vunpack.c.h.b16 %v162
    %v377 = vunpack.c.l.b16 %v163
    %v378 = vunpack.c.h.b16 %v163
    %v379 = vunpack.c.l.b16 %v164
    %v380 = vunpack.c.h.b16 %v164
    %v381 = vunpack.c.l.b16 %v165
    %v382 = vunpack.c.h.b16 %v165
    %v383 = vunpack.c.l.b16 %v166
    %v384 = vunpack.c.h.b16 %v166
    %v385 = vunpack.c.l.b16 %v167
    %v386 = vunpack.c.h.b16 %v167
    %v387 = vunpack.c.l.b16 %v168
    %v388 = vunpack.c.h.b16 %v168
    %v389 = vunpack.c.l.b16 %v169
    %v390 = vunpack.c.h.b16 %v169
    %v391 = vunpack.c.l.b16 %v170
    %v392 = vunpack.c.h.b16 %v170
    %v393 = vunpack.c.l.b16 %v171
    %v394 = vunpack.c.h.b16 %v171
    %v395 = vunpack.c.l.b16 %v172
    %v396 = vunpack.c.h.b16 %v172
    %v397 = vunpack.c.l.b16 %v173
    %v398 = vunpack.c.h.b16 %v173
    %v399 = vunpack.c.l.b16 %v174
    %v400 = vunpack.c.h.b16 %v174
    %v401 = vunpack.c.l.b16 %v175
    %v402 = vunpack.c.h.b16 %v175
    %v403 = vunpack.c.l.b16 %v176
    %v404 = vunpack.c.h.b16 %v176
    %v405 = vunpack.c.l.b16 %v177
    %v406 = vunpack.c.h.b16 %v177
    %v407 = vunpack.c.l.b16 %v178
    %v408 = vunpack.c.h.b16 %v178
    %v409 = vunpack.c.l.b16 %v179
    %v410 = vunpack.c.h.b16 %v179
    %v411 = vunpack.c.l.b16 %v180
    %v412 = vunpack.c.h.b16 %v180
    %v413 = vunpack.c.l.b16 %v181
    %v414 = vunpack.c.h.b16 %v181
    %v415 = vunpack.c.l.b16 %v182
    %v416 = vunpack.c.h.b16 %v182
    %v417 = vpack.c.b16 %v297, %v289
    %v418 = vpack.c.b16 %v298, %v290
    %v419 = vpack.c.b16 %v299, %v291
    %v420 = vpack.c.b16 %v300, %v292
    %v421 = vpack.c.b16 %v301, %v293
    %v422 = vpack.c.b16 %v302, %v294
    %v423 = vpack.c.b16 %v303, %v295
    %v424 = vpack.c.b16 %v304, %v296
    %v425 = vpack.c.b16 %v313, %v305
    %v426 = vpack.c.b16 %v314, %v306
    %v427 = vpack.c.b16 %v315, %v307
    %v428 = vpack.c.b16 %v316, %v308
    %v429 = vpack.c.b16 %v317, %v309
    %v430 = vpack.c.b16 %v318, %v310
    %v431 = vpack.c.b16 %v319, %v311
    %v432 = vpack.c.b16 %v320, %v312
    %v433 = vpack.c.b16 %v329, %v321
    %v434 = vpack.c.b16 %v330, %v322
    %v435 = vpack.c.b16 %v331, %v323
    %v436 = vpack.c.b16 %v332, %v324
    %v437 = vpack.c.b16 %v333, %v325
    %v438 = vpack.c.b16 %v334, %v326
    %v439 = vpack.c.b16 %v335, %v327
    %v440 = vpack.c.b16 %v336, %v328
    %v441 = vpack.c.b16 %v345, %v337
    %v442 = vpack.c.b16 %v346, %v338
    %v443 = vpack.c.b16 %v347, %v339
    %v444 = vpack.c.b16 %v348, %v340
    %v445 = vpack.c.b16 %v349, %v341
    %v446 = vpack.c.b16 %v350, %v342
    %v447 = vpack.c.b16 %v351, %v343
    %v448 = vpack.c.b16 %v352, %v344
    %v449 = vpack.c.b16 %v361, %v353
    %v450 = vpack.c.b16 %v362, %v354
    %v451 = vpack.c.b16 %v363, %v355
    %v452 = vpack.c.b16 %v364, %v356
    %v453 = vpack.c.b16 %v365, %v357
    %v454 = vpack.c.b16 %v366, %v358
    %v455 = vpack.c.b16 %v367, %v359
    %v456 = vpack.c.b16 %v368, %v360
    %v457 = vpack.c.b16 %v377, %v369
    %v458 = vpack.c.b16 %v378, %v370
    %v459 = vpack.c.b16 %v379, %v371
    %v460 = vpack.c.b16 %v380, %v372
    %v461 = vpack.c.b16 %v381, %v373
    %v462 = vpack.c.b16 %v382, %v374
    %v463 = vpack.c.b16 %v383, %v375
    %v464 = vpack.c.b16 %v384, %v376
    %v465 = vpack.c.b16 %v393, %v385
    %v466 = vpack.c.b16 %v394, %v386
    %v467 = vpack.c.b16 %v395, %v387
    %v468 = vpack.c.b16 %v396, %v388
    %v469 = vpack.c.b16 %v397, %v389
    %v470 = vpack.c.b16 %v398, %v390
    %v471 = vpack.c.b16 %v399, %v391
    %v472 = vpack.c.b16 %v400, %v392
    %v473 = vpack.c.b16 %v409, %v401
    %v474 = vpack.c.b16 %v410, %v402
    %v475 = vpack.c.b16 %v411, %v403
    %v476 = vpack.c.b16 %v412, %v404
    %v477 = vpack.c.b16 %v413, %v405
    %v478 = vpack.c.b16 %v414, %v406
    %v479 = vpack.c.b16 %v415, %v407
    %v480 = vpack.c.b16 %v416, %v408
    %545 = vmatprep.subr.bf16.mxu0 %v418
    %546 = vmatpush1.bf16.msra.mxu0 %v417
    %547 = vmatprep.subr.bf16.mxu0 %v426
    %548 = vmatpush1.bf16.msra.mxu0 %v425
    %549 = vmatprep.subr.bf16.mxu0 %v434
    %550 = vmatpush1.bf16.msra.mxu0 %v433
    %551 = vmatprep.subr.bf16.mxu0 %v442
    %552 = vmatpush1.bf16.msra.mxu0 %v441
    %553 = vmatprep.subr.bf16.mxu0 %v450
    %554 = vmatpush1.bf16.msra.mxu0 %v449
    %555 = vmatprep.subr.bf16.mxu0 %v458
    %556 = vmatpush1.bf16.msra.mxu0 %v457
    %557 = vmatprep.subr.bf16.mxu0 %v466
    %558 = vmatpush1.bf16.msra.mxu0 %v465
    %559 = vmatprep.subr.bf16.mxu0 %v474
    %560 = vmatpush1.bf16.msra.mxu0 %v473
    %561 = vmatprep.subr.bf16.mxu0 0
    %562 = vmatpush1.bf16.msra.mxu0 0
    %563 = vmatprep.subr.bf16.mxu0 0
    %564 = vmatpush1.bf16.msra.mxu0 0
    %565 = vmatprep.subr.bf16.mxu0 0
    %566 = vmatpush1.bf16.msra.mxu0 0
    %567 = vmatprep.subr.bf16.mxu0 0
    %568 = vmatpush1.bf16.msra.mxu0 0
    %569 = vmatprep.subr.bf16.mxu0 0
    %570 = vmatpush1.bf16.msra.mxu0 0
    %571 = vmatprep.subr.bf16.mxu0 0
    %572 = vmatpush1.bf16.msra.mxu0 0
    %573 = vmatprep.subr.bf16.mxu0 0
    %574 = vmatpush1.bf16.msra.mxu0 0
    %575 = vmatprep.subr.bf16.mxu0 0
    %576 = vmatpush1.bf16.msra.mxu0 0
    %577 = vmatprep.mubr.bf16.mxu0 0
    %578 = vmatmul.mubr.bf16.gmra.mrb[0].mxu0 %v118
    %v579 = vpop.f32.mrb[0].mxu0
    %v580 = vadd.f32 %v188, %v579
    %v581 = vpop.f32.mrb[0].mxu0
    %v582 = vadd.f32 %v192, %v581
    %v583 = vpop.f32.mrb[0].mxu0
    %v584 = vpop.f32.mrb[0].mxu0
    %585 = vdwg.mxu0
    %586 = vmatprep.subr.bf16.mxu0 %v420
    %587 = vmatpush1.bf16.msra.mxu0 %v419
    %588 = vmatprep.subr.bf16.mxu0 %v428
    %589 = vmatpush1.bf16.msra.mxu0 %v427
    %590 = vmatprep.subr.bf16.mxu0 %v436
    %591 = vmatpush1.bf16.msra.mxu0 %v435
    %592 = vmatprep.subr.bf16.mxu0 %v444
    %593 = vmatpush1.bf16.msra.mxu0 %v443
    %594 = vmatprep.subr.bf16.mxu0 %v452
    %595 = vmatpush1.bf16.msra.mxu0 %v451
    %596 = vmatprep.subr.bf16.mxu0 %v460
    %597 = vmatpush1.bf16.msra.mxu0 %v459
    %598 = vmatprep.subr.bf16.mxu0 %v468
    %599 = vmatpush1.bf16.msra.mxu0 %v467
    %600 = vmatprep.subr.bf16.mxu0 %v476
    %601 = vmatpush1.bf16.msra.mxu0 %v475
    %602 = vmatprep.subr.bf16.mxu0 0
    %603 = vmatpush1.bf16.msra.mxu0 0
    %604 = vmatprep.subr.bf16.mxu0 0
    %605 = vmatpush1.bf16.msra.mxu0 0
    %606 = vmatprep.subr.bf16.mxu0 0
    %607 = vmatpush1.bf16.msra.mxu0 0
    %608 = vmatprep.subr.bf16.mxu0 0
    %609 = vmatpush1.bf16.msra.mxu0 0
    %610 = vmatprep.subr.bf16.mxu0 0
    %611 = vmatpush1.bf16.msra.mxu0 0
    %612 = vmatprep.subr.bf16.mxu0 0
    %613 = vmatpush1.bf16.msra.mxu0 0
    %614 = vmatprep.subr.bf16.mxu0 0
    %615 = vmatpush1.bf16.msra.mxu0 0
    %616 = vmatprep.subr.bf16.mxu0 0
    %617 = vmatpush1.bf16.msra.mxu0 0
    %618 = vmatprep.mubr.bf16.mxu0 0
    %619 = vmatmul.mubr.bf16.gmra.mrb[0].mxu0 %v118
    %v620 = vpop.f32.mrb[0].mxu0
    %v621 = vadd.f32 %v196, %v620
    %v622 = vpop.f32.mrb[0].mxu0
    %v623 = vadd.f32 %v200, %v622
    %v624 = vpop.f32.mrb[0].mxu0
    %v625 = vpop.f32.mrb[0].mxu0
    %626 = vdwg.mxu0
    %627 = vmatprep.subr.bf16.mxu0 %v422
    %628 = vmatpush1.bf16.msra.mxu0 %v421
    %629 = vmatprep.subr.bf16.mxu0 %v430
    %630 = vmatpush1.bf16.msra.mxu0 %v429
    %631 = vmatprep.subr.bf16.mxu0 %v438
    %632 = vmatpush1.bf16.msra.mxu0 %v437
    %633 = vmatprep.subr.bf16.mxu0 %v446
    %634 = vmatpush1.bf16.msra.mxu0 %v445
    %635 = vmatprep.subr.bf16.mxu0 %v454
    %636 = vmatpush1.bf16.msra.mxu0 %v453
    %637 = vmatprep.subr.bf16.mxu0 %v462
    %638 = vmatpush1.bf16.msra.mxu0 %v461
    %639 = vmatprep.subr.bf16.mxu0 %v470
    %640 = vmatpush1.bf16.msra.mxu0 %v469
    %641 = vmatprep.subr.bf16.mxu0 %v478
    %642 = vmatpush1.bf16.msra.mxu0 %v477
    %643 = vmatprep.subr.bf16.mxu0 0
    %644 = vmatpush1.bf16.msra.mxu0 0
    %645 = vmatprep.subr.bf16.mxu0 0
    %646 = vmatpush1.bf16.msra.mxu0 0
    %647 = vmatprep.subr.bf16.mxu0 0
    %648 = vmatpush1.bf16.msra.mxu0 0
    %649 = vmatprep.subr.bf16.mxu0 0
    %650 = vmatpush1.bf16.msra.mxu0 0
    %651 = vmatprep.subr.bf16.mxu0 0
    %652 = vmatpush1.bf16.msra.mxu0 0
    %653 = vmatprep.subr.bf16.mxu0 0
    %654 = vmatpush1.bf16.msra.mxu0 0
    %655 = vmatprep.subr.bf16.mxu0 0
    %656 = vmatpush1.bf16.msra.mxu0 0
    %657 = vmatprep.subr.bf16.mxu0 0
    %658 = vmatpush1.bf16.msra.mxu0 0
    %659 = vmatprep.mubr.bf16.mxu0 0
    %660 = vmatmul.mubr.bf16.gmra.mrb[0].mxu0 %v118
    %v661 = vpop.f32.mrb[0].mxu0
    %v662 = vadd.f32 %v204, %v661
    %v663 = vpop.f32.mrb[0].mxu0
    %v664 = vadd.f32 %v208, %v663
    %v665 = vpop.f32.mrb[0].mxu0
    %v666 = vpop.f32.mrb[0].mxu0
    %667 = vdwg.mxu0
    %668 = vmatprep.subr.bf16.mxu0 %v424
    %669 = vmatpush1.bf16.msra.mxu0 %v423
    %670 = vmatprep.subr.bf16.mxu0 %v432
    %671 = vmatpush1.bf16.msra.mxu0 %v431
    %672 = vmatprep.subr.bf16.mxu0 %v440
    %673 = vmatpush1.bf16.msra.mxu0 %v439
    %674 = vmatprep.subr.bf16.mxu0 %v448
    %675 = vmatpush1.bf16.msra.mxu0 %v447
    %676 = vmatprep.subr.bf16.mxu0 %v456
    %677 = vmatpush1.bf16.msra.mxu0 %v455
    %678 = vmatprep.subr.bf16.mxu0 %v464
    %679 = vmatpush1.bf16.msra.mxu0 %v463
    %680 = vmatprep.subr.bf16.mxu0 %v472
    %681 = vmatpush1.bf16.msra.mxu0 %v471
    %682 = vmatprep.subr.bf16.mxu0 %v480
    %683 = vmatpush1.bf16.msra.mxu0 %v479
    %684 = vmatprep.subr.bf16.mxu0 0
    %685 = vmatpush1.bf16.msra.mxu0 0
    %686 = vmatprep.subr.bf16.mxu0 0
    %687 = vmatpush1.bf16.msra.mxu0 0
    %688 = vmatprep.subr.bf16.mxu0 0
    %689 = vmatpush1.bf16.msra.mxu0 0
    %690 = vmatprep.subr.bf16.mxu0 0
    %691 = vmatpush1.bf16.msra.mxu0 0
    %692 = vmatprep.subr.bf16.mxu0 0
    %693 = vmatpush1.bf16.msra.mxu0 0
    %694 = vmatprep.subr.bf16.mxu0 0
    %695 = vmatpush1.bf16.msra.mxu0 0
    %696 = vmatprep.subr.bf16.mxu0 0
    %697 = vmatpush1.bf16.msra.mxu0 0
    %698 = vmatprep.subr.bf16.mxu0 0
    %699 = vmatpush1.bf16.msra.mxu0 0
    %700 = vmatprep.mubr.bf16.mxu0 0
    %701 = vmatmul.mubr.bf16.gmra.mrb[0].mxu0 %v118
    %v702 = vpop.f32.mrb[0].mxu0
    %v703 = vadd.f32 %v212, %v702
    %v704 = vpop.f32.mrb[0].mxu0
    %v705 = vadd.f32 %v216, %v704
    %v706 = vpop.f32.mrb[0].mxu0
    %v707 = vpop.f32.mrb[0].mxu0
    %708 = vdwg.mxu0
    %v709 = vmax.f32 %v580, 0.0
    %v710 = vmax.f32 %v582, 0.0
    %v711 = vmax.f32 %v621, 0.0
    %v712 = vmax.f32 %v623, 0.0
    %v713 = vmax.f32 %v662, 0.0
    %v714 = vmax.f32 %v664, 0.0
    %v715 = vmax.f32 %v703, 0.0
    %v716 = vmax.f32 %v705, 0.0
    %v717 = vpack.c.bf16 %v709, %v709
    %v718 = vpack.c.bf16 %v710, %v710
    %v719 = vpack.c.bf16 %v711, %v711
    %v720 = vpack.c.bf16 %v712, %v712
    %v721 = vpack.c.bf16 %v713, %v713
    %v722 = vpack.c.bf16 %v714, %v714
    %v723 = vpack.c.bf16 %v715, %v715
    %v724 = vpack.c.bf16 %v716, %v716
    %v725 = vld [vmem:[#allocation8] sm:$0xff]
    %v726 = vld [vmem:[#allocation8 + $0x8] sm:$0xff]
    %v727 = vld [vmem:[#allocation8 + $0x10] sm:$0xff]
    %v728 = vld [vmem:[#allocation8 + $0x18] sm:$0xff]
    %v729 = vld [vmem:[#allocation8 + $0x20] sm:$0xff]
    %v730 = vld [vmem:[#allocation8 + $0x28] sm:$0xff]
    %v731 = vld [vmem:[#allocation8 + $0x30] sm:$0xff]
    %v732 = vld [vmem:[#allocation8 + $0x38] sm:$0xff]
    %v733 = vld [vmem:[#allocation8 + $0x40] sm:$0xff]
    %v734 = vld [vmem:[#allocation8 + $0x48] sm:$0xff]
    %v735 = vld [vmem:[#allocation8 + $0x50] sm:$0xff]
    %v736 = vld [vmem:[#allocation8 + $0x58] sm:$0xff]
    %v737 = vld [vmem:[#allocation8 + $0x60] sm:$0xff]
    %v738 = vld [vmem:[#allocation8 + $0x68] sm:$0xff]
    %v739 = vld [vmem:[#allocation8 + $0x70] sm:$0xff]
    %v740 = vld [vmem:[#allocation8 + $0x78] sm:$0xff]
    %v741 = vld [vmem:[#allocation8 + $0x80] sm:$0xff]
    %v742 = vld [vmem:[#allocation8 + $0x88] sm:$0xff]
    %v743 = vld [vmem:[#allocation8 + $0x90] sm:$0xff]
    %v744 = vld [vmem:[#allocation8 + $0x98] sm:$0xff]
    %v745 = vld [vmem:[#allocation8 + $0xa0] sm:$0xff]
    %v746 = vld [vmem:[#allocation8 + $0xa8] sm:$0xff]
    %v747 = vld [vmem:[#allocation8 + $0xb0] sm:$0xff]
    %v748 = vld [vmem:[#allocation8 + $0xb8] sm:$0xff]
    %v749 = vld [vmem:[#allocation8 + $0xc0] sm:$0xff]
    %v750 = vld [vmem:[#allocation8 + $0xc8] sm:$0xff]
    %v751 = vld [vmem:[#allocation8 + $0xd0] sm:$0xff]
    %v752 = vld [vmem:[#allocation8 + $0xd8] sm:$0xff]
    %v753 = vld [vmem:[#allocation8 + $0xe0] sm:$0xff]
    %v754 = vld [vmem:[#allocation8 + $0xe8] sm:$0xff]
    %v755 = vld [vmem:[#allocation8 + $0xf0] sm:$0xff]
    %v756 = vld [vmem:[#allocation8 + $0xf8] sm:$0xff]
    %v757 = vld [vmem:[#allocation8 + $0x100] sm:$0xff]
    %v758 = vld [vmem:[#allocation8 + $0x108] sm:$0xff]
    %v759 = vld [vmem:[#allocation8 + $0x110] sm:$0xff]
    %v760 = vld [vmem:[#allocation8 + $0x118] sm:$0xff]
    %v761 = vld [vmem:[#allocation8 + $0x120] sm:$0xff]
    %v762 = vld [vmem:[#allocation8 + $0x128] sm:$0xff]
    %v763 = vld [vmem:[#allocation8 + $0x130] sm:$0xff]
    %v764 = vld [vmem:[#allocation8 + $0x138] sm:$0xff]
    %v765 = vld [vmem:[#allocation8 + $0x140] sm:$0xff]
    %v766 = vld [vmem:[#allocation8 + $0x148] sm:$0xff]
    %v767 = vld [vmem:[#allocation8 + $0x150] sm:$0xff]
    %v768 = vld [vmem:[#allocation8 + $0x158] sm:$0xff]
    %v769 = vld [vmem:[#allocation8 + $0x160] sm:$0xff]
    %v770 = vld [vmem:[#allocation8 + $0x168] sm:$0xff]
    %v771 = vld [vmem:[#allocation8 + $0x170] sm:$0xff]
    %v772 = vld [vmem:[#allocation8 + $0x178] sm:$0xff]
    %v773 = vld [vmem:[#allocation8 + $0x180] sm:$0xff]
    %v774 = vld [vmem:[#allocation8 + $0x188] sm:$0xff]
    %v775 = vld [vmem:[#allocation8 + $0x190] sm:$0xff]
    %v776 = vld [vmem:[#allocation8 + $0x198] sm:$0xff]
    %v777 = vld [vmem:[#allocation8 + $0x1a0] sm:$0xff]
    %v778 = vld [vmem:[#allocation8 + $0x1a8] sm:$0xff]
    %v779 = vld [vmem:[#allocation8 + $0x1b0] sm:$0xff]
    %v780 = vld [vmem:[#allocation8 + $0x1b8] sm:$0xff]
    %v781 = vld [vmem:[#allocation8 + $0x1c0] sm:$0xff]
    %v782 = vld [vmem:[#allocation8 + $0x1c8] sm:$0xff]
    %v783 = vld [vmem:[#allocation8 + $0x1d0] sm:$0xff]
    %v784 = vld [vmem:[#allocation8 + $0x1d8] sm:$0xff]
    %v785 = vld [vmem:[#allocation8 + $0x1e0] sm:$0xff]
    %v786 = vld [vmem:[#allocation8 + $0x1e8] sm:$0xff]
    %v787 = vld [vmem:[#allocation8 + $0x1f0] sm:$0xff]
    %v788 = vld [vmem:[#allocation8 + $0x1f8] sm:$0xff]
    %v789 = vld [vmem:[#allocation8 + $0x200] sm:$0xff]
    %v790 = vld [vmem:[#allocation8 + $0x208] sm:$0xff]
    %v791 = vld [vmem:[#allocation8 + $0x210] sm:$0xff]
    %v792 = vld [vmem:[#allocation8 + $0x218] sm:$0xff]
    %v793 = vld [vmem:[#allocation8 + $0x220] sm:$0xff]
    %v794 = vld [vmem:[#allocation8 + $0x228] sm:$0xff]
    %v795 = vld [vmem:[#allocation8 + $0x230] sm:$0xff]
    %v796 = vld [vmem:[#allocation8 + $0x238] sm:$0xff]
    %v797 = vld [vmem:[#allocation8 + $0x240] sm:$0xff]
    %v798 = vld [vmem:[#allocation8 + $0x248] sm:$0xff]
    %v799 = vld [vmem:[#allocation8 + $0x250] sm:$0xff]
    %v800 = vld [vmem:[#allocation8 + $0x258] sm:$0xff]
    %v801 = vld [vmem:[#allocation8 + $0x260] sm:$0xff]
    %v802 = vld [vmem:[#allocation8 + $0x268] sm:$0xff]
    %v803 = vld [vmem:[#allocation8 + $0x270] sm:$0xff]
    %v804 = vld [vmem:[#allocation8 + $0x278] sm:$0xff]
    %v805 = vld [vmem:[#allocation8 + $0x280] sm:$0xff]
    %v806 = vld [vmem:[#allocation8 + $0x288] sm:$0xff]
    %v807 = vld [vmem:[#allocation8 + $0x290] sm:$0xff]
    %v808 = vld [vmem:[#allocation8 + $0x298] sm:$0xff]
    %v809 = vld [vmem:[#allocation8 + $0x2a0] sm:$0xff]
    %v810 = vld [vmem:[#allocation8 + $0x2a8] sm:$0xff]
    %v811 = vld [vmem:[#allocation8 + $0x2b0] sm:$0xff]
    %v812 = vld [vmem:[#allocation8 + $0x2b8] sm:$0xff]
    %v813 = vld [vmem:[#allocation8 + $0x2c0] sm:$0xff]
    %v814 = vld [vmem:[#allocation8 + $0x2c8] sm:$0xff]
    %v815 = vld [vmem:[#allocation8 + $0x2d0] sm:$0xff]
    %v816 = vld [vmem:[#allocation8 + $0x2d8] sm:$0xff]
    %v817 = vld [vmem:[#allocation8 + $0x2e0] sm:$0xff]
    %v818 = vld [vmem:[#allocation8 + $0x2e8] sm:$0xff]
    %v819 = vld [vmem:[#allocation8 + $0x2f0] sm:$0xff]
    %v820 = vld [vmem:[#allocation8 + $0x2f8] sm:$0xff]
    %v821 = vld [vmem:[#allocation8 + $0x300] sm:$0xff]
    %v822 = vld [vmem:[#allocation8 + $0x308] sm:$0xff]
    %v823 = vld [vmem:[#allocation8 + $0x310] sm:$0xff]
    %v824 = vld [vmem:[#allocation8 + $0x318] sm:$0xff]
    %v825 = vld [vmem:[#allocation8 + $0x320] sm:$0xff]
    %v826 = vld [vmem:[#allocation8 + $0x328] sm:$0xff]
    %v827 = vld [vmem:[#allocation8 + $0x330] sm:$0xff]
    %v828 = vld [vmem:[#allocation8 + $0x338] sm:$0xff]
    %v829 = vld [vmem:[#allocation8 + $0x340] sm:$0xff]
    %v830 = vld [vmem:[#allocation8 + $0x348] sm:$0xff]
    %v831 = vld [vmem:[#allocation8 + $0x350] sm:$0xff]
    %v832 = vld [vmem:[#allocation8 + $0x358] sm:$0xff]
    %v833 = vld [vmem:[#allocation8 + $0x360] sm:$0xff]
    %v834 = vld [vmem:[#allocation8 + $0x368] sm:$0xff]
    %v835 = vld [vmem:[#allocation8 + $0x370] sm:$0xff]
    %v836 = vld [vmem:[#allocation8 + $0x378] sm:$0xff]
    %v837 = vld [vmem:[#allocation8 + $0x380] sm:$0xff]
    %v838 = vld [vmem:[#allocation8 + $0x388] sm:$0xff]
    %v839 = vld [vmem:[#allocation8 + $0x390] sm:$0xff]
    %v840 = vld [vmem:[#allocation8 + $0x398] sm:$0xff]
    %v841 = vld [vmem:[#allocation8 + $0x3a0] sm:$0xff]
    %v842 = vld [vmem:[#allocation8 + $0x3a8] sm:$0xff]
    %v843 = vld [vmem:[#allocation8 + $0x3b0] sm:$0xff]
    %v844 = vld [vmem:[#allocation8 + $0x3b8] sm:$0xff]
    %v845 = vld [vmem:[#allocation8 + $0x3c0] sm:$0xff]
    %v846 = vld [vmem:[#allocation8 + $0x3c8] sm:$0xff]
    %v847 = vld [vmem:[#allocation8 + $0x3d0] sm:$0xff]
    %v848 = vld [vmem:[#allocation8 + $0x3d8] sm:$0xff]
    %v849 = vld [vmem:[#allocation8 + $0x3e0] sm:$0xff]
    %v850 = vld [vmem:[#allocation8 + $0x3e8] sm:$0xff]
    %v851 = vld [vmem:[#allocation8 + $0x3f0] sm:$0xff]
    %v852 = vld [vmem:[#allocation8 + $0x3f8] sm:$0xff]
    %v853 = vld [vmem:[#allocation10] sm:$0x3]
    %v855 = vlaneseq
    %v856 = vshrl.u32 %v855, 7
    %v857 = vsub.s32 0, %v856
    %v858 = vrot.slane %v853, %v857
    %v859 = vlaneseq
    %v860 = vshrl.u32 %v859, 7
    %v861 = vsub.s32 1, %v860
    %v862 = vrot.slane %v853, %v861
    %v993 = vunpack.c.l.b16 %v725
    %v994 = vunpack.c.h.b16 %v725
    %v995 = vunpack.c.l.b16 %v726
    %v996 = vunpack.c.h.b16 %v726
    %v997 = vunpack.c.l.b16 %v727
    %v998 = vunpack.c.h.b16 %v727
    %v999 = vunpack.c.l.b16 %v728
    %v1000 = vunpack.c.h.b16 %v728
    %v1001 = vunpack.c.l.b16 %v729
    %v1002 = vunpack.c.h.b16 %v729
    %v1003 = vunpack.c.l.b16 %v730
    %v1004 = vunpack.c.h.b16 %v730
    %v1005 = vunpack.c.l.b16 %v731
    %v1006 = vunpack.c.h.b16 %v731
    %v1007 = vunpack.c.l.b16 %v732
    %v1008 = vunpack.c.h.b16 %v732
    %v1009 = vunpack.c.l.b16 %v733
    %v1010 = vunpack.c.h.b16 %v733
    %v1011 = vunpack.c.l.b16 %v734
    %v1012 = vunpack.c.h.b16 %v734
    %v1013 = vunpack.c.l.b16 %v735
    %v1014 = vunpack.c.h.b16 %v735
    %v1015 = vunpack.c.l.b16 %v736
    %v1016 = vunpack.c.h.b16 %v736
    %v1017 = vunpack.c.l.b16 %v737
    %v1018 = vunpack.c.h.b16 %v737
    %v1019 = vunpack.c.l.b16 %v738
    %v1020 = vunpack.c.h.b16 %v738
    %v1021 = vunpack.c.l.b16 %v739
    %v1022 = vunpack.c.h.b16 %v739
    %v1023 = vunpack.c.l.b16 %v740
    %v1024 = vunpack.c.h.b16 %v740
    %v1025 = vunpack.c.l.b16 %v741
    %v1026 = vunpack.c.h.b16 %v741
    %v1027 = vunpack.c.l.b16 %v742
    %v1028 = vunpack.c.h.b16 %v742
    %v1029 = vunpack.c.l.b16 %v743
    %v1030 = vunpack.c.h.b16 %v743
    %v1031 = vunpack.c.l.b16 %v744
    %v1032 = vunpack.c.h.b16 %v744
    %v1033 = vunpack.c.l.b16 %v745
    %v1034 = vunpack.c.h.b16 %v745
    %v1035 = vunpack.c.l.b16 %v746
    %v1036 = vunpack.c.h.b16 %v746
    %v1037 = vunpack.c.l.b16 %v747
    %v1038 = vunpack.c.h.b16 %v747
    %v1039 = vunpack.c.l.b16 %v748
    %v1040 = vunpack.c.h.b16 %v748
    %v1041 = vunpack.c.l.b16 %v749
    %v1042 = vunpack.c.h.b16 %v749
    %v1043 = vunpack.c.l.b16 %v750
    %v1044 = vunpack.c.h.b16 %v750
    %v1045 = vunpack.c.l.b16 %v751
    %v1046 = vunpack.c.h.b16 %v751
    %v1047 = vunpack.c.l.b16 %v752
    %v1048 = vunpack.c.h.b16 %v752
    %v1049 = vunpack.c.l.b16 %v753
    %v1050 = vunpack.c.h.b16 %v753
    %v1051 = vunpack.c.l.b16 %v754
    %v1052 = vunpack.c.h.b16 %v754
    %v1053 = vunpack.c.l.b16 %v755
    %v1054 = vunpack.c.h.b16 %v755
    %v1055 = vunpack.c.l.b16 %v756
    %v1056 = vunpack.c.h.b16 %v756
    %v1057 = vunpack.c.l.b16 %v757
    %v1058 = vunpack.c.h.b16 %v757
    %v1059 = vunpack.c.l.b16 %v758
    %v1060 = vunpack.c.h.b16 %v758
    %v1061 = vunpack.c.l.b16 %v759
    %v1062 = vunpack.c.h.b16 %v759
    %v1063 = vunpack.c.l.b16 %v760
    %v1064 = vunpack.c.h.b16 %v760
    %v1065 = vunpack.c.l.b16 %v761
    %v1066 = vunpack.c.h.b16 %v761
    %v1067 = vunpack.c.l.b16 %v762
    %v1068 = vunpack.c.h.b16 %v762
    %v1069 = vunpack.c.l.b16 %v763
    %v1070 = vunpack.c.h.b16 %v763
    %v1071 = vunpack.c.l.b16 %v764
    %v1072 = vunpack.c.h.b16 %v764
    %v1073 = vunpack.c.l.b16 %v765
    %v1074 = vunpack.c.h.b16 %v765
    %v1075 = vunpack.c.l.b16 %v766
    %v1076 = vunpack.c.h.b16 %v766
    %v1077 = vunpack.c.l.b16 %v767
    %v1078 = vunpack.c.h.b16 %v767
    %v1079 = vunpack.c.l.b16 %v768
    %v1080 = vunpack.c.h.b16 %v768
    %v1081 = vunpack.c.l.b16 %v769
    %v1082 = vunpack.c.h.b16 %v769
    %v1083 = vunpack.c.l.b16 %v770
    %v1084 = vunpack.c.h.b16 %v770
    %v1085 = vunpack.c.l.b16 %v771
    %v1086 = vunpack.c.h.b16 %v771
    %v1087 = vunpack.c.l.b16 %v772
    %v1088 = vunpack.c.h.b16 %v772
    %v1089 = vunpack.c.l.b16 %v773
    %v1090 = vunpack.c.h.b16 %v773
    %v1091 = vunpack.c.l.b16 %v774
    %v1092 = vunpack.c.h.b16 %v774
    %v1093 = vunpack.c.l.b16 %v775
    %v1094 = vunpack.c.h.b16 %v775
    %v1095 = vunpack.c.l.b16 %v776
    %v1096 = vunpack.c.h.b16 %v776
    %v1097 = vunpack.c.l.b16 %v777
    %v1098 = vunpack.c.h.b16 %v777
    %v1099 = vunpack.c.l.b16 %v778
    %v1100 = vunpack.c.h.b16 %v778
    %v1101 = vunpack.c.l.b16 %v779
    %v1102 = vunpack.c.h.b16 %v779
    %v1103 = vunpack.c.l.b16 %v780
    %v1104 = vunpack.c.h.b16 %v780
    %v1105 = vunpack.c.l.b16 %v781
    %v1106 = vunpack.c.h.b16 %v781
    %v1107 = vunpack.c.l.b16 %v782
    %v1108 = vunpack.c.h.b16 %v782
    %v1109 = vunpack.c.l.b16 %v783
    %v1110 = vunpack.c.h.b16 %v783
    %v1111 = vunpack.c.l.b16 %v784
    %v1112 = vunpack.c.h.b16 %v784
    %v1113 = vunpack.c.l.b16 %v785
    %v1114 = vunpack.c.h.b16 %v785
    %v1115 = vunpack.c.l.b16 %v786
    %v1116 = vunpack.c.h.b16 %v786
    %v1117 = vunpack.c.l.b16 %v787
    %v1118 = vunpack.c.h.b16 %v787
    %v1119 = vunpack.c.l.b16 %v788
    %v1120 = vunpack.c.h.b16 %v788
    %v1121 = vunpack.c.l.b16 %v789
    %v1122 = vunpack.c.h.b16 %v789
    %v1123 = vunpack.c.l.b16 %v790
    %v1124 = vunpack.c.h.b16 %v790
    %v1125 = vunpack.c.l.b16 %v791
    %v1126 = vunpack.c.h.b16 %v791
    %v1127 = vunpack.c.l.b16 %v792
    %v1128 = vunpack.c.h.b16 %v792
    %v1129 = vunpack.c.l.b16 %v793
    %v1130 = vunpack.c.h.b16 %v793
    %v1131 = vunpack.c.l.b16 %v794
    %v1132 = vunpack.c.h.b16 %v794
    %v1133 = vunpack.c.l.b16 %v795
    %v1134 = vunpack.c.h.b16 %v795
    %v1135 = vunpack.c.l.b16 %v796
    %v1136 = vunpack.c.h.b16 %v796
    %v1137 = vunpack.c.l.b16 %v797
    %v1138 = vunpack.c.h.b16 %v797
    %v1139 = vunpack.c.l.b16 %v798
    %v1140 = vunpack.c.h.b16 %v798
    %v1141 = vunpack.c.l.b16 %v799
    %v1142 = vunpack.c.h.b16 %v799
    %v1143 = vunpack.c.l.b16 %v800
    %v1144 = vunpack.c.h.b16 %v800
    %v1145 = vunpack.c.l.b16 %v801
    %v1146 = vunpack.c.h.b16 %v801
    %v1147 = vunpack.c.l.b16 %v802
    %v1148 = vunpack.c.h.b16 %v802
    %v1149 = vunpack.c.l.b16 %v803
    %v1150 = vunpack.c.h.b16 %v803
    %v1151 = vunpack.c.l.b16 %v804
    %v1152 = vunpack.c.h.b16 %v804
    %v1153 = vunpack.c.l.b16 %v805
    %v1154 = vunpack.c.h.b16 %v805
    %v1155 = vunpack.c.l.b16 %v806
    %v1156 = vunpack.c.h.b16 %v806
    %v1157 = vunpack.c.l.b16 %v807
    %v1158 = vunpack.c.h.b16 %v807
    %v1159 = vunpack.c.l.b16 %v808
    %v1160 = vunpack.c.h.b16 %v808
    %v1161 = vunpack.c.l.b16 %v809
    %v1162 = vunpack.c.h.b16 %v809
    %v1163 = vunpack.c.l.b16 %v810
    %v1164 = vunpack.c.h.b16 %v810
    %v1165 = vunpack.c.l.b16 %v811
    %v1166 = vunpack.c.h.b16 %v811
    %v1167 = vunpack.c.l.b16 %v812
    %v1168 = vunpack.c.h.b16 %v812
    %v1169 = vunpack.c.l.b16 %v813
    %v1170 = vunpack.c.h.b16 %v813
    %v1171 = vunpack.c.l.b16 %v814
    %v1172 = vunpack.c.h.b16 %v814
    %v1173 = vunpack.c.l.b16 %v815
    %v1174 = vunpack.c.h.b16 %v815
    %v1175 = vunpack.c.l.b16 %v816
    %v1176 = vunpack.c.h.b16 %v816
    %v1177 = vunpack.c.l.b16 %v817
    %v1178 = vunpack.c.h.b16 %v817
    %v1179 = vunpack.c.l.b16 %v818
    %v1180 = vunpack.c.h.b16 %v818
    %v1181 = vunpack.c.l.b16 %v819
    %v1182 = vunpack.c.h.b16 %v819
    %v1183 = vunpack.c.l.b16 %v820
    %v1184 = vunpack.c.h.b16 %v820
    %v1185 = vunpack.c.l.b16 %v821
    %v1186 = vunpack.c.h.b16 %v821
    %v1187 = vunpack.c.l.b16 %v822
    %v1188 = vunpack.c.h.b16 %v822
    %v1189 = vunpack.c.l.b16 %v823
    %v1190 = vunpack.c.h.b16 %v823
    %v1191 = vunpack.c.l.b16 %v824
    %v1192 = vunpack.c.h.b16 %v824
    %v1193 = vunpack.c.l.b16 %v825
    %v1194 = vunpack.c.h.b16 %v825
    %v1195 = vunpack.c.l.b16 %v826
    %v1196 = vunpack.c.h.b16 %v826
    %v1197 = vunpack.c.l.b16 %v827
    %v1198 = vunpack.c.h.b16 %v827
    %v1199 = vunpack.c.l.b16 %v828
    %v1200 = vunpack.c.h.b16 %v828
    %v1201 = vunpack.c.l.b16 %v829
    %v1202 = vunpack.c.h.b16 %v829
    %v1203 = vunpack.c.l.b16 %v830
    %v1204 = vunpack.c.h.b16 %v830
    %v1205 = vunpack.c.l.b16 %v831
    %v1206 = vunpack.c.h.b16 %v831
    %v1207 = vunpack.c.l.b16 %v832
    %v1208 = vunpack.c.h.b16 %v832
    %v1209 = vunpack.c.l.b16 %v833
    %v1210 = vunpack.c.h.b16 %v833
    %v1211 = vunpack.c.l.b16 %v834
    %v1212 = vunpack.c.h.b16 %v834
    %v1213 = vunpack.c.l.b16 %v835
    %v1214 = vunpack.c.h.b16 %v835
    %v1215 = vunpack.c.l.b16 %v836
    %v1216 = vunpack.c.h.b16 %v836
    %v1217 = vunpack.c.l.b16 %v837
    %v1218 = vunpack.c.h.b16 %v837
    %v1219 = vunpack.c.l.b16 %v838
    %v1220 = vunpack.c.h.b16 %v838
    %v1221 = vunpack.c.l.b16 %v839
    %v1222 = vunpack.c.h.b16 %v839
    %v1223 = vunpack.c.l.b16 %v840
    %v1224 = vunpack.c.h.b16 %v840
    %v1225 = vunpack.c.l.b16 %v841
    %v1226 = vunpack.c.h.b16 %v841
    %v1227 = vunpack.c.l.b16 %v842
    %v1228 = vunpack.c.h.b16 %v842
    %v1229 = vunpack.c.l.b16 %v843
    %v1230 = vunpack.c.h.b16 %v843
    %v1231 = vunpack.c.l.b16 %v844
    %v1232 = vunpack.c.h.b16 %v844
    %v1233 = vunpack.c.l.b16 %v845
    %v1234 = vunpack.c.h.b16 %v845
    %v1235 = vunpack.c.l.b16 %v846
    %v1236 = vunpack.c.h.b16 %v846
    %v1237 = vunpack.c.l.b16 %v847
    %v1238 = vunpack.c.h.b16 %v847
    %v1239 = vunpack.c.l.b16 %v848
    %v1240 = vunpack.c.h.b16 %v848
    %v1241 = vunpack.c.l.b16 %v849
    %v1242 = vunpack.c.h.b16 %v849
    %v1243 = vunpack.c.l.b16 %v850
    %v1244 = vunpack.c.h.b16 %v850
    %v1245 = vunpack.c.l.b16 %v851
    %v1246 = vunpack.c.h.b16 %v851
    %v1247 = vunpack.c.l.b16 %v852
    %v1248 = vunpack.c.h.b16 %v852
    %v1249 = vpack.c.b16 %v995, %v993
    %v1250 = vpack.c.b16 %v996, %v994
    %v1251 = vpack.c.b16 %v999, %v997
    %v1252 = vpack.c.b16 %v1000, %v998
    %v1253 = vpack.c.b16 %v1003, %v1001
    %v1254 = vpack.c.b16 %v1004, %v1002
    %v1255 = vpack.c.b16 %v1007, %v1005
    %v1256 = vpack.c.b16 %v1008, %v1006
    %v1257 = vpack.c.b16 %v1011, %v1009
    %v1258 = vpack.c.b16 %v1012, %v1010
    %v1259 = vpack.c.b16 %v1015, %v1013
    %v1260 = vpack.c.b16 %v1016, %v1014
    %v1261 = vpack.c.b16 %v1019, %v1017
    %v1262 = vpack.c.b16 %v1020, %v1018
    %v1263 = vpack.c.b16 %v1023, %v1021
    %v1264 = vpack.c.b16 %v1024, %v1022
    %v1265 = vpack.c.b16 %v1027, %v1025
    %v1266 = vpack.c.b16 %v1028, %v1026
    %v1267 = vpack.c.b16 %v1031, %v1029
    %v1268 = vpack.c.b16 %v1032, %v1030
    %v1269 = vpack.c.b16 %v1035, %v1033
    %v1270 = vpack.c.b16 %v1036, %v1034
    %v1271 = vpack.c.b16 %v1039, %v1037
    %v1272 = vpack.c.b16 %v1040, %v1038
    %v1273 = vpack.c.b16 %v1043, %v1041
    %v1274 = vpack.c.b16 %v1044, %v1042
    %v1275 = vpack.c.b16 %v1047, %v1045
    %v1276 = vpack.c.b16 %v1048, %v1046
    %v1277 = vpack.c.b16 %v1051, %v1049
    %v1278 = vpack.c.b16 %v1052, %v1050
    %v1279 = vpack.c.b16 %v1055, %v1053
    %v1280 = vpack.c.b16 %v1056, %v1054
    %v1281 = vpack.c.b16 %v1059, %v1057
    %v1282 = vpack.c.b16 %v1060, %v1058
    %v1283 = vpack.c.b16 %v1063, %v1061
    %v1284 = vpack.c.b16 %v1064, %v1062
    %v1285 = vpack.c.b16 %v1067, %v1065
    %v1286 = vpack.c.b16 %v1068, %v1066
    %v1287 = vpack.c.b16 %v1071, %v1069
    %v1288 = vpack.c.b16 %v1072, %v1070
    %v1289 = vpack.c.b16 %v1075, %v1073
    %v1290 = vpack.c.b16 %v1076, %v1074
    %v1291 = vpack.c.b16 %v1079, %v1077
    %v1292 = vpack.c.b16 %v1080, %v1078
    %v1293 = vpack.c.b16 %v1083, %v1081
    %v1294 = vpack.c.b16 %v1084, %v1082
    %v1295 = vpack.c.b16 %v1087, %v1085
    %v1296 = vpack.c.b16 %v1088, %v1086
    %v1297 = vpack.c.b16 %v1091, %v1089
    %v1298 = vpack.c.b16 %v1092, %v1090
    %v1299 = vpack.c.b16 %v1095, %v1093
    %v1300 = vpack.c.b16 %v1096, %v1094
    %v1301 = vpack.c.b16 %v1099, %v1097
    %v1302 = vpack.c.b16 %v1100, %v1098
    %v1303 = vpack.c.b16 %v1103, %v1101
    %v1304 = vpack.c.b16 %v1104, %v1102
    %v1305 = vpack.c.b16 %v1107, %v1105
    %v1306 = vpack.c.b16 %v1108, %v1106
    %v1307 = vpack.c.b16 %v1111, %v1109
    %v1308 = vpack.c.b16 %v1112, %v1110
    %v1309 = vpack.c.b16 %v1115, %v1113
    %v1310 = vpack.c.b16 %v1116, %v1114
    %v1311 = vpack.c.b16 %v1119, %v1117
    %v1312 = vpack.c.b16 %v1120, %v1118
    %v1313 = vpack.c.b16 %v1123, %v1121
    %v1314 = vpack.c.b16 %v1124, %v1122
    %v1315 = vpack.c.b16 %v1127, %v1125
    %v1316 = vpack.c.b16 %v1128, %v1126
    %v1317 = vpack.c.b16 %v1131, %v1129
    %v1318 = vpack.c.b16 %v1132, %v1130
    %v1319 = vpack.c.b16 %v1135, %v1133
    %v1320 = vpack.c.b16 %v1136, %v1134
    %v1321 = vpack.c.b16 %v1139, %v1137
    %v1322 = vpack.c.b16 %v1140, %v1138
    %v1323 = vpack.c.b16 %v1143, %v1141
    %v1324 = vpack.c.b16 %v1144, %v1142
    %v1325 = vpack.c.b16 %v1147, %v1145
    %v1326 = vpack.c.b16 %v1148, %v1146
    %v1327 = vpack.c.b16 %v1151, %v1149
    %v1328 = vpack.c.b16 %v1152, %v1150
    %v1329 = vpack.c.b16 %v1155, %v1153
    %v1330 = vpack.c.b16 %v1156, %v1154
    %v1331 = vpack.c.b16 %v1159, %v1157
    %v1332 = vpack.c.b16 %v1160, %v1158
    %v1333 = vpack.c.b16 %v1163, %v1161
    %v1334 = vpack.c.b16 %v1164, %v1162
    %v1335 = vpack.c.b16 %v1167, %v1165
    %v1336 = vpack.c.b16 %v1168, %v1166
    %v1337 = vpack.c.b16 %v1171, %v1169
    %v1338 = vpack.c.b16 %v1172, %v1170
    %v1339 = vpack.c.b16 %v1175, %v1173
    %v1340 = vpack.c.b16 %v1176, %v1174
    %v1341 = vpack.c.b16 %v1179, %v1177
    %v1342 = vpack.c.b16 %v1180, %v1178
    %v1343 = vpack.c.b16 %v1183, %v1181
    %v1344 = vpack.c.b16 %v1184, %v1182
    %v1345 = vpack.c.b16 %v1187, %v1185
    %v1346 = vpack.c.b16 %v1188, %v1186
    %v1347 = vpack.c.b16 %v1191, %v1189
    %v1348 = vpack.c.b16 %v1192, %v1190
    %v1349 = vpack.c.b16 %v1195, %v1193
    %v1350 = vpack.c.b16 %v1196, %v1194
    %v1351 = vpack.c.b16 %v1199, %v1197
    %v1352 = vpack.c.b16 %v1200, %v1198
    %v1353 = vpack.c.b16 %v1203, %v1201
    %v1354 = vpack.c.b16 %v1204, %v1202
    %v1355 = vpack.c.b16 %v1207, %v1205
    %v1356 = vpack.c.b16 %v1208, %v1206
    %v1357 = vpack.c.b16 %v1211, %v1209
    %v1358 = vpack.c.b16 %v1212, %v1210
    %v1359 = vpack.c.b16 %v1215, %v1213
    %v1360 = vpack.c.b16 %v1216, %v1214
    %v1361 = vpack.c.b16 %v1219, %v1217
    %v1362 = vpack.c.b16 %v1220, %v1218
    %v1363 = vpack.c.b16 %v1223, %v1221
    %v1364 = vpack.c.b16 %v1224, %v1222
    %v1365 = vpack.c.b16 %v1227, %v1225
    %v1366 = vpack.c.b16 %v1228, %v1226
    %v1367 = vpack.c.b16 %v1231, %v1229
    %v1368 = vpack.c.b16 %v1232, %v1230
    %v1369 = vpack.c.b16 %v1235, %v1233
    %v1370 = vpack.c.b16 %v1236, %v1234
    %v1371 = vpack.c.b16 %v1239, %v1237
    %v1372 = vpack.c.b16 %v1240, %v1238
    %v1373 = vpack.c.b16 %v1243, %v1241
    %v1374 = vpack.c.b16 %v1244, %v1242
    %v1375 = vpack.c.b16 %v1247, %v1245
    %v1376 = vpack.c.b16 %v1248, %v1246
    %1505 = vmatprep.subr.bf16.mxu0 %v1250
    %1506 = vmatpush1.bf16.msra.mxu0 %v1249
    %1507 = vmatprep.subr.bf16.mxu0 %v1252
    %1508 = vmatpush1.bf16.msra.mxu0 %v1251
    %1509 = vmatprep.subr.bf16.mxu0 %v1254
    %1510 = vmatpush1.bf16.msra.mxu0 %v1253
    %1511 = vmatprep.subr.bf16.mxu0 %v1256
    %1512 = vmatpush1.bf16.msra.mxu0 %v1255
    %1513 = vmatprep.subr.bf16.mxu0 %v1258
    %1514 = vmatpush1.bf16.msra.mxu0 %v1257
    %1515 = vmatprep.subr.bf16.mxu0 %v1260
    %1516 = vmatpush1.bf16.msra.mxu0 %v1259
    %1517 = vmatprep.subr.bf16.mxu0 %v1262
    %1518 = vmatpush1.bf16.msra.mxu0 %v1261
    %1519 = vmatprep.subr.bf16.mxu0 %v1264
    %1520 = vmatpush1.bf16.msra.mxu0 %v1263
    %1521 = vmatprep.subr.bf16.mxu0 %v1266
    %1522 = vmatpush1.bf16.msra.mxu0 %v1265
    %1523 = vmatprep.subr.bf16.mxu0 %v1268
    %1524 = vmatpush1.bf16.msra.mxu0 %v1267
    %1525 = vmatprep.subr.bf16.mxu0 %v1270
    %1526 = vmatpush1.bf16.msra.mxu0 %v1269
    %1527 = vmatprep.subr.bf16.mxu0 %v1272
    %1528 = vmatpush1.bf16.msra.mxu0 %v1271
    %1529 = vmatprep.subr.bf16.mxu0 %v1274
    %1530 = vmatpush1.bf16.msra.mxu0 %v1273
    %1531 = vmatprep.subr.bf16.mxu0 %v1276
    %1532 = vmatpush1.bf16.msra.mxu0 %v1275
    %1533 = vmatprep.subr.bf16.mxu0 %v1278
    %1534 = vmatpush1.bf16.msra.mxu0 %v1277
    %1535 = vmatprep.subr.bf16.mxu0 %v1280
    %1536 = vmatpush1.bf16.msra.mxu0 %v1279
    %1537 = vmatprep.mubr.bf16.mxu0 %v718
    %1538 = vmatmul.mubr.bf16.gmra.mrb[0].mxu0 %v717
    %v1539 = vpop.f32.mrb[0].mxu0
    %v1540 = vadd.f32 %v858, %v1539
    %v1541 = vpop.f32.mrb[0].mxu0
    %v1542 = vadd.f32 %v862, %v1541
    %v1543 = vpop.f32.mrb[0].mxu0
    %v1544 = vpop.f32.mrb[0].mxu0
    %1545 = vdwg.mxu0
    %1546 = vmatprep.subr.bf16.mxu0 %v1282
    %1547 = vmatpush1.bf16.msra.mxu0 %v1281
    %1548 = vmatprep.subr.bf16.mxu0 %v1284
    %1549 = vmatpush1.bf16.msra.mxu0 %v1283
    %1550 = vmatprep.subr.bf16.mxu0 %v1286
    %1551 = vmatpush1.bf16.msra.mxu0 %v1285
    %1552 = vmatprep.subr.bf16.mxu0 %v1288
    %1553 = vmatpush1.bf16.msra.mxu0 %v1287
    %1554 = vmatprep.subr.bf16.mxu0 %v1290
    %1555 = vmatpush1.bf16.msra.mxu0 %v1289
    %1556 = vmatprep.subr.bf16.mxu0 %v1292
    %1557 = vmatpush1.bf16.msra.mxu0 %v1291
    %1558 = vmatprep.subr.bf16.mxu0 %v1294
    %1559 = vmatpush1.bf16.msra.mxu0 %v1293
    %1560 = vmatprep.subr.bf16.mxu0 %v1296
    %1561 = vmatpush1.bf16.msra.mxu0 %v1295
    %1562 = vmatprep.subr.bf16.mxu0 %v1298
    %1563 = vmatpush1.bf16.msra.mxu0 %v1297
    %1564 = vmatprep.subr.bf16.mxu0 %v1300
    %1565 = vmatpush1.bf16.msra.mxu0 %v1299
    %1566 = vmatprep.subr.bf16.mxu0 %v1302
    %1567 = vmatpush1.bf16.msra.mxu0 %v1301
    %1568 = vmatprep.subr.bf16.mxu0 %v1304
    %1569 = vmatpush1.bf16.msra.mxu0 %v1303
    %1570 = vmatprep.subr.bf16.mxu0 %v1306
    %1571 = vmatpush1.bf16.msra.mxu0 %v1305
    %1572 = vmatprep.subr.bf16.mxu0 %v1308
    %1573 = vmatpush1.bf16.msra.mxu0 %v1307
    %1574 = vmatprep.subr.bf16.mxu0 %v1310
    %1575 = vmatpush1.bf16.msra.mxu0 %v1309
    %1576 = vmatprep.subr.bf16.mxu0 %v1312
    %1577 = vmatpush1.bf16.msra.mxu0 %v1311
    %1578 = vmatprep.mubr.bf16.mxu0 %v720
    %1579 = vmatmul.mubr.bf16.gmra.mrb[0].mxu0 %v719
    %v1580 = vpop.f32.mrb[0].mxu0
    %v1581 = vadd.f32 %v1540, %v1580
    %v1582 = vpop.f32.mrb[0].mxu0
    %v1583 = vadd.f32 %v1542, %v1582
    %v1584 = vpop.f32.mrb[0].mxu0
    %v1585 = vpop.f32.mrb[0].mxu0
    %1586 = vdwg.mxu0
    %1587 = vmatprep.subr.bf16.mxu0 %v1314
    %1588 = vmatpush1.bf16.msra.mxu0 %v1313
    %1589 = vmatprep.subr.bf16.mxu0 %v1316
    %1590 = vmatpush1.bf16.msra.mxu0 %v1315
    %1591 = vmatprep.subr.bf16.mxu0 %v1318
    %1592 = vmatpush1.bf16.msra.mxu0 %v1317
    %1593 = vmatprep.subr.bf16.mxu0 %v1320
    %1594 = vmatpush1.bf16.msra.mxu0 %v1319
    %1595 = vmatprep.subr.bf16.mxu0 %v1322
    %1596 = vmatpush1.bf16.msra.mxu0 %v1321
    %1597 = vmatprep.subr.bf16.mxu0 %v1324
    %1598 = vmatpush1.bf16.msra.mxu0 %v1323
    %1599 = vmatprep.subr.bf16.mxu0 %v1326
    %1600 = vmatpush1.bf16.msra.mxu0 %v1325
    %1601 = vmatprep.subr.bf16.mxu0 %v1328
    %1602 = vmatpush1.bf16.msra.mxu0 %v1327
    %1603 = vmatprep.subr.bf16.mxu0 %v1330
    %1604 = vmatpush1.bf16.msra.mxu0 %v1329
    %1605 = vmatprep.subr.bf16.mxu0 %v1332
    %1606 = vmatpush1.bf16.msra.mxu0 %v1331
    %1607 = vmatprep.subr.bf16.mxu0 %v1334
    %1608 = vmatpush1.bf16.msra.mxu0 %v1333
    %1609 = vmatprep.subr.bf16.mxu0 %v1336
    %1610 = vmatpush1.bf16.msra.mxu0 %v1335
    %1611 = vmatprep.subr.bf16.mxu0 %v1338
    %1612 = vmatpush1.bf16.msra.mxu0 %v1337
    %1613 = vmatprep.subr.bf16.mxu0 %v1340
    %1614 = vmatpush1.bf16.msra.mxu0 %v1339
    %1615 = vmatprep.subr.bf16.mxu0 %v1342
    %1616 = vmatpush1.bf16.msra.mxu0 %v1341
    %1617 = vmatprep.subr.bf16.mxu0 %v1344
    %1618 = vmatpush1.bf16.msra.mxu0 %v1343
    %1619 = vmatprep.mubr.bf16.mxu0 %v722
    %1620 = vmatmul.mubr.bf16.gmra.mrb[0].mxu0 %v721
    %v1621 = vpop.f32.mrb[0].mxu0
    %v1622 = vadd.f32 %v1581, %v1621
    %v1623 = vpop.f32.mrb[0].mxu0
    %v1624 = vadd.f32 %v1583, %v1623
    %v1625 = vpop.f32.mrb[0].mxu0
    %v1626 = vpop.f32.mrb[0].mxu0
    %1627 = vdwg.mxu0
    %1628 = vmatprep.subr.bf16.mxu0 %v1346
    %1629 = vmatpush1.bf16.msra.mxu0 %v1345
    %1630 = vmatprep.subr.bf16.mxu0 %v1348
    %1631 = vmatpush1.bf16.msra.mxu0 %v1347
    %1632 = vmatprep.subr.bf16.mxu0 %v1350
    %1633 = vmatpush1.bf16.msra.mxu0 %v1349
    %1634 = vmatprep.subr.bf16.mxu0 %v1352
    %1635 = vmatpush1.bf16.msra.mxu0 %v1351
    %1636 = vmatprep.subr.bf16.mxu0 %v1354
    %1637 = vmatpush1.bf16.msra.mxu0 %v1353
    %1638 = vmatprep.subr.bf16.mxu0 %v1356
    %1639 = vmatpush1.bf16.msra.mxu0 %v1355
    %1640 = vmatprep.subr.bf16.mxu0 %v1358
    %1641 = vmatpush1.bf16.msra.mxu0 %v1357
    %1642 = vmatprep.subr.bf16.mxu0 %v1360
    %1643 = vmatpush1.bf16.msra.mxu0 %v1359
    %1644 = vmatprep.subr.bf16.mxu0 %v1362
    %1645 = vmatpush1.bf16.msra.mxu0 %v1361
    %1646 = vmatprep.subr.bf16.mxu0 %v1364
    %1647 = vmatpush1.bf16.msra.mxu0 %v1363
    %1648 = vmatprep.subr.bf16.mxu0 %v1366
    %1649 = vmatpush1.bf16.msra.mxu0 %v1365
    %1650 = vmatprep.subr.bf16.mxu0 %v1368
    %1651 = vmatpush1.bf16.msra.mxu0 %v1367
    %1652 = vmatprep.subr.bf16.mxu0 %v1370
    %1653 = vmatpush1.bf16.msra.mxu0 %v1369
    %1654 = vmatprep.subr.bf16.mxu0 %v1372
    %1655 = vmatpush1.bf16.msra.mxu0 %v1371
    %1656 = vmatprep.subr.bf16.mxu0 %v1374
    %1657 = vmatpush1.bf16.msra.mxu0 %v1373
    %1658 = vmatprep.subr.bf16.mxu0 %v1376
    %1659 = vmatpush1.bf16.msra.mxu0 %v1375
    %1660 = vmatprep.mubr.bf16.mxu0 %v724
    %1661 = vmatmul.mubr.bf16.gmra.mrb[0].mxu0 %v723
    %v1662 = vpop.f32.mrb[0].mxu0
    %v1663 = vadd.f32 %v1622, %v1662
    %v1664 = vpop.f32.mrb[0].mxu0
    %v1665 = vadd.f32 %v1624, %v1664
    %v1666 = vpop.f32.mrb[0].mxu0
    %v1667 = vpop.f32.mrb[0].mxu0
    %1668 = vdwg.mxu0
    %v1669 = vmax.f32 %v1663, 0.0
    %v1670 = vmax.f32 %v1665, 0.0
    %v1671 = vpack.c.bf16 %v1669, %v1669
    %v1672 = vpack.c.bf16 %v1670, %v1670
    %v1673 = vld [vmem:[#allocation11] sm:$0xf]
    %v1674 = vld [vmem:[#allocation11 + $0x4] sm:$0xf]
    %v1675 = vld [vmem:[#allocation11 + $0x8] sm:$0xf]
    %v1676 = vld [vmem:[#allocation11 + $0xc] sm:$0xf]
    %v1677 = vld [vmem:[#allocation11 + $0x10] sm:$0xf]
    %v1678 = vld [vmem:[#allocation11 + $0x14] sm:$0xf]
    %v1679 = vld [vmem:[#allocation11 + $0x18] sm:$0xf]
    %v1680 = vld [vmem:[#allocation11 + $0x1c] sm:$0xf]
    %v1681 = vld [vmem:[#allocation11 + $0x20] sm:$0xf]
    %v1682 = vld [vmem:[#allocation11 + $0x24] sm:$0xf]
    %v1683 = vld [vmem:[#allocation11 + $0x28] sm:$0xf]
    %v1684 = vld [vmem:[#allocation11 + $0x2c] sm:$0xf]
    %v1685 = vld [vmem:[#allocation11 + $0x30] sm:$0xf]
    %v1686 = vld [vmem:[#allocation11 + $0x34] sm:$0xf]
    %v1687 = vld [vmem:[#allocation11 + $0x38] sm:$0xf]
    %v1688 = vld [vmem:[#allocation11 + $0x3c] sm:$0xf]
    %v1689 = vld [vmem:[#allocation11 + $0x40] sm:$0xf]
    %v1690 = vld [vmem:[#allocation11 + $0x44] sm:$0xf]
    %v1691 = vld [vmem:[#allocation11 + $0x48] sm:$0xf]
    %v1692 = vld [vmem:[#allocation11 + $0x4c] sm:$0xf]
    %v1693 = vld [vmem:[#allocation11 + $0x50] sm:$0xf]
    %v1694 = vld [vmem:[#allocation11 + $0x54] sm:$0xf]
    %v1695 = vld [vmem:[#allocation11 + $0x58] sm:$0xf]
    %v1696 = vld [vmem:[#allocation11 + $0x5c] sm:$0xf]
    %v1697 = vld [vmem:[#allocation11 + $0x60] sm:$0xf]
    %v1698 = vld [vmem:[#allocation11 + $0x64] sm:$0xf]
    %v1699 = vld [vmem:[#allocation11 + $0x68] sm:$0xf]
    %v1700 = vld [vmem:[#allocation11 + $0x6c] sm:$0xf]
    %v1701 = vld [vmem:[#allocation11 + $0x70] sm:$0xf]
    %v1702 = vld [vmem:[#allocation11 + $0x74] sm:$0xf]
    %v1703 = vld [vmem:[#allocation11 + $0x78] sm:$0xf]
    %v1704 = vld [vmem:[#allocation11 + $0x7c] sm:$0xf]
    %s1705 = scalar_lea.vmem [#allocation8], 1024
    %v1706 = vld [vmem:[%s1705] sm:$0xff]
    %v1707 = vld [vmem:[%s1705 + $0x8] sm:$0xff]
    %v1708 = vld [vmem:[%s1705 + $0x10] sm:$0xff]
    %v1709 = vld [vmem:[%s1705 + $0x18] sm:$0xff]
    %v1710 = vld [vmem:[%s1705 + $0x20] sm:$0xff]
    %v1711 = vld [vmem:[%s1705 + $0x28] sm:$0xff]
    %v1712 = vld [vmem:[%s1705 + $0x30] sm:$0xff]
    %v1713 = vld [vmem:[%s1705 + $0x38] sm:$0xff]
    %v1714 = vld [vmem:[%s1705 + $0x40] sm:$0xff]
    %v1715 = vld [vmem:[%s1705 + $0x48] sm:$0xff]
    %v1716 = vld [vmem:[%s1705 + $0x50] sm:$0xff]
    %v1717 = vld [vmem:[%s1705 + $0x58] sm:$0xff]
    %v1718 = vld [vmem:[%s1705 + $0x60] sm:$0xff]
    %v1719 = vld [vmem:[%s1705 + $0x68] sm:$0xff]
    %v1720 = vld [vmem:[%s1705 + $0x70] sm:$0xff]
    %v1721 = vld [vmem:[%s1705 + $0x78] sm:$0xff]
    %v1722 = vld [vmem:[%s1705 + $0x80] sm:$0xff]
    %v1723 = vld [vmem:[%s1705 + $0x88] sm:$0xff]
    %v1724 = vld [vmem:[%s1705 + $0x90] sm:$0xff]
    %v1725 = vld [vmem:[%s1705 + $0x98] sm:$0xff]
    %v1726 = vld [vmem:[%s1705 + $0xa0] sm:$0xff]
    %v1727 = vld [vmem:[%s1705 + $0xa8] sm:$0xff]
    %v1728 = vld [vmem:[%s1705 + $0xb0] sm:$0xff]
    %v1729 = vld [vmem:[%s1705 + $0xb8] sm:$0xff]
    %v1730 = vld [vmem:[%s1705 + $0xc0] sm:$0xff]
    %v1731 = vld [vmem:[%s1705 + $0xc8] sm:$0xff]
    %v1732 = vld [vmem:[%s1705 + $0xd0] sm:$0xff]
    %v1733 = vld [vmem:[%s1705 + $0xd8] sm:$0xff]
    %v1734 = vld [vmem:[%s1705 + $0xe0] sm:$0xff]
    %v1735 = vld [vmem:[%s1705 + $0xe8] sm:$0xff]
    %v1736 = vld [vmem:[%s1705 + $0xf0] sm:$0xff]
    %v1737 = vld [vmem:[%s1705 + $0xf8] sm:$0xff]
    %v1738 = vld [vmem:[%s1705 + $0x100] sm:$0xff]
    %v1739 = vld [vmem:[%s1705 + $0x108] sm:$0xff]
    %v1740 = vld [vmem:[%s1705 + $0x110] sm:$0xff]
    %v1741 = vld [vmem:[%s1705 + $0x118] sm:$0xff]
    %v1742 = vld [vmem:[%s1705 + $0x120] sm:$0xff]
    %v1743 = vld [vmem:[%s1705 + $0x128] sm:$0xff]
    %v1744 = vld [vmem:[%s1705 + $0x130] sm:$0xff]
    %v1745 = vld [vmem:[%s1705 + $0x138] sm:$0xff]
    %v1746 = vld [vmem:[%s1705 + $0x140] sm:$0xff]
    %v1747 = vld [vmem:[%s1705 + $0x148] sm:$0xff]
    %v1748 = vld [vmem:[%s1705 + $0x150] sm:$0xff]
    %v1749 = vld [vmem:[%s1705 + $0x158] sm:$0xff]
    %v1750 = vld [vmem:[%s1705 + $0x160] sm:$0xff]
    %v1751 = vld [vmem:[%s1705 + $0x168] sm:$0xff]
    %v1752 = vld [vmem:[%s1705 + $0x170] sm:$0xff]
    %v1753 = vld [vmem:[%s1705 + $0x178] sm:$0xff]
    %v1754 = vld [vmem:[%s1705 + $0x180] sm:$0xff]
    %v1755 = vld [vmem:[%s1705 + $0x188] sm:$0xff]
    %v1756 = vld [vmem:[%s1705 + $0x190] sm:$0xff]
    %v1757 = vld [vmem:[%s1705 + $0x198] sm:$0xff]
    %v1758 = vld [vmem:[%s1705 + $0x1a0] sm:$0xff]
    %v1759 = vld [vmem:[%s1705 + $0x1a8] sm:$0xff]
    %v1760 = vld [vmem:[%s1705 + $0x1b0] sm:$0xff]
    %v1761 = vld [vmem:[%s1705 + $0x1b8] sm:$0xff]
    %v1762 = vld [vmem:[%s1705 + $0x1c0] sm:$0xff]
    %v1763 = vld [vmem:[%s1705 + $0x1c8] sm:$0xff]
    %v1764 = vld [vmem:[%s1705 + $0x1d0] sm:$0xff]
    %v1765 = vld [vmem:[%s1705 + $0x1d8] sm:$0xff]
    %v1766 = vld [vmem:[%s1705 + $0x1e0] sm:$0xff]
    %v1767 = vld [vmem:[%s1705 + $0x1e8] sm:$0xff]
    %v1768 = vld [vmem:[%s1705 + $0x1f0] sm:$0xff]
    %v1769 = vld [vmem:[%s1705 + $0x1f8] sm:$0xff]
    %v1770 = vld [vmem:[%s1705 + $0x200] sm:$0xff]
    %v1771 = vld [vmem:[%s1705 + $0x208] sm:$0xff]
    %v1772 = vld [vmem:[%s1705 + $0x210] sm:$0xff]
    %v1773 = vld [vmem:[%s1705 + $0x218] sm:$0xff]
    %v1774 = vld [vmem:[%s1705 + $0x220] sm:$0xff]
    %v1775 = vld [vmem:[%s1705 + $0x228] sm:$0xff]
    %v1776 = vld [vmem:[%s1705 + $0x230] sm:$0xff]
    %v1777 = vld [vmem:[%s1705 + $0x238] sm:$0xff]
    %v1778 = vld [vmem:[%s1705 + $0x240] sm:$0xff]
    %v1779 = vld [vmem:[%s1705 + $0x248] sm:$0xff]
    %v1780 = vld [vmem:[%s1705 + $0x250] sm:$0xff]
    %v1781 = vld [vmem:[%s1705 + $0x258] sm:$0xff]
    %v1782 = vld [vmem:[%s1705 + $0x260] sm:$0xff]
    %v1783 = vld [vmem:[%s1705 + $0x268] sm:$0xff]
    %v1784 = vld [vmem:[%s1705 + $0x270] sm:$0xff]
    %v1785 = vld [vmem:[%s1705 + $0x278] sm:$0xff]
    %v1786 = vld [vmem:[%s1705 + $0x280] sm:$0xff]
    %v1787 = vld [vmem:[%s1705 + $0x288] sm:$0xff]
    %v1788 = vld [vmem:[%s1705 + $0x290] sm:$0xff]
    %v1789 = vld [vmem:[%s1705 + $0x298] sm:$0xff]
    %v1790 = vld [vmem:[%s1705 + $0x2a0] sm:$0xff]
    %v1791 = vld [vmem:[%s1705 + $0x2a8] sm:$0xff]
    %v1792 = vld [vmem:[%s1705 + $0x2b0] sm:$0xff]
    %v1793 = vld [vmem:[%s1705 + $0x2b8] sm:$0xff]
    %v1794 = vld [vmem:[%s1705 + $0x2c0] sm:$0xff]
    %v1795 = vld [vmem:[%s1705 + $0x2c8] sm:$0xff]
    %v1796 = vld [vmem:[%s1705 + $0x2d0] sm:$0xff]
    %v1797 = vld [vmem:[%s1705 + $0x2d8] sm:$0xff]
    %v1798 = vld [vmem:[%s1705 + $0x2e0] sm:$0xff]
    %v1799 = vld [vmem:[%s1705 + $0x2e8] sm:$0xff]
    %v1800 = vld [vmem:[%s1705 + $0x2f0] sm:$0xff]
    %v1801 = vld [vmem:[%s1705 + $0x2f8] sm:$0xff]
    %v1802 = vld [vmem:[%s1705 + $0x300] sm:$0xff]
    %v1803 = vld [vmem:[%s1705 + $0x308] sm:$0xff]
    %v1804 = vld [vmem:[%s1705 + $0x310] sm:$0xff]
    %v1805 = vld [vmem:[%s1705 + $0x318] sm:$0xff]
    %v1806 = vld [vmem:[%s1705 + $0x320] sm:$0xff]
    %v1807 = vld [vmem:[%s1705 + $0x328] sm:$0xff]
    %v1808 = vld [vmem:[%s1705 + $0x330] sm:$0xff]
    %v1809 = vld [vmem:[%s1705 + $0x338] sm:$0xff]
    %v1810 = vld [vmem:[%s1705 + $0x340] sm:$0xff]
    %v1811 = vld [vmem:[%s1705 + $0x348] sm:$0xff]
    %v1812 = vld [vmem:[%s1705 + $0x350] sm:$0xff]
    %v1813 = vld [vmem:[%s1705 + $0x358] sm:$0xff]
    %v1814 = vld [vmem:[%s1705 + $0x360] sm:$0xff]
    %v1815 = vld [vmem:[%s1705 + $0x368] sm:$0xff]
    %v1816 = vld [vmem:[%s1705 + $0x370] sm:$0xff]
    %v1817 = vld [vmem:[%s1705 + $0x378] sm:$0xff]
    %v1818 = vld [vmem:[%s1705 + $0x380] sm:$0xff]
    %v1819 = vld [vmem:[%s1705 + $0x388] sm:$0xff]
    %v1820 = vld [vmem:[%s1705 + $0x390] sm:$0xff]
    %v1821 = vld [vmem:[%s1705 + $0x398] sm:$0xff]
    %v1822 = vld [vmem:[%s1705 + $0x3a0] sm:$0xff]
    %v1823 = vld [vmem:[%s1705 + $0x3a8] sm:$0xff]
    %v1824 = vld [vmem:[%s1705 + $0x3b0] sm:$0xff]
    %v1825 = vld [vmem:[%s1705 + $0x3b8] sm:$0xff]
    %v1826 = vld [vmem:[%s1705 + $0x3c0] sm:$0xff]
    %v1827 = vld [vmem:[%s1705 + $0x3c8] sm:$0xff]
    %v1828 = vld [vmem:[%s1705 + $0x3d0] sm:$0xff]
    %v1829 = vld [vmem:[%s1705 + $0x3d8] sm:$0xff]
    %v1830 = vld [vmem:[%s1705 + $0x3e0] sm:$0xff]
    %v1831 = vld [vmem:[%s1705 + $0x3e8] sm:$0xff]
    %v1832 = vld [vmem:[%s1705 + $0x3f0] sm:$0xff]
    %v1833 = vld [vmem:[%s1705 + $0x3f8] sm:$0xff]
    %s1834 = scalar_lea.vmem [#allocation10], 2
    %v1835 = vld [vmem:[%s1834] sm:$0x3]
    %v1837 = vlaneseq
    %v1838 = vshrl.u32 %v1837, 7
    %v1839 = vsub.s32 0, %v1838
    %v1840 = vrot.slane %v1835, %v1839
    %v1841 = vlaneseq
    %v1842 = vshrl.u32 %v1841, 7
    %v1843 = vsub.s32 1, %v1842
    %v1844 = vrot.slane %v1835, %v1843
    %v1975 = vunpack.c.l.b16 %v1706
    %v1976 = vunpack.c.h.b16 %v1706
    %v1977 = vunpack.c.l.b16 %v1707
    %v1978 = vunpack.c.h.b16 %v1707
    %v1979 = vunpack.c.l.b16 %v1708
    %v1980 = vunpack.c.h.b16 %v1708
    %v1981 = vunpack.c.l.b16 %v1709
    %v1982 = vunpack.c.h.b16 %v1709
    %v1983 = vunpack.c.l.b16 %v1710
    %v1984 = vunpack.c.h.b16 %v1710
    %v1985 = vunpack.c.l.b16 %v1711
    %v1986 = vunpack.c.h.b16 %v1711
    %v1987 = vunpack.c.l.b16 %v1712
    %v1988 = vunpack.c.h.b16 %v1712
    %v1989 = vunpack.c.l.b16 %v1713
    %v1990 = vunpack.c.h.b16 %v1713
    %v1991 = vunpack.c.l.b16 %v1714
    %v1992 = vunpack.c.h.b16 %v1714
    %v1993 = vunpack.c.l.b16 %v1715
    %v1994 = vunpack.c.h.b16 %v1715
    %v1995 = vunpack.c.l.b16 %v1716
    %v1996 = vunpack.c.h.b16 %v1716
    %v1997 = vunpack.c.l.b16 %v1717
    %v1998 = vunpack.c.h.b16 %v1717
    %v1999 = vunpack.c.l.b16 %v1718
    %v2000 = vunpack.c.h.b16 %v1718
    %v2001 = vunpack.c.l.b16 %v1719
    %v2002 = vunpack.c.h.b16 %v1719
    %v2003 = vunpack.c.l.b16 %v1720
    %v2004 = vunpack.c.h.b16 %v1720
    %v2005 = vunpack.c.l.b16 %v1721
    %v2006 = vunpack.c.h.b16 %v1721
    %v2007 = vunpack.c.l.b16 %v1722
    %v2008 = vunpack.c.h.b16 %v1722
    %v2009 = vunpack.c.l.b16 %v1723
    %v2010 = vunpack.c.h.b16 %v1723
    %v2011 = vunpack.c.l.b16 %v1724
    %v2012 = vunpack.c.h.b16 %v1724
    %v2013 = vunpack.c.l.b16 %v1725
    %v2014 = vunpack.c.h.b16 %v1725
    %v2015 = vunpack.c.l.b16 %v1726
    %v2016 = vunpack.c.h.b16 %v1726
    %v2017 = vunpack.c.l.b16 %v1727
    %v2018 = vunpack.c.h.b16 %v1727
    %v2019 = vunpack.c.l.b16 %v1728
    %v2020 = vunpack.c.h.b16 %v1728
    %v2021 = vunpack.c.l.b16 %v1729
    %v2022 = vunpack.c.h.b16 %v1729
    %v2023 = vunpack.c.l.b16 %v1730
    %v2024 = vunpack.c.h.b16 %v1730
    %v2025 = vunpack.c.l.b16 %v1731
    %v2026 = vunpack.c.h.b16 %v1731
    %v2027 = vunpack.c.l.b16 %v1732
    %v2028 = vunpack.c.h.b16 %v1732
    %v2029 = vunpack.c.l.b16 %v1733
    %v2030 = vunpack.c.h.b16 %v1733
    %v2031 = vunpack.c.l.b16 %v1734
    %v2032 = vunpack.c.h.b16 %v1734
    %v2033 = vunpack.c.l.b16 %v1735
    %v2034 = vunpack.c.h.b16 %v1735
    %v2035 = vunpack.c.l.b16 %v1736
    %v2036 = vunpack.c.h.b16 %v1736
    %v2037 = vunpack.c.l.b16 %v1737
    %v2038 = vunpack.c.h.b16 %v1737
    %v2039 = vunpack.c.l.b16 %v1738
    %v2040 = vunpack.c.h.b16 %v1738
    %v2041 = vunpack.c.l.b16 %v1739
    %v2042 = vunpack.c.h.b16 %v1739
    %v2043 = vunpack.c.l.b16 %v1740
    %v2044 = vunpack.c.h.b16 %v1740
    %v2045 = vunpack.c.l.b16 %v1741
    %v2046 = vunpack.c.h.b16 %v1741
    %v2047 = vunpack.c.l.b16 %v1742
    %v2048 = vunpack.c.h.b16 %v1742
    %v2049 = vunpack.c.l.b16 %v1743
    %v2050 = vunpack.c.h.b16 %v1743
    %v2051 = vunpack.c.l.b16 %v1744
    %v2052 = vunpack.c.h.b16 %v1744
    %v2053 = vunpack.c.l.b16 %v1745
    %v2054 = vunpack.c.h.b16 %v1745
    %v2055 = vunpack.c.l.b16 %v1746
    %v2056 = vunpack.c.h.b16 %v1746
    %v2057 = vunpack.c.l.b16 %v1747
    %v2058 = vunpack.c.h.b16 %v1747
    %v2059 = vunpack.c.l.b16 %v1748
    %v2060 = vunpack.c.h.b16 %v1748
    %v2061 = vunpack.c.l.b16 %v1749
    %v2062 = vunpack.c.h.b16 %v1749
    %v2063 = vunpack.c.l.b16 %v1750
    %v2064 = vunpack.c.h.b16 %v1750
    %v2065 = vunpack.c.l.b16 %v1751
    %v2066 = vunpack.c.h.b16 %v1751
    %v2067 = vunpack.c.l.b16 %v1752
    %v2068 = vunpack.c.h.b16 %v1752
    %v2069 = vunpack.c.l.b16 %v1753
    %v2070 = vunpack.c.h.b16 %v1753
    %v2071 = vunpack.c.l.b16 %v1754
    %v2072 = vunpack.c.h.b16 %v1754
    %v2073 = vunpack.c.l.b16 %v1755
    %v2074 = vunpack.c.h.b16 %v1755
    %v2075 = vunpack.c.l.b16 %v1756
    %v2076 = vunpack.c.h.b16 %v1756
    %v2077 = vunpack.c.l.b16 %v1757
    %v2078 = vunpack.c.h.b16 %v1757
    %v2079 = vunpack.c.l.b16 %v1758
    %v2080 = vunpack.c.h.b16 %v1758
    %v2081 = vunpack.c.l.b16 %v1759
    %v2082 = vunpack.c.h.b16 %v1759
    %v2083 = vunpack.c.l.b16 %v1760
    %v2084 = vunpack.c.h.b16 %v1760
    %v2085 = vunpack.c.l.b16 %v1761
    %v2086 = vunpack.c.h.b16 %v1761
    %v2087 = vunpack.c.l.b16 %v1762
    %v2088 = vunpack.c.h.b16 %v1762
    %v2089 = vunpack.c.l.b16 %v1763
    %v2090 = vunpack.c.h.b16 %v1763
    %v2091 = vunpack.c.l.b16 %v1764
    %v2092 = vunpack.c.h.b16 %v1764
    %v2093 = vunpack.c.l.b16 %v1765
    %v2094 = vunpack.c.h.b16 %v1765
    %v2095 = vunpack.c.l.b16 %v1766
    %v2096 = vunpack.c.h.b16 %v1766
    %v2097 = vunpack.c.l.b16 %v1767
    %v2098 = vunpack.c.h.b16 %v1767
    %v2099 = vunpack.c.l.b16 %v1768
    %v2100 = vunpack.c.h.b16 %v1768
    %v2101 = vunpack.c.l.b16 %v1769
    %v2102 = vunpack.c.h.b16 %v1769
    %v2103 = vunpack.c.l.b16 %v1770
    %v2104 = vunpack.c.h.b16 %v1770
    %v2105 = vunpack.c.l.b16 %v1771
    %v2106 = vunpack.c.h.b16 %v1771
    %v2107 = vunpack.c.l.b16 %v1772
    %v2108 = vunpack.c.h.b16 %v1772
    %v2109 = vunpack.c.l.b16 %v1773
    %v2110 = vunpack.c.h.b16 %v1773
    %v2111 = vunpack.c.l.b16 %v1774
    %v2112 = vunpack.c.h.b16 %v1774
    %v2113 = vunpack.c.l.b16 %v1775
    %v2114 = vunpack.c.h.b16 %v1775
    %v2115 = vunpack.c.l.b16 %v1776
    %v2116 = vunpack.c.h.b16 %v1776
    %v2117 = vunpack.c.l.b16 %v1777
    %v2118 = vunpack.c.h.b16 %v1777
    %v2119 = vunpack.c.l.b16 %v1778
    %v2120 = vunpack.c.h.b16 %v1778
    %v2121 = vunpack.c.l.b16 %v1779
    %v2122 = vunpack.c.h.b16 %v1779
    %v2123 = vunpack.c.l.b16 %v1780
    %v2124 = vunpack.c.h.b16 %v1780
    %v2125 = vunpack.c.l.b16 %v1781
    %v2126 = vunpack.c.h.b16 %v1781
    %v2127 = vunpack.c.l.b16 %v1782
    %v2128 = vunpack.c.h.b16 %v1782
    %v2129 = vunpack.c.l.b16 %v1783
    %v2130 = vunpack.c.h.b16 %v1783
    %v2131 = vunpack.c.l.b16 %v1784
    %v2132 = vunpack.c.h.b16 %v1784
    %v2133 = vunpack.c.l.b16 %v1785
    %v2134 = vunpack.c.h.b16 %v1785
    %v2135 = vunpack.c.l.b16 %v1786
    %v2136 = vunpack.c.h.b16 %v1786
    %v2137 = vunpack.c.l.b16 %v1787
    %v2138 = vunpack.c.h.b16 %v1787
    %v2139 = vunpack.c.l.b16 %v1788
    %v2140 = vunpack.c.h.b16 %v1788
    %v2141 = vunpack.c.l.b16 %v1789
    %v2142 = vunpack.c.h.b16 %v1789
    %v2143 = vunpack.c.l.b16 %v1790
    %v2144 = vunpack.c.h.b16 %v1790
    %v2145 = vunpack.c.l.b16 %v1791
    %v2146 = vunpack.c.h.b16 %v1791
    %v2147 = vunpack.c.l.b16 %v1792
    %v2148 = vunpack.c.h.b16 %v1792
    %v2149 = vunpack.c.l.b16 %v1793
    %v2150 = vunpack.c.h.b16 %v1793
    %v2151 = vunpack.c.l.b16 %v1794
    %v2152 = vunpack.c.h.b16 %v1794
    %v2153 = vunpack.c.l.b16 %v1795
    %v2154 = vunpack.c.h.b16 %v1795
    %v2155 = vunpack.c.l.b16 %v1796
    %v2156 = vunpack.c.h.b16 %v1796
    %v2157 = vunpack.c.l.b16 %v1797
    %v2158 = vunpack.c.h.b16 %v1797
    %v2159 = vunpack.c.l.b16 %v1798
    %v2160 = vunpack.c.h.b16 %v1798
    %v2161 = vunpack.c.l.b16 %v1799
    %v2162 = vunpack.c.h.b16 %v1799
    %v2163 = vunpack.c.l.b16 %v1800
    %v2164 = vunpack.c.h.b16 %v1800
    %v2165 = vunpack.c.l.b16 %v1801
    %v2166 = vunpack.c.h.b16 %v1801
    %v2167 = vunpack.c.l.b16 %v1802
    %v2168 = vunpack.c.h.b16 %v1802
    %v2169 = vunpack.c.l.b16 %v1803
    %v2170 = vunpack.c.h.b16 %v1803
    %v2171 = vunpack.c.l.b16 %v1804
    %v2172 = vunpack.c.h.b16 %v1804
    %v2173 = vunpack.c.l.b16 %v1805
    %v2174 = vunpack.c.h.b16 %v1805
    %v2175 = vunpack.c.l.b16 %v1806
    %v2176 = vunpack.c.h.b16 %v1806
    %v2177 = vunpack.c.l.b16 %v1807
    %v2178 = vunpack.c.h.b16 %v1807
    %v2179 = vunpack.c.l.b16 %v1808
    %v2180 = vunpack.c.h.b16 %v1808
    %v2181 = vunpack.c.l.b16 %v1809
    %v2182 = vunpack.c.h.b16 %v1809
    %v2183 = vunpack.c.l.b16 %v1810
    %v2184 = vunpack.c.h.b16 %v1810
    %v2185 = vunpack.c.l.b16 %v1811
    %v2186 = vunpack.c.h.b16 %v1811
    %v2187 = vunpack.c.l.b16 %v1812
    %v2188 = vunpack.c.h.b16 %v1812
    %v2189 = vunpack.c.l.b16 %v1813
    %v2190 = vunpack.c.h.b16 %v1813
    %v2191 = vunpack.c.l.b16 %v1814
    %v2192 = vunpack.c.h.b16 %v1814
    %v2193 = vunpack.c.l.b16 %v1815
    %v2194 = vunpack.c.h.b16 %v1815
    %v2195 = vunpack.c.l.b16 %v1816
    %v2196 = vunpack.c.h.b16 %v1816
    %v2197 = vunpack.c.l.b16 %v1817
    %v2198 = vunpack.c.h.b16 %v1817
    %v2199 = vunpack.c.l.b16 %v1818
    %v2200 = vunpack.c.h.b16 %v1818
    %v2201 = vunpack.c.l.b16 %v1819
    %v2202 = vunpack.c.h.b16 %v1819
    %v2203 = vunpack.c.l.b16 %v1820
    %v2204 = vunpack.c.h.b16 %v1820
    %v2205 = vunpack.c.l.b16 %v1821
    %v2206 = vunpack.c.h.b16 %v1821
    %v2207 = vunpack.c.l.b16 %v1822
    %v2208 = vunpack.c.h.b16 %v1822
    %v2209 = vunpack.c.l.b16 %v1823
    %v2210 = vunpack.c.h.b16 %v1823
    %v2211 = vunpack.c.l.b16 %v1824
    %v2212 = vunpack.c.h.b16 %v1824
    %v2213 = vunpack.c.l.b16 %v1825
    %v2214 = vunpack.c.h.b16 %v1825
    %v2215 = vunpack.c.l.b16 %v1826
    %v2216 = vunpack.c.h.b16 %v1826
    %v2217 = vunpack.c.l.b16 %v1827
    %v2218 = vunpack.c.h.b16 %v1827
    %v2219 = vunpack.c.l.b16 %v1828
    %v2220 = vunpack.c.h.b16 %v1828
    %v2221 = vunpack.c.l.b16 %v1829
    %v2222 = vunpack.c.h.b16 %v1829
    %v2223 = vunpack.c.l.b16 %v1830
    %v2224 = vunpack.c.h.b16 %v1830
    %v2225 = vunpack.c.l.b16 %v1831
    %v2226 = vunpack.c.h.b16 %v1831
    %v2227 = vunpack.c.l.b16 %v1832
    %v2228 = vunpack.c.h.b16 %v1832
    %v2229 = vunpack.c.l.b16 %v1833
    %v2230 = vunpack.c.h.b16 %v1833
    %v2231 = vpack.c.b16 %v1977, %v1975
    %v2232 = vpack.c.b16 %v1978, %v1976
    %v2233 = vpack.c.b16 %v1981, %v1979
    %v2234 = vpack.c.b16 %v1982, %v1980
    %v2235 = vpack.c.b16 %v1985, %v1983
    %v2236 = vpack.c.b16 %v1986, %v1984
    %v2237 = vpack.c.b16 %v1989, %v1987
    %v2238 = vpack.c.b16 %v1990, %v1988
    %v2239 = vpack.c.b16 %v1993, %v1991
    %v2240 = vpack.c.b16 %v1994, %v1992
    %v2241 = vpack.c.b16 %v1997, %v1995
    %v2242 = vpack.c.b16 %v1998, %v1996
    %v2243 = vpack.c.b16 %v2001, %v1999
    %v2244 = vpack.c.b16 %v2002, %v2000
    %v2245 = vpack.c.b16 %v2005, %v2003
    %v2246 = vpack.c.b16 %v2006, %v2004
    %v2247 = vpack.c.b16 %v2009, %v2007
    %v2248 = vpack.c.b16 %v2010, %v2008
    %v2249 = vpack.c.b16 %v2013, %v2011
    %v2250 = vpack.c.b16 %v2014, %v2012
    %v2251 = vpack.c.b16 %v2017, %v2015
    %v2252 = vpack.c.b16 %v2018, %v2016
    %v2253 = vpack.c.b16 %v2021, %v2019
    %v2254 = vpack.c.b16 %v2022, %v2020
    %v2255 = vpack.c.b16 %v2025, %v2023
    %v2256 = vpack.c.b16 %v2026, %v2024
    %v2257 = vpack.c.b16 %v2029, %v2027
    %v2258 = vpack.c.b16 %v2030, %v2028
    %v2259 = vpack.c.b16 %v2033, %v2031
    %v2260 = vpack.c.b16 %v2034, %v2032
    %v2261 = vpack.c.b16 %v2037, %v2035
    %v2262 = vpack.c.b16 %v2038, %v2036
    %v2263 = vpack.c.b16 %v2041, %v2039
    %v2264 = vpack.c.b16 %v2042, %v2040
    %v2265 = vpack.c.b16 %v2045, %v2043
    %v2266 = vpack.c.b16 %v2046, %v2044
    %v2267 = vpack.c.b16 %v2049, %v2047
    %v2268 = vpack.c.b16 %v2050, %v2048
    %v2269 = vpack.c.b16 %v2053, %v2051
    %v2270 = vpack.c.b16 %v2054, %v2052
    %v2271 = vpack.c.b16 %v2057, %v2055
    %v2272 = vpack.c.b16 %v2058, %v2056
    %v2273 = vpack.c.b16 %v2061, %v2059
    %v2274 = vpack.c.b16 %v2062, %v2060
    %v2275 = vpack.c.b16 %v2065, %v2063
    %v2276 = vpack.c.b16 %v2066, %v2064
    %v2277 = vpack.c.b16 %v2069, %v2067
    %v2278 = vpack.c.b16 %v2070, %v2068
    %v2279 = vpack.c.b16 %v2073, %v2071
    %v2280 = vpack.c.b16 %v2074, %v2072
    %v2281 = vpack.c.b16 %v2077, %v2075
    %v2282 = vpack.c.b16 %v2078, %v2076
    %v2283 = vpack.c.b16 %v2081, %v2079
    %v2284 = vpack.c.b16 %v2082, %v2080
    %v2285 = vpack.c.b16 %v2085, %v2083
    %v2286 = vpack.c.b16 %v2086, %v2084
    %v2287 = vpack.c.b16 %v2089, %v2087
    %v2288 = vpack.c.b16 %v2090, %v2088
    %v2289 = vpack.c.b16 %v2093, %v2091
    %v2290 = vpack.c.b16 %v2094, %v2092
    %v2291 = vpack.c.b16 %v2097, %v2095
    %v2292 = vpack.c.b16 %v2098, %v2096
    %v2293 = vpack.c.b16 %v2101, %v2099
    %v2294 = vpack.c.b16 %v2102, %v2100
    %v2295 = vpack.c.b16 %v2105, %v2103
    %v2296 = vpack.c.b16 %v2106, %v2104
    %v2297 = vpack.c.b16 %v2109, %v2107
    %v2298 = vpack.c.b16 %v2110, %v2108
    %v2299 = vpack.c.b16 %v2113, %v2111
    %v2300 = vpack.c.b16 %v2114, %v2112
    %v2301 = vpack.c.b16 %v2117, %v2115
    %v2302 = vpack.c.b16 %v2118, %v2116
    %v2303 = vpack.c.b16 %v2121, %v2119
    %v2304 = vpack.c.b16 %v2122, %v2120
    %v2305 = vpack.c.b16 %v2125, %v2123
    %v2306 = vpack.c.b16 %v2126, %v2124
    %v2307 = vpack.c.b16 %v2129, %v2127
    %v2308 = vpack.c.b16 %v2130, %v2128
    %v2309 = vpack.c.b16 %v2133, %v2131
    %v2310 = vpack.c.b16 %v2134, %v2132
    %v2311 = vpack.c.b16 %v2137, %v2135
    %v2312 = vpack.c.b16 %v2138, %v2136
    %v2313 = vpack.c.b16 %v2141, %v2139
    %v2314 = vpack.c.b16 %v2142, %v2140
    %v2315 = vpack.c.b16 %v2145, %v2143
    %v2316 = vpack.c.b16 %v2146, %v2144
    %v2317 = vpack.c.b16 %v2149, %v2147
    %v2318 = vpack.c.b16 %v2150, %v2148
    %v2319 = vpack.c.b16 %v2153, %v2151
    %v2320 = vpack.c.b16 %v2154, %v2152
    %v2321 = vpack.c.b16 %v2157, %v2155
    %v2322 = vpack.c.b16 %v2158, %v2156
    %v2323 = vpack.c.b16 %v2161, %v2159
    %v2324 = vpack.c.b16 %v2162, %v2160
    %v2325 = vpack.c.b16 %v2165, %v2163
    %v2326 = vpack.c.b16 %v2166, %v2164
    %v2327 = vpack.c.b16 %v2169, %v2167
    %v2328 = vpack.c.b16 %v2170, %v2168
    %v2329 = vpack.c.b16 %v2173, %v2171
    %v2330 = vpack.c.b16 %v2174, %v2172
    %v2331 = vpack.c.b16 %v2177, %v2175
    %v2332 = vpack.c.b16 %v2178, %v2176
    %v2333 = vpack.c.b16 %v2181, %v2179
    %v2334 = vpack.c.b16 %v2182, %v2180
    %v2335 = vpack.c.b16 %v2185, %v2183
    %v2336 = vpack.c.b16 %v2186, %v2184
    %v2337 = vpack.c.b16 %v2189, %v2187
    %v2338 = vpack.c.b16 %v2190, %v2188
    %v2339 = vpack.c.b16 %v2193, %v2191
    %v2340 = vpack.c.b16 %v2194, %v2192
    %v2341 = vpack.c.b16 %v2197, %v2195
    %v2342 = vpack.c.b16 %v2198, %v2196
    %v2343 = vpack.c.b16 %v2201, %v2199
    %v2344 = vpack.c.b16 %v2202, %v2200
    %v2345 = vpack.c.b16 %v2205, %v2203
    %v2346 = vpack.c.b16 %v2206, %v2204
    %v2347 = vpack.c.b16 %v2209, %v2207
    %v2348 = vpack.c.b16 %v2210, %v2208
    %v2349 = vpack.c.b16 %v2213, %v2211
    %v2350 = vpack.c.b16 %v2214, %v2212
    %v2351 = vpack.c.b16 %v2217, %v2215
    %v2352 = vpack.c.b16 %v2218, %v2216
    %v2353 = vpack.c.b16 %v2221, %v2219
    %v2354 = vpack.c.b16 %v2222, %v2220
    %v2355 = vpack.c.b16 %v2225, %v2223
    %v2356 = vpack.c.b16 %v2226, %v2224
    %v2357 = vpack.c.b16 %v2229, %v2227
    %v2358 = vpack.c.b16 %v2230, %v2228
    %2487 = vmatprep.subr.bf16.mxu0 %v2232
    %2488 = vmatpush1.bf16.msra.mxu0 %v2231
    %2489 = vmatprep.subr.bf16.mxu0 %v2234
    %2490 = vmatpush1.bf16.msra.mxu0 %v2233
    %2491 = vmatprep.subr.bf16.mxu0 %v2236
    %2492 = vmatpush1.bf16.msra.mxu0 %v2235
    %2493 = vmatprep.subr.bf16.mxu0 %v2238
    %2494 = vmatpush1.bf16.msra.mxu0 %v2237
    %2495 = vmatprep.subr.bf16.mxu0 %v2240
    %2496 = vmatpush1.bf16.msra.mxu0 %v2239
    %2497 = vmatprep.subr.bf16.mxu0 %v2242
    %2498 = vmatpush1.bf16.msra.mxu0 %v2241
    %2499 = vmatprep.subr.bf16.mxu0 %v2244
    %2500 = vmatpush1.bf16.msra.mxu0 %v2243
    %2501 = vmatprep.subr.bf16.mxu0 %v2246
    %2502 = vmatpush1.bf16.msra.mxu0 %v2245
    %2503 = vmatprep.subr.bf16.mxu0 %v2248
    %2504 = vmatpush1.bf16.msra.mxu0 %v2247
    %2505 = vmatprep.subr.bf16.mxu0 %v2250
    %2506 = vmatpush1.bf16.msra.mxu0 %v2249
    %2507 = vmatprep.subr.bf16.mxu0 %v2252
    %2508 = vmatpush1.bf16.msra.mxu0 %v2251
    %2509 = vmatprep.subr.bf16.mxu0 %v2254
    %2510 = vmatpush1.bf16.msra.mxu0 %v2253
    %2511 = vmatprep.subr.bf16.mxu0 %v2256
    %2512 = vmatpush1.bf16.msra.mxu0 %v2255
    %2513 = vmatprep.subr.bf16.mxu0 %v2258
    %2514 = vmatpush1.bf16.msra.mxu0 %v2257
    %2515 = vmatprep.subr.bf16.mxu0 %v2260
    %2516 = vmatpush1.bf16.msra.mxu0 %v2259
    %2517 = vmatprep.subr.bf16.mxu0 %v2262
    %2518 = vmatpush1.bf16.msra.mxu0 %v2261
    %2519 = vmatprep.mubr.bf16.mxu0 %v718
    %2520 = vmatmul.mubr.bf16.gmra.mrb[0].mxu0 %v717
    %v2521 = vpop.f32.mrb[0].mxu0
    %v2522 = vadd.f32 %v1840, %v2521
    %v2523 = vpop.f32.mrb[0].mxu0
    %v2524 = vadd.f32 %v1844, %v2523
    %v2525 = vpop.f32.mrb[0].mxu0
    %v2526 = vpop.f32.mrb[0].mxu0
    %2527 = vdwg.mxu0
    %2528 = vmatprep.subr.bf16.mxu0 %v2264
    %2529 = vmatpush1.bf16.msra.mxu0 %v2263
    %2530 = vmatprep.subr.bf16.mxu0 %v2266
    %2531 = vmatpush1.bf16.msra.mxu0 %v2265
    %2532 = vmatprep.subr.bf16.mxu0 %v2268
    %2533 = vmatpush1.bf16.msra.mxu0 %v2267
    %2534 = vmatprep.subr.bf16.mxu0 %v2270
    %2535 = vmatpush1.bf16.msra.mxu0 %v2269
    %2536 = vmatprep.subr.bf16.mxu0 %v2272
    %2537 = vmatpush1.bf16.msra.mxu0 %v2271
    %2538 = vmatprep.subr.bf16.mxu0 %v2274
    %2539 = vmatpush1.bf16.msra.mxu0 %v2273
    %2540 = vmatprep.subr.bf16.mxu0 %v2276
    %2541 = vmatpush1.bf16.msra.mxu0 %v2275
    %2542 = vmatprep.subr.bf16.mxu0 %v2278
    %2543 = vmatpush1.bf16.msra.mxu0 %v2277
    %2544 = vmatprep.subr.bf16.mxu0 %v2280
    %2545 = vmatpush1.bf16.msra.mxu0 %v2279
    %2546 = vmatprep.subr.bf16.mxu0 %v2282
    %2547 = vmatpush1.bf16.msra.mxu0 %v2281
    %2548 = vmatprep.subr.bf16.mxu0 %v2284
    %2549 = vmatpush1.bf16.msra.mxu0 %v2283
    %2550 = vmatprep.subr.bf16.mxu0 %v2286
    %2551 = vmatpush1.bf16.msra.mxu0 %v2285
    %2552 = vmatprep.subr.bf16.mxu0 %v2288
    %2553 = vmatpush1.bf16.msra.mxu0 %v2287
    %2554 = vmatprep.subr.bf16.mxu0 %v2290
    %2555 = vmatpush1.bf16.msra.mxu0 %v2289
    %2556 = vmatprep.subr.bf16.mxu0 %v2292
    %2557 = vmatpush1.bf16.msra.mxu0 %v2291
    %2558 = vmatprep.subr.bf16.mxu0 %v2294
    %2559 = vmatpush1.bf16.msra.mxu0 %v2293
    %2560 = vmatprep.mubr.bf16.mxu0 %v720
    %2561 = vmatmul.mubr.bf16.gmra.mrb[0].mxu0 %v719
    %v2562 = vpop.f32.mrb[0].mxu0
    %v2563 = vadd.f32 %v2522, %v2562
    %v2564 = vpop.f32.mrb[0].mxu0
    %v2565 = vadd.f32 %v2524, %v2564
    %v2566 = vpop.f32.mrb[0].mxu0
    %v2567 = vpop.f32.mrb[0].mxu0
    %2568 = vdwg.mxu0
    %2569 = vmatprep.subr.bf16.mxu0 %v2296
    %2570 = vmatpush1.bf16.msra.mxu0 %v2295
    %2571 = vmatprep.subr.bf16.mxu0 %v2298
    %2572 = vmatpush1.bf16.msra.mxu0 %v2297
    %2573 = vmatprep.subr.bf16.mxu0 %v2300
    %2574 = vmatpush1.bf16.msra.mxu0 %v2299
    %2575 = vmatprep.subr.bf16.mxu0 %v2302
    %2576 = vmatpush1.bf16.msra.mxu0 %v2301
    %2577 = vmatprep.subr.bf16.mxu0 %v2304
    %2578 = vmatpush1.bf16.msra.mxu0 %v2303
    %2579 = vmatprep.subr.bf16.mxu0 %v2306
    %2580 = vmatpush1.bf16.msra.mxu0 %v2305
    %2581 = vmatprep.subr.bf16.mxu0 %v2308
    %2582 = vmatpush1.bf16.msra.mxu0 %v2307
    %2583 = vmatprep.subr.bf16.mxu0 %v2310
    %2584 = vmatpush1.bf16.msra.mxu0 %v2309
    %2585 = vmatprep.subr.bf16.mxu0 %v2312
    %2586 = vmatpush1.bf16.msra.mxu0 %v2311
    %2587 = vmatprep.subr.bf16.mxu0 %v2314
    %2588 = vmatpush1.bf16.msra.mxu0 %v2313
    %2589 = vmatprep.subr.bf16.mxu0 %v2316
    %2590 = vmatpush1.bf16.msra.mxu0 %v2315
    %2591 = vmatprep.subr.bf16.mxu0 %v2318
    %2592 = vmatpush1.bf16.msra.mxu0 %v2317
    %2593 = vmatprep.subr.bf16.mxu0 %v2320
    %2594 = vmatpush1.bf16.msra.mxu0 %v2319
    %2595 = vmatprep.subr.bf16.mxu0 %v2322
    %2596 = vmatpush1.bf16.msra.mxu0 %v2321
    %2597 = vmatprep.subr.bf16.mxu0 %v2324
    %2598 = vmatpush1.bf16.msra.mxu0 %v2323
    %2599 = vmatprep.subr.bf16.mxu0 %v2326
    %2600 = vmatpush1.bf16.msra.mxu0 %v2325
    %2601 = vmatprep.mubr.bf16.mxu0 %v722
    %2602 = vmatmul.mubr.bf16.gmra.mrb[0].mxu0 %v721
    %v2603 = vpop.f32.mrb[0].mxu0
    %v2604 = vadd.f32 %v2563, %v2603
    %v2605 = vpop.f32.mrb[0].mxu0
    %v2606 = vadd.f32 %v2565, %v2605
    %v2607 = vpop.f32.mrb[0].mxu0
    %v2608 = vpop.f32.mrb[0].mxu0
    %2609 = vdwg.mxu0
    %2610 = vmatprep.subr.bf16.mxu0 %v2328
    %2611 = vmatpush1.bf16.msra.mxu0 %v2327
    %2612 = vmatprep.subr.bf16.mxu0 %v2330
    %2613 = vmatpush1.bf16.msra.mxu0 %v2329
    %2614 = vmatprep.subr.bf16.mxu0 %v2332
    %2615 = vmatpush1.bf16.msra.mxu0 %v2331
    %2616 = vmatprep.subr.bf16.mxu0 %v2334
    %2617 = vmatpush1.bf16.msra.mxu0 %v2333
    %2618 = vmatprep.subr.bf16.mxu0 %v2336
    %2619 = vmatpush1.bf16.msra.mxu0 %v2335
    %2620 = vmatprep.subr.bf16.mxu0 %v2338
    %2621 = vmatpush1.bf16.msra.mxu0 %v2337
    %2622 = vmatprep.subr.bf16.mxu0 %v2340
    %2623 = vmatpush1.bf16.msra.mxu0 %v2339
    %2624 = vmatprep.subr.bf16.mxu0 %v2342
    %2625 = vmatpush1.bf16.msra.mxu0 %v2341
    %2626 = vmatprep.subr.bf16.mxu0 %v2344
    %2627 = vmatpush1.bf16.msra.mxu0 %v2343
    %2628 = vmatprep.subr.bf16.mxu0 %v2346
    %2629 = vmatpush1.bf16.msra.mxu0 %v2345
    %2630 = vmatprep.subr.bf16.mxu0 %v2348
    %2631 = vmatpush1.bf16.msra.mxu0 %v2347
    %2632 = vmatprep.subr.bf16.mxu0 %v2350
    %2633 = vmatpush1.bf16.msra.mxu0 %v2349
    %2634 = vmatprep.subr.bf16.mxu0 %v2352
    %2635 = vmatpush1.bf16.msra.mxu0 %v2351
    %2636 = vmatprep.subr.bf16.mxu0 %v2354
    %2637 = vmatpush1.bf16.msra.mxu0 %v2353
    %2638 = vmatprep.subr.bf16.mxu0 %v2356
    %2639 = vmatpush1.bf16.msra.mxu0 %v2355
    %2640 = vmatprep.subr.bf16.mxu0 %v2358
    %2641 = vmatpush1.bf16.msra.mxu0 %v2357
    %2642 = vmatprep.mubr.bf16.mxu0 %v724
    %2643 = vmatmul.mubr.bf16.gmra.mrb[0].mxu0 %v723
    %v2644 = vpop.f32.mrb[0].mxu0
    %v2645 = vadd.f32 %v2604, %v2644
    %v2646 = vpop.f32.mrb[0].mxu0
    %v2647 = vadd.f32 %v2606, %v2646
    %v2648 = vpop.f32.mrb[0].mxu0
    %v2649 = vpop.f32.mrb[0].mxu0
    %2650 = vdwg.mxu0
    %v2651 = vmax.f32 %v2645, 0.0
    %v2652 = vmax.f32 %v2647, 0.0
    %v2653 = vpack.c.bf16 %v2651, %v2651
    %v2654 = vpack.c.bf16 %v2652, %v2652
    %s2655 = scalar_lea.vmem [#allocation11], 128
    %v2656 = vld [vmem:[%s2655] sm:$0xf]
    %v2657 = vld [vmem:[%s2655 + $0x4] sm:$0xf]
    %v2658 = vld [vmem:[%s2655 + $0x8] sm:$0xf]
    %v2659 = vld [vmem:[%s2655 + $0xc] sm:$0xf]
    %v2660 = vld [vmem:[%s2655 + $0x10] sm:$0xf]
    %v2661 = vld [vmem:[%s2655 + $0x14] sm:$0xf]
    %v2662 = vld [vmem:[%s2655 + $0x18] sm:$0xf]
    %v2663 = vld [vmem:[%s2655 + $0x1c] sm:$0xf]
    %v2664 = vld [vmem:[%s2655 + $0x20] sm:$0xf]
    %v2665 = vld [vmem:[%s2655 + $0x24] sm:$0xf]
    %v2666 = vld [vmem:[%s2655 + $0x28] sm:$0xf]
    %v2667 = vld [vmem:[%s2655 + $0x2c] sm:$0xf]
    %v2668 = vld [vmem:[%s2655 + $0x30] sm:$0xf]
    %v2669 = vld [vmem:[%s2655 + $0x34] sm:$0xf]
    %v2670 = vld [vmem:[%s2655 + $0x38] sm:$0xf]
    %v2671 = vld [vmem:[%s2655 + $0x3c] sm:$0xf]
    %v2672 = vld [vmem:[%s2655 + $0x40] sm:$0xf]
    %v2673 = vld [vmem:[%s2655 + $0x44] sm:$0xf]
    %v2674 = vld [vmem:[%s2655 + $0x48] sm:$0xf]
    %v2675 = vld [vmem:[%s2655 + $0x4c] sm:$0xf]
    %v2676 = vld [vmem:[%s2655 + $0x50] sm:$0xf]
    %v2677 = vld [vmem:[%s2655 + $0x54] sm:$0xf]
    %v2678 = vld [vmem:[%s2655 + $0x58] sm:$0xf]
    %v2679 = vld [vmem:[%s2655 + $0x5c] sm:$0xf]
    %v2680 = vld [vmem:[%s2655 + $0x60] sm:$0xf]
    %v2681 = vld [vmem:[%s2655 + $0x64] sm:$0xf]
    %v2682 = vld [vmem:[%s2655 + $0x68] sm:$0xf]
    %v2683 = vld [vmem:[%s2655 + $0x6c] sm:$0xf]
    %v2684 = vld [vmem:[%s2655 + $0x70] sm:$0xf]
    %v2685 = vld [vmem:[%s2655 + $0x74] sm:$0xf]
    %v2686 = vld [vmem:[%s2655 + $0x78] sm:$0xf]
    %v2687 = vld [vmem:[%s2655 + $0x7c] sm:$0xf]
    %v2720 = vunpack.c.l.b16 %v2656
    %v2721 = vunpack.c.l.b16 %v2657
    %v2722 = vunpack.c.l.b16 %v2658
    %v2723 = vunpack.c.l.b16 %v2659
    %v2724 = vunpack.c.l.b16 %v2660
    %v2725 = vunpack.c.l.b16 %v2661
    %v2726 = vunpack.c.l.b16 %v2662
    %v2727 = vunpack.c.l.b16 %v2663
    %v2728 = vunpack.c.l.b16 %v2664
    %v2729 = vunpack.c.l.b16 %v2665
    %v2730 = vunpack.c.l.b16 %v2666
    %v2731 = vunpack.c.l.b16 %v2667
    %v2732 = vunpack.c.l.b16 %v2668
    %v2733 = vunpack.c.l.b16 %v2669
    %v2734 = vunpack.c.l.b16 %v2670
    %v2735 = vunpack.c.l.b16 %v2671
    %v2736 = vunpack.c.l.b16 %v2672
    %v2737 = vunpack.c.l.b16 %v2673
    %v2738 = vunpack.c.l.b16 %v2674
    %v2739 = vunpack.c.l.b16 %v2675
    %v2740 = vunpack.c.l.b16 %v2676
    %v2741 = vunpack.c.l.b16 %v2677
    %v2742 = vunpack.c.l.b16 %v2678
    %v2743 = vunpack.c.l.b16 %v2679
    %v2744 = vunpack.c.l.b16 %v2680
    %v2745 = vunpack.c.l.b16 %v2681
    %v2746 = vunpack.c.l.b16 %v2682
    %v2747 = vunpack.c.l.b16 %v2683
    %v2748 = vunpack.c.l.b16 %v2684
    %v2749 = vunpack.c.l.b16 %v2685
    %v2750 = vunpack.c.l.b16 %v2686
    %v2751 = vunpack.c.l.b16 %v2687
    %v2752 = vpack.c.b16 %v2721, %v2720
    %v2753 = vpack.c.b16 %v2723, %v2722
    %v2754 = vpack.c.b16 %v2725, %v2724
    %v2755 = vpack.c.b16 %v2727, %v2726
    %v2756 = vpack.c.b16 %v2729, %v2728
    %v2757 = vpack.c.b16 %v2731, %v2730
    %v2758 = vpack.c.b16 %v2733, %v2732
    %v2759 = vpack.c.b16 %v2735, %v2734
    %v2760 = vpack.c.b16 %v2737, %v2736
    %v2761 = vpack.c.b16 %v2739, %v2738
    %v2762 = vpack.c.b16 %v2741, %v2740
    %v2763 = vpack.c.b16 %v2743, %v2742
    %v2764 = vpack.c.b16 %v2745, %v2744
    %v2765 = vpack.c.b16 %v2747, %v2746
    %v2766 = vpack.c.b16 %v2749, %v2748
    %v2767 = vpack.c.b16 %v2751, %v2750
    %2784 = vmatprep.subr.bf16.mxu0 0
    %2785 = vmatpush1.bf16.msra.mxu0 %v2752
    %2786 = vmatprep.subr.bf16.mxu0 0
    %2787 = vmatpush1.bf16.msra.mxu0 %v2753
    %2788 = vmatprep.subr.bf16.mxu0 0
    %2789 = vmatpush1.bf16.msra.mxu0 %v2754
    %2790 = vmatprep.subr.bf16.mxu0 0
    %2791 = vmatpush1.bf16.msra.mxu0 %v2755
    %2792 = vmatprep.subr.bf16.mxu0 0
    %2793 = vmatpush1.bf16.msra.mxu0 %v2756
    %2794 = vmatprep.subr.bf16.mxu0 0
    %2795 = vmatpush1.bf16.msra.mxu0 %v2757
    %2796 = vmatprep.subr.bf16.mxu0 0
    %2797 = vmatpush1.bf16.msra.mxu0 %v2758
    %2798 = vmatprep.subr.bf16.mxu0 0
    %2799 = vmatpush1.bf16.msra.mxu0 %v2759
    %2800 = vmatprep.subr.bf16.mxu0 0
    %2801 = vmatpush1.bf16.msra.mxu0 %v2760
    %2802 = vmatprep.subr.bf16.mxu0 0
    %2803 = vmatpush1.bf16.msra.mxu0 %v2761
    %2804 = vmatprep.subr.bf16.mxu0 0
    %2805 = vmatpush1.bf16.msra.mxu0 %v2762
    %2806 = vmatprep.subr.bf16.mxu0 0
    %2807 = vmatpush1.bf16.msra.mxu0 %v2763
    %2808 = vmatprep.subr.bf16.mxu0 0
    %2809 = vmatpush1.bf16.msra.mxu0 %v2764
    %2810 = vmatprep.subr.bf16.mxu0 0
    %2811 = vmatpush1.bf16.msra.mxu0 %v2765
    %2812 = vmatprep.subr.bf16.mxu0 0
    %2813 = vmatpush1.bf16.msra.mxu0 %v2766
    %2814 = vmatprep.subr.bf16.mxu0 0
    %2815 = vmatpush1.bf16.msra.mxu0 %v2767
    %2816 = vmatprep.mubr.bf16.mxu0 %v2654
    %2817 = vmatmul.mubr.bf16.gmra.mrb[0].mxu0 %v2653
    %v2818 = vpop.f32.mrb[0].mxu0
    %v2819 = vadd.f32 0.0, %v2818
    %v2820 = vpop.f32.mrb[0].mxu0
    %v2821 = vpop.f32.mrb[0].mxu0
    %v2822 = vpop.f32.mrb[0].mxu0
    %2823 = vdwg.mxu0
    %v2856 = vunpack.c.l.b16 %v1673
    %v2857 = vunpack.c.l.b16 %v1674
    %v2858 = vunpack.c.l.b16 %v1675
    %v2859 = vunpack.c.l.b16 %v1676
    %v2860 = vunpack.c.l.b16 %v1677
    %v2861 = vunpack.c.l.b16 %v1678
    %v2862 = vunpack.c.l.b16 %v1679
    %v2863 = vunpack.c.l.b16 %v1680
    %v2864 = vunpack.c.l.b16 %v1681
    %v2865 = vunpack.c.l.b16 %v1682
    %v2866 = vunpack.c.l.b16 %v1683
    %v2867 = vunpack.c.l.b16 %v1684
    %v2868 = vunpack.c.l.b16 %v1685
    %v2869 = vunpack.c.l.b16 %v1686
    %v2870 = vunpack.c.l.b16 %v1687
    %v2871 = vunpack.c.l.b16 %v1688
    %v2872 = vunpack.c.l.b16 %v1689
    %v2873 = vunpack.c.l.b16 %v1690
    %v2874 = vunpack.c.l.b16 %v1691
    %v2875 = vunpack.c.l.b16 %v1692
    %v2876 = vunpack.c.l.b16 %v1693
    %v2877 = vunpack.c.l.b16 %v1694
    %v2878 = vunpack.c.l.b16 %v1695
    %v2879 = vunpack.c.l.b16 %v1696
    %v2880 = vunpack.c.l.b16 %v1697
    %v2881 = vunpack.c.l.b16 %v1698
    %v2882 = vunpack.c.l.b16 %v1699
    %v2883 = vunpack.c.l.b16 %v1700
    %v2884 = vunpack.c.l.b16 %v1701
    %v2885 = vunpack.c.l.b16 %v1702
    %v2886 = vunpack.c.l.b16 %v1703
    %v2887 = vunpack.c.l.b16 %v1704
    %v2888 = vpack.c.b16 %v2857, %v2856
    %v2889 = vpack.c.b16 %v2859, %v2858
    %v2890 = vpack.c.b16 %v2861, %v2860
    %v2891 = vpack.c.b16 %v2863, %v2862
    %v2892 = vpack.c.b16 %v2865, %v2864
    %v2893 = vpack.c.b16 %v2867, %v2866
    %v2894 = vpack.c.b16 %v2869, %v2868
    %v2895 = vpack.c.b16 %v2871, %v2870
    %v2896 = vpack.c.b16 %v2873, %v2872
    %v2897 = vpack.c.b16 %v2875, %v2874
    %v2898 = vpack.c.b16 %v2877, %v2876
    %v2899 = vpack.c.b16 %v2879, %v2878
    %v2900 = vpack.c.b16 %v2881, %v2880
    %v2901 = vpack.c.b16 %v2883, %v2882
    %v2902 = vpack.c.b16 %v2885, %v2884
    %v2903 = vpack.c.b16 %v2887, %v2886
    %2920 = vmatprep.subr.bf16.mxu0 0
    %2921 = vmatpush1.bf16.msra.mxu0 %v2888
    %2922 = vmatprep.subr.bf16.mxu0 0
    %2923 = vmatpush1.bf16.msra.mxu0 %v2889
    %2924 = vmatprep.subr.bf16.mxu0 0
    %2925 = vmatpush1.bf16.msra.mxu0 %v2890
    %2926 = vmatprep.subr.bf16.mxu0 0
    %2927 = vmatpush1.bf16.msra.mxu0 %v2891
    %2928 = vmatprep.subr.bf16.mxu0 0
    %2929 = vmatpush1.bf16.msra.mxu0 %v2892
    %2930 = vmatprep.subr.bf16.mxu0 0
    %2931 = vmatpush1.bf16.msra.mxu0 %v2893
    %2932 = vmatprep.subr.bf16.mxu0 0
    %2933 = vmatpush1.bf16.msra.mxu0 %v2894
    %2934 = vmatprep.subr.bf16.mxu0 0
    %2935 = vmatpush1.bf16.msra.mxu0 %v2895
    %2936 = vmatprep.subr.bf16.mxu0 0
    %2937 = vmatpush1.bf16.msra.mxu0 %v2896
    %2938 = vmatprep.subr.bf16.mxu0 0
    %2939 = vmatpush1.bf16.msra.mxu0 %v2897
    %2940 = vmatprep.subr.bf16.mxu0 0
    %2941 = vmatpush1.bf16.msra.mxu0 %v2898
    %2942 = vmatprep.subr.bf16.mxu0 0
    %2943 = vmatpush1.bf16.msra.mxu0 %v2899
    %2944 = vmatprep.subr.bf16.mxu0 0
    %2945 = vmatpush1.bf16.msra.mxu0 %v2900
    %2946 = vmatprep.subr.bf16.mxu0 0
    %2947 = vmatpush1.bf16.msra.mxu0 %v2901
    %2948 = vmatprep.subr.bf16.mxu0 0
    %2949 = vmatpush1.bf16.msra.mxu0 %v2902
    %2950 = vmatprep.subr.bf16.mxu0 0
    %2951 = vmatpush1.bf16.msra.mxu0 %v2903
    %2952 = vmatprep.mubr.bf16.mxu0 %v1672
    %2953 = vmatmul.mubr.bf16.gmra.mrb[0].mxu0 %v1671
    %v2954 = vpop.f32.mrb[0].mxu0
    %v2955 = vadd.f32 %v2819, %v2954
    %v2956 = vpop.f32.mrb[0].mxu0
    %v2957 = vpop.f32.mrb[0].mxu0
    %v2958 = vpop.f32.mrb[0].mxu0
    %2959 = vdwg.mxu0
    %s2960 = scalar_lea.vmem [#allocation8], 2048
    %v2961 = vld [vmem:[%s2960] sm:$0xff]
    %v2962 = vld [vmem:[%s2960 + $0x8] sm:$0xff]
    %v2963 = vld [vmem:[%s2960 + $0x10] sm:$0xff]
    %v2964 = vld [vmem:[%s2960 + $0x18] sm:$0xff]
    %v2965 = vld [vmem:[%s2960 + $0x20] sm:$0xff]
    %v2966 = vld [vmem:[%s2960 + $0x28] sm:$0xff]
    %v2967 = vld [vmem:[%s2960 + $0x30] sm:$0xff]
    %v2968 = vld [vmem:[%s2960 + $0x38] sm:$0xff]
    %v2969 = vld [vmem:[%s2960 + $0x40] sm:$0xff]
    %v2970 = vld [vmem:[%s2960 + $0x48] sm:$0xff]
    %v2971 = vld [vmem:[%s2960 + $0x50] sm:$0xff]
    %v2972 = vld [vmem:[%s2960 + $0x58] sm:$0xff]
    %v2973 = vld [vmem:[%s2960 + $0x60] sm:$0xff]
    %v2974 = vld [vmem:[%s2960 + $0x68] sm:$0xff]
    %v2975 = vld [vmem:[%s2960 + $0x70] sm:$0xff]
    %v2976 = vld [vmem:[%s2960 + $0x78] sm:$0xff]
    %v2977 = vld [vmem:[%s2960 + $0x80] sm:$0xff]
    %v2978 = vld [vmem:[%s2960 + $0x88] sm:$0xff]
    %v2979 = vld [vmem:[%s2960 + $0x90] sm:$0xff]
    %v2980 = vld [vmem:[%s2960 + $0x98] sm:$0xff]
    %v2981 = vld [vmem:[%s2960 + $0xa0] sm:$0xff]
    %v2982 = vld [vmem:[%s2960 + $0xa8] sm:$0xff]
    %v2983 = vld [vmem:[%s2960 + $0xb0] sm:$0xff]
    %v2984 = vld [vmem:[%s2960 + $0xb8] sm:$0xff]
    %v2985 = vld [vmem:[%s2960 + $0xc0] sm:$0xff]
    %v2986 = vld [vmem:[%s2960 + $0xc8] sm:$0xff]
    %v2987 = vld [vmem:[%s2960 + $0xd0] sm:$0xff]
    %v2988 = vld [vmem:[%s2960 + $0xd8] sm:$0xff]
    %v2989 = vld [vmem:[%s2960 + $0xe0] sm:$0xff]
    %v2990 = vld [vmem:[%s2960 + $0xe8] sm:$0xff]
    %v2991 = vld [vmem:[%s2960 + $0xf0] sm:$0xff]
    %v2992 = vld [vmem:[%s2960 + $0xf8] sm:$0xff]
    %v2993 = vld [vmem:[%s2960 + $0x100] sm:$0xff]
    %v2994 = vld [vmem:[%s2960 + $0x108] sm:$0xff]
    %v2995 = vld [vmem:[%s2960 + $0x110] sm:$0xff]
    %v2996 = vld [vmem:[%s2960 + $0x118] sm:$0xff]
    %v2997 = vld [vmem:[%s2960 + $0x120] sm:$0xff]
    %v2998 = vld [vmem:[%s2960 + $0x128] sm:$0xff]
    %v2999 = vld [vmem:[%s2960 + $0x130] sm:$0xff]
    %v3000 = vld [vmem:[%s2960 + $0x138] sm:$0xff]
    %v3001 = vld [vmem:[%s2960 + $0x140] sm:$0xff]
    %v3002 = vld [vmem:[%s2960 + $0x148] sm:$0xff]
    %v3003 = vld [vmem:[%s2960 + $0x150] sm:$0xff]
    %v3004 = vld [vmem:[%s2960 + $0x158] sm:$0xff]
    %v3005 = vld [vmem:[%s2960 + $0x160] sm:$0xff]
    %v3006 = vld [vmem:[%s2960 + $0x168] sm:$0xff]
    %v3007 = vld [vmem:[%s2960 + $0x170] sm:$0xff]
    %v3008 = vld [vmem:[%s2960 + $0x178] sm:$0xff]
    %v3009 = vld [vmem:[%s2960 + $0x180] sm:$0xff]
    %v3010 = vld [vmem:[%s2960 + $0x188] sm:$0xff]
    %v3011 = vld [vmem:[%s2960 + $0x190] sm:$0xff]
    %v3012 = vld [vmem:[%s2960 + $0x198] sm:$0xff]
    %v3013 = vld [vmem:[%s2960 + $0x1a0] sm:$0xff]
    %v3014 = vld [vmem:[%s2960 + $0x1a8] sm:$0xff]
    %v3015 = vld [vmem:[%s2960 + $0x1b0] sm:$0xff]
    %v3016 = vld [vmem:[%s2960 + $0x1b8] sm:$0xff]
    %v3017 = vld [vmem:[%s2960 + $0x1c0] sm:$0xff]
    %v3018 = vld [vmem:[%s2960 + $0x1c8] sm:$0xff]
    %v3019 = vld [vmem:[%s2960 + $0x1d0] sm:$0xff]
    %v3020 = vld [vmem:[%s2960 + $0x1d8] sm:$0xff]
    %v3021 = vld [vmem:[%s2960 + $0x1e0] sm:$0xff]
    %v3022 = vld [vmem:[%s2960 + $0x1e8] sm:$0xff]
    %v3023 = vld [vmem:[%s2960 + $0x1f0] sm:$0xff]
    %v3024 = vld [vmem:[%s2960 + $0x1f8] sm:$0xff]
    %v3025 = vld [vmem:[%s2960 + $0x200] sm:$0xff]
    %v3026 = vld [vmem:[%s2960 + $0x208] sm:$0xff]
    %v3027 = vld [vmem:[%s2960 + $0x210] sm:$0xff]
    %v3028 = vld [vmem:[%s2960 + $0x218] sm:$0xff]
    %v3029 = vld [vmem:[%s2960 + $0x220] sm:$0xff]
    %v3030 = vld [vmem:[%s2960 + $0x228] sm:$0xff]
    %v3031 = vld [vmem:[%s2960 + $0x230] sm:$0xff]
    %v3032 = vld [vmem:[%s2960 + $0x238] sm:$0xff]
    %v3033 = vld [vmem:[%s2960 + $0x240] sm:$0xff]
    %v3034 = vld [vmem:[%s2960 + $0x248] sm:$0xff]
    %v3035 = vld [vmem:[%s2960 + $0x250] sm:$0xff]
    %v3036 = vld [vmem:[%s2960 + $0x258] sm:$0xff]
    %v3037 = vld [vmem:[%s2960 + $0x260] sm:$0xff]
    %v3038 = vld [vmem:[%s2960 + $0x268] sm:$0xff]
    %v3039 = vld [vmem:[%s2960 + $0x270] sm:$0xff]
    %v3040 = vld [vmem:[%s2960 + $0x278] sm:$0xff]
    %v3041 = vld [vmem:[%s2960 + $0x280] sm:$0xff]
    %v3042 = vld [vmem:[%s2960 + $0x288] sm:$0xff]
    %v3043 = vld [vmem:[%s2960 + $0x290] sm:$0xff]
    %v3044 = vld [vmem:[%s2960 + $0x298] sm:$0xff]
    %v3045 = vld [vmem:[%s2960 + $0x2a0] sm:$0xff]
    %v3046 = vld [vmem:[%s2960 + $0x2a8] sm:$0xff]
    %v3047 = vld [vmem:[%s2960 + $0x2b0] sm:$0xff]
    %v3048 = vld [vmem:[%s2960 + $0x2b8] sm:$0xff]
    %v3049 = vld [vmem:[%s2960 + $0x2c0] sm:$0xff]
    %v3050 = vld [vmem:[%s2960 + $0x2c8] sm:$0xff]
    %v3051 = vld [vmem:[%s2960 + $0x2d0] sm:$0xff]
    %v3052 = vld [vmem:[%s2960 + $0x2d8] sm:$0xff]
    %v3053 = vld [vmem:[%s2960 + $0x2e0] sm:$0xff]
    %v3054 = vld [vmem:[%s2960 + $0x2e8] sm:$0xff]
    %v3055 = vld [vmem:[%s2960 + $0x2f0] sm:$0xff]
    %v3056 = vld [vmem:[%s2960 + $0x2f8] sm:$0xff]
    %v3057 = vld [vmem:[%s2960 + $0x300] sm:$0xff]
    %v3058 = vld [vmem:[%s2960 + $0x308] sm:$0xff]
    %v3059 = vld [vmem:[%s2960 + $0x310] sm:$0xff]
    %v3060 = vld [vmem:[%s2960 + $0x318] sm:$0xff]
    %v3061 = vld [vmem:[%s2960 + $0x320] sm:$0xff]
    %v3062 = vld [vmem:[%s2960 + $0x328] sm:$0xff]
    %v3063 = vld [vmem:[%s2960 + $0x330] sm:$0xff]
    %v3064 = vld [vmem:[%s2960 + $0x338] sm:$0xff]
    %v3065 = vld [vmem:[%s2960 + $0x340] sm:$0xff]
    %v3066 = vld [vmem:[%s2960 + $0x348] sm:$0xff]
    %v3067 = vld [vmem:[%s2960 + $0x350] sm:$0xff]
    %v3068 = vld [vmem:[%s2960 + $0x358] sm:$0xff]
    %v3069 = vld [vmem:[%s2960 + $0x360] sm:$0xff]
    %v3070 = vld [vmem:[%s2960 + $0x368] sm:$0xff]
    %v3071 = vld [vmem:[%s2960 + $0x370] sm:$0xff]
    %v3072 = vld [vmem:[%s2960 + $0x378] sm:$0xff]
    %v3073 = vld [vmem:[%s2960 + $0x380] sm:$0xff]
    %v3074 = vld [vmem:[%s2960 + $0x388] sm:$0xff]
    %v3075 = vld [vmem:[%s2960 + $0x390] sm:$0xff]
    %v3076 = vld [vmem:[%s2960 + $0x398] sm:$0xff]
    %v3077 = vld [vmem:[%s2960 + $0x3a0] sm:$0xff]
    %v3078 = vld [vmem:[%s2960 + $0x3a8] sm:$0xff]
    %v3079 = vld [vmem:[%s2960 + $0x3b0] sm:$0xff]
    %v3080 = vld [vmem:[%s2960 + $0x3b8] sm:$0xff]
    %v3081 = vld [vmem:[%s2960 + $0x3c0] sm:$0xff]
    %v3082 = vld [vmem:[%s2960 + $0x3c8] sm:$0xff]
    %v3083 = vld [vmem:[%s2960 + $0x3d0] sm:$0xff]
    %v3084 = vld [vmem:[%s2960 + $0x3d8] sm:$0xff]
    %v3085 = vld [vmem:[%s2960 + $0x3e0] sm:$0xff]
    %v3086 = vld [vmem:[%s2960 + $0x3e8] sm:$0xff]
    %v3087 = vld [vmem:[%s2960 + $0x3f0] sm:$0xff]
    %v3088 = vld [vmem:[%s2960 + $0x3f8] sm:$0xff]
    %s3089 = scalar_lea.vmem [#allocation10], 4
    %v3090 = vld [vmem:[%s3089] sm:$0x3]
    %v3092 = vlaneseq
    %v3093 = vshrl.u32 %v3092, 7
    %v3094 = vsub.s32 0, %v3093
    %v3095 = vrot.slane %v3090, %v3094
    %v3096 = vlaneseq
    %v3097 = vshrl.u32 %v3096, 7
    %v3098 = vsub.s32 1, %v3097
    %v3099 = vrot.slane %v3090, %v3098
    %v3230 = vunpack.c.l.b16 %v2961
    %v3231 = vunpack.c.h.b16 %v2961
    %v3232 = vunpack.c.l.b16 %v2962
    %v3233 = vunpack.c.h.b16 %v2962
    %v3234 = vunpack.c.l.b16 %v2963
    %v3235 = vunpack.c.h.b16 %v2963
    %v3236 = vunpack.c.l.b16 %v2964
    %v3237 = vunpack.c.h.b16 %v2964
    %v3238 = vunpack.c.l.b16 %v2965
    %v3239 = vunpack.c.h.b16 %v2965
    %v3240 = vunpack.c.l.b16 %v2966
    %v3241 = vunpack.c.h.b16 %v2966
    %v3242 = vunpack.c.l.b16 %v2967
    %v3243 = vunpack.c.h.b16 %v2967
    %v3244 = vunpack.c.l.b16 %v2968
    %v3245 = vunpack.c.h.b16 %v2968
    %v3246 = vunpack.c.l.b16 %v2969
    %v3247 = vunpack.c.h.b16 %v2969
    %v3248 = vunpack.c.l.b16 %v2970
    %v3249 = vunpack.c.h.b16 %v2970
    %v3250 = vunpack.c.l.b16 %v2971
    %v3251 = vunpack.c.h.b16 %v2971
    %v3252 = vunpack.c.l.b16 %v2972
    %v3253 = vunpack.c.h.b16 %v2972
    %v3254 = vunpack.c.l.b16 %v2973
    %v3255 = vunpack.c.h.b16 %v2973
    %v3256 = vunpack.c.l.b16 %v2974
    %v3257 = vunpack.c.h.b16 %v2974
    %v3258 = vunpack.c.l.b16 %v2975
    %v3259 = vunpack.c.h.b16 %v2975
    %v3260 = vunpack.c.l.b16 %v2976
    %v3261 = vunpack.c.h.b16 %v2976
    %v3262 = vunpack.c.l.b16 %v2977
    %v3263 = vunpack.c.h.b16 %v2977
    %v3264 = vunpack.c.l.b16 %v2978
    %v3265 = vunpack.c.h.b16 %v2978
    %v3266 = vunpack.c.l.b16 %v2979
    %v3267 = vunpack.c.h.b16 %v2979
    %v3268 = vunpack.c.l.b16 %v2980
    %v3269 = vunpack.c.h.b16 %v2980
    %v3270 = vunpack.c.l.b16 %v2981
    %v3271 = vunpack.c.h.b16 %v2981
    %v3272 = vunpack.c.l.b16 %v2982
    %v3273 = vunpack.c.h.b16 %v2982
    %v3274 = vunpack.c.l.b16 %v2983
    %v3275 = vunpack.c.h.b16 %v2983
    %v3276 = vunpack.c.l.b16 %v2984
    %v3277 = vunpack.c.h.b16 %v2984
    %v3278 = vunpack.c.l.b16 %v2985
    %v3279 = vunpack.c.h.b16 %v2985
    %v3280 = vunpack.c.l.b16 %v2986
    %v3281 = vunpack.c.h.b16 %v2986
    %v3282 = vunpack.c.l.b16 %v2987
    %v3283 = vunpack.c.h.b16 %v2987
    %v3284 = vunpack.c.l.b16 %v2988
    %v3285 = vunpack.c.h.b16 %v2988
    %v3286 = vunpack.c.l.b16 %v2989
    %v3287 = vunpack.c.h.b16 %v2989
    %v3288 = vunpack.c.l.b16 %v2990
    %v3289 = vunpack.c.h.b16 %v2990
    %v3290 = vunpack.c.l.b16 %v2991
    %v3291 = vunpack.c.h.b16 %v2991
    %v3292 = vunpack.c.l.b16 %v2992
    %v3293 = vunpack.c.h.b16 %v2992
    %v3294 = vunpack.c.l.b16 %v2993
    %v3295 = vunpack.c.h.b16 %v2993
    %v3296 = vunpack.c.l.b16 %v2994
    %v3297 = vunpack.c.h.b16 %v2994
    %v3298 = vunpack.c.l.b16 %v2995
    %v3299 = vunpack.c.h.b16 %v2995
    %v3300 = vunpack.c.l.b16 %v2996
    %v3301 = vunpack.c.h.b16 %v2996
    %v3302 = vunpack.c.l.b16 %v2997
    %v3303 = vunpack.c.h.b16 %v2997
    %v3304 = vunpack.c.l.b16 %v2998
    %v3305 = vunpack.c.h.b16 %v2998
    %v3306 = vunpack.c.l.b16 %v2999
    %v3307 = vunpack.c.h.b16 %v2999
    %v3308 = vunpack.c.l.b16 %v3000
    %v3309 = vunpack.c.h.b16 %v3000
    %v3310 = vunpack.c.l.b16 %v3001
    %v3311 = vunpack.c.h.b16 %v3001
    %v3312 = vunpack.c.l.b16 %v3002
    %v3313 = vunpack.c.h.b16 %v3002
    %v3314 = vunpack.c.l.b16 %v3003
    %v3315 = vunpack.c.h.b16 %v3003
    %v3316 = vunpack.c.l.b16 %v3004
    %v3317 = vunpack.c.h.b16 %v3004
    %v3318 = vunpack.c.l.b16 %v3005
    %v3319 = vunpack.c.h.b16 %v3005
    %v3320 = vunpack.c.l.b16 %v3006
    %v3321 = vunpack.c.h.b16 %v3006
    %v3322 = vunpack.c.l.b16 %v3007
    %v3323 = vunpack.c.h.b16 %v3007
    %v3324 = vunpack.c.l.b16 %v3008
    %v3325 = vunpack.c.h.b16 %v3008
    %v3326 = vunpack.c.l.b16 %v3009
    %v3327 = vunpack.c.h.b16 %v3009
    %v3328 = vunpack.c.l.b16 %v3010
    %v3329 = vunpack.c.h.b16 %v3010
    %v3330 = vunpack.c.l.b16 %v3011
    %v3331 = vunpack.c.h.b16 %v3011
    %v3332 = vunpack.c.l.b16 %v3012
    %v3333 = vunpack.c.h.b16 %v3012
    %v3334 = vunpack.c.l.b16 %v3013
    %v3335 = vunpack.c.h.b16 %v3013
    %v3336 = vunpack.c.l.b16 %v3014
    %v3337 = vunpack.c.h.b16 %v3014
    %v3338 = vunpack.c.l.b16 %v3015
    %v3339 = vunpack.c.h.b16 %v3015
    %v3340 = vunpack.c.l.b16 %v3016
    %v3341 = vunpack.c.h.b16 %v3016
    %v3342 = vunpack.c.l.b16 %v3017
    %v3343 = vunpack.c.h.b16 %v3017
    %v3344 = vunpack.c.l.b16 %v3018
    %v3345 = vunpack.c.h.b16 %v3018
    %v3346 = vunpack.c.l.b16 %v3019
    %v3347 = vunpack.c.h.b16 %v3019
    %v3348 = vunpack.c.l.b16 %v3020
    %v3349 = vunpack.c.h.b16 %v3020
    %v3350 = vunpack.c.l.b16 %v3021
    %v3351 = vunpack.c.h.b16 %v3021
    %v3352 = vunpack.c.l.b16 %v3022
    %v3353 = vunpack.c.h.b16 %v3022
    %v3354 = vunpack.c.l.b16 %v3023
    %v3355 = vunpack.c.h.b16 %v3023
    %v3356 = vunpack.c.l.b16 %v3024
    %v3357 = vunpack.c.h.b16 %v3024
    %v3358 = vunpack.c.l.b16 %v3025
    %v3359 = vunpack.c.h.b16 %v3025
    %v3360 = vunpack.c.l.b16 %v3026
    %v3361 = vunpack.c.h.b16 %v3026
    %v3362 = vunpack.c.l.b16 %v3027
    %v3363 = vunpack.c.h.b16 %v3027
    %v3364 = vunpack.c.l.b16 %v3028
    %v3365 = vunpack.c.h.b16 %v3028
    %v3366 = vunpack.c.l.b16 %v3029
    %v3367 = vunpack.c.h.b16 %v3029
    %v3368 = vunpack.c.l.b16 %v3030
    %v3369 = vunpack.c.h.b16 %v3030
    %v3370 = vunpack.c.l.b16 %v3031
    %v3371 = vunpack.c.h.b16 %v3031
    %v3372 = vunpack.c.l.b16 %v3032
    %v3373 = vunpack.c.h.b16 %v3032
    %v3374 = vunpack.c.l.b16 %v3033
    %v3375 = vunpack.c.h.b16 %v3033
    %v3376 = vunpack.c.l.b16 %v3034
    %v3377 = vunpack.c.h.b16 %v3034
    %v3378 = vunpack.c.l.b16 %v3035
    %v3379 = vunpack.c.h.b16 %v3035
    %v3380 = vunpack.c.l.b16 %v3036
    %v3381 = vunpack.c.h.b16 %v3036
    %v3382 = vunpack.c.l.b16 %v3037
    %v3383 = vunpack.c.h.b16 %v3037
    %v3384 = vunpack.c.l.b16 %v3038
    %v3385 = vunpack.c.h.b16 %v3038
    %v3386 = vunpack.c.l.b16 %v3039
    %v3387 = vunpack.c.h.b16 %v3039
    %v3388 = vunpack.c.l.b16 %v3040
    %v3389 = vunpack.c.h.b16 %v3040
    %v3390 = vunpack.c.l.b16 %v3041
    %v3391 = vunpack.c.h.b16 %v3041
    %v3392 = vunpack.c.l.b16 %v3042
    %v3393 = vunpack.c.h.b16 %v3042
    %v3394 = vunpack.c.l.b16 %v3043
    %v3395 = vunpack.c.h.b16 %v3043
    %v3396 = vunpack.c.l.b16 %v3044
    %v3397 = vunpack.c.h.b16 %v3044
    %v3398 = vunpack.c.l.b16 %v3045
    %v3399 = vunpack.c.h.b16 %v3045
    %v3400 = vunpack.c.l.b16 %v3046
    %v3401 = vunpack.c.h.b16 %v3046
    %v3402 = vunpack.c.l.b16 %v3047
    %v3403 = vunpack.c.h.b16 %v3047
    %v3404 = vunpack.c.l.b16 %v3048
    %v3405 = vunpack.c.h.b16 %v3048
    %v3406 = vunpack.c.l.b16 %v3049
    %v3407 = vunpack.c.h.b16 %v3049
    %v3408 = vunpack.c.l.b16 %v3050
    %v3409 = vunpack.c.h.b16 %v3050
    %v3410 = vunpack.c.l.b16 %v3051
    %v3411 = vunpack.c.h.b16 %v3051
    %v3412 = vunpack.c.l.b16 %v3052
    %v3413 = vunpack.c.h.b16 %v3052
    %v3414 = vunpack.c.l.b16 %v3053
    %v3415 = vunpack.c.h.b16 %v3053
    %v3416 = vunpack.c.l.b16 %v3054
    %v3417 = vunpack.c.h.b16 %v3054
    %v3418 = vunpack.c.l.b16 %v3055
    %v3419 = vunpack.c.h.b16 %v3055
    %v3420 = vunpack.c.l.b16 %v3056
    %v3421 = vunpack.c.h.b16 %v3056
    %v3422 = vunpack.c.l.b16 %v3057
    %v3423 = vunpack.c.h.b16 %v3057
    %v3424 = vunpack.c.l.b16 %v3058
    %v3425 = vunpack.c.h.b16 %v3058
    %v3426 = vunpack.c.l.b16 %v3059
    %v3427 = vunpack.c.h.b16 %v3059
    %v3428 = vunpack.c.l.b16 %v3060
    %v3429 = vunpack.c.h.b16 %v3060
    %v3430 = vunpack.c.l.b16 %v3061
    %v3431 = vunpack.c.h.b16 %v3061
    %v3432 = vunpack.c.l.b16 %v3062
    %v3433 = vunpack.c.h.b16 %v3062
    %v3434 = vunpack.c.l.b16 %v3063
    %v3435 = vunpack.c.h.b16 %v3063
    %v3436 = vunpack.c.l.b16 %v3064
    %v3437 = vunpack.c.h.b16 %v3064
    %v3438 = vunpack.c.l.b16 %v3065
    %v3439 = vunpack.c.h.b16 %v3065
    %v3440 = vunpack.c.l.b16 %v3066
    %v3441 = vunpack.c.h.b16 %v3066
    %v3442 = vunpack.c.l.b16 %v3067
    %v3443 = vunpack.c.h.b16 %v3067
    %v3444 = vunpack.c.l.b16 %v3068
    %v3445 = vunpack.c.h.b16 %v3068
    %v3446 = vunpack.c.l.b16 %v3069
    %v3447 = vunpack.c.h.b16 %v3069
    %v3448 = vunpack.c.l.b16 %v3070
    %v3449 = vunpack.c.h.b16 %v3070
    %v3450 = vunpack.c.l.b16 %v3071
    %v3451 = vunpack.c.h.b16 %v3071
    %v3452 = vunpack.c.l.b16 %v3072
    %v3453 = vunpack.c.h.b16 %v3072
    %v3454 = vunpack.c.l.b16 %v3073
    %v3455 = vunpack.c.h.b16 %v3073
    %v3456 = vunpack.c.l.b16 %v3074
    %v3457 = vunpack.c.h.b16 %v3074
    %v3458 = vunpack.c.l.b16 %v3075
    %v3459 = vunpack.c.h.b16 %v3075
    %v3460 = vunpack.c.l.b16 %v3076
    %v3461 = vunpack.c.h.b16 %v3076
    %v3462 = vunpack.c.l.b16 %v3077
    %v3463 = vunpack.c.h.b16 %v3077
    %v3464 = vunpack.c.l.b16 %v3078
    %v3465 = vunpack.c.h.b16 %v3078
    %v3466 = vunpack.c.l.b16 %v3079
    %v3467 = vunpack.c.h.b16 %v3079
    %v3468 = vunpack.c.l.b16 %v3080
    %v3469 = vunpack.c.h.b16 %v3080
    %v3470 = vunpack.c.l.b16 %v3081
    %v3471 = vunpack.c.h.b16 %v3081
    %v3472 = vunpack.c.l.b16 %v3082
    %v3473 = vunpack.c.h.b16 %v3082
    %v3474 = vunpack.c.l.b16 %v3083
    %v3475 = vunpack.c.h.b16 %v3083
    %v3476 = vunpack.c.l.b16 %v3084
    %v3477 = vunpack.c.h.b16 %v3084
    %v3478 = vunpack.c.l.b16 %v3085
    %v3479 = vunpack.c.h.b16 %v3085
    %v3480 = vunpack.c.l.b16 %v3086
    %v3481 = vunpack.c.h.b16 %v3086
    %v3482 = vunpack.c.l.b16 %v3087
    %v3483 = vunpack.c.h.b16 %v3087
    %v3484 = vunpack.c.l.b16 %v3088
    %v3485 = vunpack.c.h.b16 %v3088
    %v3486 = vpack.c.b16 %v3232, %v3230
    %v3487 = vpack.c.b16 %v3233, %v3231
    %v3488 = vpack.c.b16 %v3236, %v3234
    %v3489 = vpack.c.b16 %v3237, %v3235
    %v3490 = vpack.c.b16 %v3240, %v3238
    %v3491 = vpack.c.b16 %v3241, %v3239
    %v3492 = vpack.c.b16 %v3244, %v3242
    %v3493 = vpack.c.b16 %v3245, %v3243
    %v3494 = vpack.c.b16 %v3248, %v3246
    %v3495 = vpack.c.b16 %v3249, %v3247
    %v3496 = vpack.c.b16 %v3252, %v3250
    %v3497 = vpack.c.b16 %v3253, %v3251
    %v3498 = vpack.c.b16 %v3256, %v3254
    %v3499 = vpack.c.b16 %v3257, %v3255
    %v3500 = vpack.c.b16 %v3260, %v3258
    %v3501 = vpack.c.b16 %v3261, %v3259
    %v3502 = vpack.c.b16 %v3264, %v3262
    %v3503 = vpack.c.b16 %v3265, %v3263
    %v3504 = vpack.c.b16 %v3268, %v3266
    %v3505 = vpack.c.b16 %v3269, %v3267
    %v3506 = vpack.c.b16 %v3272, %v3270
    %v3507 = vpack.c.b16 %v3273, %v3271
    %v3508 = vpack.c.b16 %v3276, %v3274
    %v3509 = vpack.c.b16 %v3277, %v3275
    %v3510 = vpack.c.b16 %v3280, %v3278
    %v3511 = vpack.c.b16 %v3281, %v3279
    %v3512 = vpack.c.b16 %v3284, %v3282
    %v3513 = vpack.c.b16 %v3285, %v3283
    %v3514 = vpack.c.b16 %v3288, %v3286
    %v3515 = vpack.c.b16 %v3289, %v3287
    %v3516 = vpack.c.b16 %v3292, %v3290
    %v3517 = vpack.c.b16 %v3293, %v3291
    %v3518 = vpack.c.b16 %v3296, %v3294
    %v3519 = vpack.c.b16 %v3297, %v3295
    %v3520 = vpack.c.b16 %v3300, %v3298
    %v3521 = vpack.c.b16 %v3301, %v3299
    %v3522 = vpack.c.b16 %v3304, %v3302
    %v3523 = vpack.c.b16 %v3305, %v3303
    %v3524 = vpack.c.b16 %v3308, %v3306
    %v3525 = vpack.c.b16 %v3309, %v3307
    %v3526 = vpack.c.b16 %v3312, %v3310
    %v3527 = vpack.c.b16 %v3313, %v3311
    %v3528 = vpack.c.b16 %v3316, %v3314
    %v3529 = vpack.c.b16 %v3317, %v3315
    %v3530 = vpack.c.b16 %v3320, %v3318
    %v3531 = vpack.c.b16 %v3321, %v3319
    %v3532 = vpack.c.b16 %v3324, %v3322
    %v3533 = vpack.c.b16 %v3325, %v3323
    %v3534 = vpack.c.b16 %v3328, %v3326
    %v3535 = vpack.c.b16 %v3329, %v3327
    %v3536 = vpack.c.b16 %v3332, %v3330
    %v3537 = vpack.c.b16 %v3333, %v3331
    %v3538 = vpack.c.b16 %v3336, %v3334
    %v3539 = vpack.c.b16 %v3337, %v3335
    %v3540 = vpack.c.b16 %v3340, %v3338
    %v3541 = vpack.c.b16 %v3341, %v3339
    %v3542 = vpack.c.b16 %v3344, %v3342
    %v3543 = vpack.c.b16 %v3345, %v3343
    %v3544 = vpack.c.b16 %v3348, %v3346
    %v3545 = vpack.c.b16 %v3349, %v3347
    %v3546 = vpack.c.b16 %v3352, %v3350
    %v3547 = vpack.c.b16 %v3353, %v3351
    %v3548 = vpack.c.b16 %v3356, %v3354
    %v3549 = vpack.c.b16 %v3357, %v3355
    %v3550 = vpack.c.b16 %v3360, %v3358
    %v3551 = vpack.c.b16 %v3361, %v3359
    %v3552 = vpack.c.b16 %v3364, %v3362
    %v3553 = vpack.c.b16 %v3365, %v3363
    %v3554 = vpack.c.b16 %v3368, %v3366
    %v3555 = vpack.c.b16 %v3369, %v3367
    %v3556 = vpack.c.b16 %v3372, %v3370
    %v3557 = vpack.c.b16 %v3373, %v3371
    %v3558 = vpack.c.b16 %v3376, %v3374
    %v3559 = vpack.c.b16 %v3377, %v3375
    %v3560 = vpack.c.b16 %v3380, %v3378
    %v3561 = vpack.c.b16 %v3381, %v3379
    %v3562 = vpack.c.b16 %v3384, %v3382
    %v3563 = vpack.c.b16 %v3385, %v3383
    %v3564 = vpack.c.b16 %v3388, %v3386
    %v3565 = vpack.c.b16 %v3389, %v3387
    %v3566 = vpack.c.b16 %v3392, %v3390
    %v3567 = vpack.c.b16 %v3393, %v3391
    %v3568 = vpack.c.b16 %v3396, %v3394
    %v3569 = vpack.c.b16 %v3397, %v3395
    %v3570 = vpack.c.b16 %v3400, %v3398
    %v3571 = vpack.c.b16 %v3401, %v3399
    %v3572 = vpack.c.b16 %v3404, %v3402
    %v3573 = vpack.c.b16 %v3405, %v3403
    %v3574 = vpack.c.b16 %v3408, %v3406
    %v3575 = vpack.c.b16 %v3409, %v3407
    %v3576 = vpack.c.b16 %v3412, %v3410
    %v3577 = vpack.c.b16 %v3413, %v3411
    %v3578 = vpack.c.b16 %v3416, %v3414
    %v3579 = vpack.c.b16 %v3417, %v3415
    %v3580 = vpack.c.b16 %v3420, %v3418
    %v3581 = vpack.c.b16 %v3421, %v3419
    %v3582 = vpack.c.b16 %v3424, %v3422
    %v3583 = vpack.c.b16 %v3425, %v3423
    %v3584 = vpack.c.b16 %v3428, %v3426
    %v3585 = vpack.c.b16 %v3429, %v3427
    %v3586 = vpack.c.b16 %v3432, %v3430
    %v3587 = vpack.c.b16 %v3433, %v3431
    %v3588 = vpack.c.b16 %v3436, %v3434
    %v3589 = vpack.c.b16 %v3437, %v3435
    %v3590 = vpack.c.b16 %v3440, %v3438
    %v3591 = vpack.c.b16 %v3441, %v3439
    %v3592 = vpack.c.b16 %v3444, %v3442
    %v3593 = vpack.c.b16 %v3445, %v3443
    %v3594 = vpack.c.b16 %v3448, %v3446
    %v3595 = vpack.c.b16 %v3449, %v3447
    %v3596 = vpack.c.b16 %v3452, %v3450
    %v3597 = vpack.c.b16 %v3453, %v3451
    %v3598 = vpack.c.b16 %v3456, %v3454
    %v3599 = vpack.c.b16 %v3457, %v3455
    %v3600 = vpack.c.b16 %v3460, %v3458
    %v3601 = vpack.c.b16 %v3461, %v3459
    %v3602 = vpack.c.b16 %v3464, %v3462
    %v3603 = vpack.c.b16 %v3465, %v3463
    %v3604 = vpack.c.b16 %v3468, %v3466
    %v3605 = vpack.c.b16 %v3469, %v3467
    %v3606 = vpack.c.b16 %v3472, %v3470
    %v3607 = vpack.c.b16 %v3473, %v3471
    %v3608 = vpack.c.b16 %v3476, %v3474
    %v3609 = vpack.c.b16 %v3477, %v3475
    %v3610 = vpack.c.b16 %v3480, %v3478
    %v3611 = vpack.c.b16 %v3481, %v3479
    %v3612 = vpack.c.b16 %v3484, %v3482
    %v3613 = vpack.c.b16 %v3485, %v3483
    %3742 = vmatprep.subr.bf16.mxu0 %v3487
    %3743 = vmatpush1.bf16.msra.mxu0 %v3486
    %3744 = vmatprep.subr.bf16.mxu0 %v3489
    %3745 = vmatpush1.bf16.msra.mxu0 %v3488
    %3746 = vmatprep.subr.bf16.mxu0 %v3491
    %3747 = vmatpush1.bf16.msra.mxu0 %v3490
    %3748 = vmatprep.subr.bf16.mxu0 %v3493
    %3749 = vmatpush1.bf16.msra.mxu0 %v3492
    %3750 = vmatprep.subr.bf16.mxu0 %v3495
    %3751 = vmatpush1.bf16.msra.mxu0 %v3494
    %3752 = vmatprep.subr.bf16.mxu0 %v3497
    %3753 = vmatpush1.bf16.msra.mxu0 %v3496
    %3754 = vmatprep.subr.bf16.mxu0 %v3499
    %3755 = vmatpush1.bf16.msra.mxu0 %v3498
    %3756 = vmatprep.subr.bf16.mxu0 %v3501
    %3757 = vmatpush1.bf16.msra.mxu0 %v3500
    %3758 = vmatprep.subr.bf16.mxu0 %v3503
    %3759 = vmatpush1.bf16.msra.mxu0 %v3502
    %3760 = vmatprep.subr.bf16.mxu0 %v3505
    %3761 = vmatpush1.bf16.msra.mxu0 %v3504
    %3762 = vmatprep.subr.bf16.mxu0 %v3507
    %3763 = vmatpush1.bf16.msra.mxu0 %v3506
    %3764 = vmatprep.subr.bf16.mxu0 %v3509
    %3765 = vmatpush1.bf16.msra.mxu0 %v3508
    %3766 = vmatprep.subr.bf16.mxu0 %v3511
    %3767 = vmatpush1.bf16.msra.mxu0 %v3510
    %3768 = vmatprep.subr.bf16.mxu0 %v3513
    %3769 = vmatpush1.bf16.msra.mxu0 %v3512
    %3770 = vmatprep.subr.bf16.mxu0 %v3515
    %3771 = vmatpush1.bf16.msra.mxu0 %v3514
    %3772 = vmatprep.subr.bf16.mxu0 %v3517
    %3773 = vmatpush1.bf16.msra.mxu0 %v3516
    %3774 = vmatprep.mubr.bf16.mxu0 %v718
    %3775 = vmatmul.mubr.bf16.gmra.mrb[0].mxu0 %v717
    %v3776 = vpop.f32.mrb[0].mxu0
    %v3777 = vadd.f32 %v3095, %v3776
    %v3778 = vpop.f32.mrb[0].mxu0
    %v3779 = vadd.f32 %v3099, %v3778
    %v3780 = vpop.f32.mrb[0].mxu0
    %v3781 = vpop.f32.mrb[0].mxu0
    %3782 = vdwg.mxu0
    %3783 = vmatprep.subr.bf16.mxu0 %v3519
    %3784 = vmatpush1.bf16.msra.mxu0 %v3518
    %3785 = vmatprep.subr.bf16.mxu0 %v3521
    %3786 = vmatpush1.bf16.msra.mxu0 %v3520
    %3787 = vmatprep.subr.bf16.mxu0 %v3523
    %3788 = vmatpush1.bf16.msra.mxu0 %v3522
    %3789 = vmatprep.subr.bf16.mxu0 %v3525
    %3790 = vmatpush1.bf16.msra.mxu0 %v3524
    %3791 = vmatprep.subr.bf16.mxu0 %v3527
    %3792 = vmatpush1.bf16.msra.mxu0 %v3526
    %3793 = vmatprep.subr.bf16.mxu0 %v3529
    %3794 = vmatpush1.bf16.msra.mxu0 %v3528
    %3795 = vmatprep.subr.bf16.mxu0 %v3531
    %3796 = vmatpush1.bf16.msra.mxu0 %v3530
    %3797 = vmatprep.subr.bf16.mxu0 %v3533
    %3798 = vmatpush1.bf16.msra.mxu0 %v3532
    %3799 = vmatprep.subr.bf16.mxu0 %v3535
    %3800 = vmatpush1.bf16.msra.mxu0 %v3534
    %3801 = vmatprep.subr.bf16.mxu0 %v3537
    %3802 = vmatpush1.bf16.msra.mxu0 %v3536
    %3803 = vmatprep.subr.bf16.mxu0 %v3539
    %3804 = vmatpush1.bf16.msra.mxu0 %v3538
    %3805 = vmatprep.subr.bf16.mxu0 %v3541
    %3806 = vmatpush1.bf16.msra.mxu0 %v3540
    %3807 = vmatprep.subr.bf16.mxu0 %v3543
    %3808 = vmatpush1.bf16.msra.mxu0 %v3542
    %3809 = vmatprep.subr.bf16.mxu0 %v3545
    %3810 = vmatpush1.bf16.msra.mxu0 %v3544
    %3811 = vmatprep.subr.bf16.mxu0 %v3547
    %3812 = vmatpush1.bf16.msra.mxu0 %v3546
    %3813 = vmatprep.subr.bf16.mxu0 %v3549
    %3814 = vmatpush1.bf16.msra.mxu0 %v3548
    %3815 = vmatprep.mubr.bf16.mxu0 %v720
    %3816 = vmatmul.mubr.bf16.gmra.mrb[0].mxu0 %v719
    %v3817 = vpop.f32.mrb[0].mxu0
    %v3818 = vadd.f32 %v3777, %v3817
    %v3819 = vpop.f32.mrb[0].mxu0
    %v3820 = vadd.f32 %v3779, %v3819
    %v3821 = vpop.f32.mrb[0].mxu0
    %v3822 = vpop.f32.mrb[0].mxu0
    %3823 = vdwg.mxu0
    %3824 = vmatprep.subr.bf16.mxu0 %v3551
    %3825 = vmatpush1.bf16.msra.mxu0 %v3550
    %3826 = vmatprep.subr.bf16.mxu0 %v3553
    %3827 = vmatpush1.bf16.msra.mxu0 %v3552
    %3828 = vmatprep.subr.bf16.mxu0 %v3555
    %3829 = vmatpush1.bf16.msra.mxu0 %v3554
    %3830 = vmatprep.subr.bf16.mxu0 %v3557
    %3831 = vmatpush1.bf16.msra.mxu0 %v3556
    %3832 = vmatprep.subr.bf16.mxu0 %v3559
    %3833 = vmatpush1.bf16.msra.mxu0 %v3558
    %3834 = vmatprep.subr.bf16.mxu0 %v3561
    %3835 = vmatpush1.bf16.msra.mxu0 %v3560
    %3836 = vmatprep.subr.bf16.mxu0 %v3563
    %3837 = vmatpush1.bf16.msra.mxu0 %v3562
    %3838 = vmatprep.subr.bf16.mxu0 %v3565
    %3839 = vmatpush1.bf16.msra.mxu0 %v3564
    %3840 = vmatprep.subr.bf16.mxu0 %v3567
    %3841 = vmatpush1.bf16.msra.mxu0 %v3566
    %3842 = vmatprep.subr.bf16.mxu0 %v3569
    %3843 = vmatpush1.bf16.msra.mxu0 %v3568
    %3844 = vmatprep.subr.bf16.mxu0 %v3571
    %3845 = vmatpush1.bf16.msra.mxu0 %v3570
    %3846 = vmatprep.subr.bf16.mxu0 %v3573
    %3847 = vmatpush1.bf16.msra.mxu0 %v3572
    %3848 = vmatprep.subr.bf16.mxu0 %v3575
    %3849 = vmatpush1.bf16.msra.mxu0 %v3574
    %3850 = vmatprep.subr.bf16.mxu0 %v3577
    %3851 = vmatpush1.bf16.msra.mxu0 %v3576
    %3852 = vmatprep.subr.bf16.mxu0 %v3579
    %3853 = vmatpush1.bf16.msra.mxu0 %v3578
    %3854 = vmatprep.subr.bf16.mxu0 %v3581
    %3855 = vmatpush1.bf16.msra.mxu0 %v3580
    %3856 = vmatprep.mubr.bf16.mxu0 %v722
    %3857 = vmatmul.mubr.bf16.gmra.mrb[0].mxu0 %v721
    %v3858 = vpop.f32.mrb[0].mxu0
    %v3859 = vadd.f32 %v3818, %v3858
    %v3860 = vpop.f32.mrb[0].mxu0
    %v3861 = vadd.f32 %v3820, %v3860
    %v3862 = vpop.f32.mrb[0].mxu0
    %v3863 = vpop.f32.mrb[0].mxu0
    %3864 = vdwg.mxu0
    %3865 = vmatprep.subr.bf16.mxu0 %v3583
    %3866 = vmatpush1.bf16.msra.mxu0 %v3582
    %3867 = vmatprep.subr.bf16.mxu0 %v3585
    %3868 = vmatpush1.bf16.msra.mxu0 %v3584
    %3869 = vmatprep.subr.bf16.mxu0 %v3587
    %3870 = vmatpush1.bf16.msra.mxu0 %v3586
    %3871 = vmatprep.subr.bf16.mxu0 %v3589
    %3872 = vmatpush1.bf16.msra.mxu0 %v3588
    %3873 = vmatprep.subr.bf16.mxu0 %v3591
    %3874 = vmatpush1.bf16.msra.mxu0 %v3590
    %3875 = vmatprep.subr.bf16.mxu0 %v3593
    %3876 = vmatpush1.bf16.msra.mxu0 %v3592
    %3877 = vmatprep.subr.bf16.mxu0 %v3595
    %3878 = vmatpush1.bf16.msra.mxu0 %v3594
    %3879 = vmatprep.subr.bf16.mxu0 %v3597
    %3880 = vmatpush1.bf16.msra.mxu0 %v3596
    %3881 = vmatprep.subr.bf16.mxu0 %v3599
    %3882 = vmatpush1.bf16.msra.mxu0 %v3598
    %3883 = vmatprep.subr.bf16.mxu0 %v3601
    %3884 = vmatpush1.bf16.msra.mxu0 %v3600
    %3885 = vmatprep.subr.bf16.mxu0 %v3603
    %3886 = vmatpush1.bf16.msra.mxu0 %v3602
    %3887 = vmatprep.subr.bf16.mxu0 %v3605
    %3888 = vmatpush1.bf16.msra.mxu0 %v3604
    %3889 = vmatprep.subr.bf16.mxu0 %v3607
    %3890 = vmatpush1.bf16.msra.mxu0 %v3606
    %3891 = vmatprep.subr.bf16.mxu0 %v3609
    %3892 = vmatpush1.bf16.msra.mxu0 %v3608
    %3893 = vmatprep.subr.bf16.mxu0 %v3611
    %3894 = vmatpush1.bf16.msra.mxu0 %v3610
    %3895 = vmatprep.subr.bf16.mxu0 %v3613
    %3896 = vmatpush1.bf16.msra.mxu0 %v3612
    %3897 = vmatprep.mubr.bf16.mxu0 %v724
    %3898 = vmatmul.mubr.bf16.gmra.mrb[0].mxu0 %v723
    %v3899 = vpop.f32.mrb[0].mxu0
    %v3900 = vadd.f32 %v3859, %v3899
    %v3901 = vpop.f32.mrb[0].mxu0
    %v3902 = vadd.f32 %v3861, %v3901
    %v3903 = vpop.f32.mrb[0].mxu0
    %v3904 = vpop.f32.mrb[0].mxu0
    %3905 = vdwg.mxu0
    %v3906 = vmax.f32 %v3900, 0.0
    %v3907 = vmax.f32 %v3902, 0.0
    %v3908 = vpack.c.bf16 %v3906, %v3906
    %v3909 = vpack.c.bf16 %v3907, %v3907
    %s3910 = scalar_lea.vmem [#allocation11], 256
    %v3911 = vld [vmem:[%s3910] sm:$0xf]
    %v3912 = vld [vmem:[%s3910 + $0x4] sm:$0xf]
    %v3913 = vld [vmem:[%s3910 + $0x8] sm:$0xf]
    %v3914 = vld [vmem:[%s3910 + $0xc] sm:$0xf]
    %v3915 = vld [vmem:[%s3910 + $0x10] sm:$0xf]
    %v3916 = vld [vmem:[%s3910 + $0x14] sm:$0xf]
    %v3917 = vld [vmem:[%s3910 + $0x18] sm:$0xf]
    %v3918 = vld [vmem:[%s3910 + $0x1c] sm:$0xf]
    %v3919 = vld [vmem:[%s3910 + $0x20] sm:$0xf]
    %v3920 = vld [vmem:[%s3910 + $0x24] sm:$0xf]
    %v3921 = vld [vmem:[%s3910 + $0x28] sm:$0xf]
    %v3922 = vld [vmem:[%s3910 + $0x2c] sm:$0xf]
    %v3923 = vld [vmem:[%s3910 + $0x30] sm:$0xf]
    %v3924 = vld [vmem:[%s3910 + $0x34] sm:$0xf]
    %v3925 = vld [vmem:[%s3910 + $0x38] sm:$0xf]
    %v3926 = vld [vmem:[%s3910 + $0x3c] sm:$0xf]
    %v3927 = vld [vmem:[%s3910 + $0x40] sm:$0xf]
    %v3928 = vld [vmem:[%s3910 + $0x44] sm:$0xf]
    %v3929 = vld [vmem:[%s3910 + $0x48] sm:$0xf]
    %v3930 = vld [vmem:[%s3910 + $0x4c] sm:$0xf]
    %v3931 = vld [vmem:[%s3910 + $0x50] sm:$0xf]
    %v3932 = vld [vmem:[%s3910 + $0x54] sm:$0xf]
    %v3933 = vld [vmem:[%s3910 + $0x58] sm:$0xf]
    %v3934 = vld [vmem:[%s3910 + $0x5c] sm:$0xf]
    %v3935 = vld [vmem:[%s3910 + $0x60] sm:$0xf]
    %v3936 = vld [vmem:[%s3910 + $0x64] sm:$0xf]
    %v3937 = vld [vmem:[%s3910 + $0x68] sm:$0xf]
    %v3938 = vld [vmem:[%s3910 + $0x6c] sm:$0xf]
    %v3939 = vld [vmem:[%s3910 + $0x70] sm:$0xf]
    %v3940 = vld [vmem:[%s3910 + $0x74] sm:$0xf]
    %v3941 = vld [vmem:[%s3910 + $0x78] sm:$0xf]
    %v3942 = vld [vmem:[%s3910 + $0x7c] sm:$0xf]
    %v3975 = vunpack.c.l.b16 %v3911
    %v3976 = vunpack.c.l.b16 %v3912
    %v3977 = vunpack.c.l.b16 %v3913
    %v3978 = vunpack.c.l.b16 %v3914
    %v3979 = vunpack.c.l.b16 %v3915
    %v3980 = vunpack.c.l.b16 %v3916
    %v3981 = vunpack.c.l.b16 %v3917
    %v3982 = vunpack.c.l.b16 %v3918
    %v3983 = vunpack.c.l.b16 %v3919
    %v3984 = vunpack.c.l.b16 %v3920
    %v3985 = vunpack.c.l.b16 %v3921
    %v3986 = vunpack.c.l.b16 %v3922
    %v3987 = vunpack.c.l.b16 %v3923
    %v3988 = vunpack.c.l.b16 %v3924
    %v3989 = vunpack.c.l.b16 %v3925
    %v3990 = vunpack.c.l.b16 %v3926
    %v3991 = vunpack.c.l.b16 %v3927
    %v3992 = vunpack.c.l.b16 %v3928
    %v3993 = vunpack.c.l.b16 %v3929
    %v3994 = vunpack.c.l.b16 %v3930
    %v3995 = vunpack.c.l.b16 %v3931
    %v3996 = vunpack.c.l.b16 %v3932
    %v3997 = vunpack.c.l.b16 %v3933
    %v3998 = vunpack.c.l.b16 %v3934
    %v3999 = vunpack.c.l.b16 %v3935
    %v4000 = vunpack.c.l.b16 %v3936
    %v4001 = vunpack.c.l.b16 %v3937
    %v4002 = vunpack.c.l.b16 %v3938
    %v4003 = vunpack.c.l.b16 %v3939
    %v4004 = vunpack.c.l.b16 %v3940
    %v4005 = vunpack.c.l.b16 %v3941
    %v4006 = vunpack.c.l.b16 %v3942
    %v4007 = vpack.c.b16 %v3976, %v3975
    %v4008 = vpack.c.b16 %v3978, %v3977
    %v4009 = vpack.c.b16 %v3980, %v3979
    %v4010 = vpack.c.b16 %v3982, %v3981
    %v4011 = vpack.c.b16 %v3984, %v3983
    %v4012 = vpack.c.b16 %v3986, %v3985
    %v4013 = vpack.c.b16 %v3988, %v3987
    %v4014 = vpack.c.b16 %v3990, %v3989
    %v4015 = vpack.c.b16 %v3992, %v3991
    %v4016 = vpack.c.b16 %v3994, %v3993
    %v4017 = vpack.c.b16 %v3996, %v3995
    %v4018 = vpack.c.b16 %v3998, %v3997
    %v4019 = vpack.c.b16 %v4000, %v3999
    %v4020 = vpack.c.b16 %v4002, %v4001
    %v4021 = vpack.c.b16 %v4004, %v4003
    %v4022 = vpack.c.b16 %v4006, %v4005
    %4039 = vmatprep.subr.bf16.mxu0 0
    %4040 = vmatpush1.bf16.msra.mxu0 %v4007
    %4041 = vmatprep.subr.bf16.mxu0 0
    %4042 = vmatpush1.bf16.msra.mxu0 %v4008
    %4043 = vmatprep.subr.bf16.mxu0 0
    %4044 = vmatpush1.bf16.msra.mxu0 %v4009
    %4045 = vmatprep.subr.bf16.mxu0 0
    %4046 = vmatpush1.bf16.msra.mxu0 %v4010
    %4047 = vmatprep.subr.bf16.mxu0 0
    %4048 = vmatpush1.bf16.msra.mxu0 %v4011
    %4049 = vmatprep.subr.bf16.mxu0 0
    %4050 = vmatpush1.bf16.msra.mxu0 %v4012
    %4051 = vmatprep.subr.bf16.mxu0 0
    %4052 = vmatpush1.bf16.msra.mxu0 %v4013
    %4053 = vmatprep.subr.bf16.mxu0 0
    %4054 = vmatpush1.bf16.msra.mxu0 %v4014
    %4055 = vmatprep.subr.bf16.mxu0 0
    %4056 = vmatpush1.bf16.msra.mxu0 %v4015
    %4057 = vmatprep.subr.bf16.mxu0 0
    %4058 = vmatpush1.bf16.msra.mxu0 %v4016
    %4059 = vmatprep.subr.bf16.mxu0 0
    %4060 = vmatpush1.bf16.msra.mxu0 %v4017
    %4061 = vmatprep.subr.bf16.mxu0 0
    %4062 = vmatpush1.bf16.msra.mxu0 %v4018
    %4063 = vmatprep.subr.bf16.mxu0 0
    %4064 = vmatpush1.bf16.msra.mxu0 %v4019
    %4065 = vmatprep.subr.bf16.mxu0 0
    %4066 = vmatpush1.bf16.msra.mxu0 %v4020
    %4067 = vmatprep.subr.bf16.mxu0 0
    %4068 = vmatpush1.bf16.msra.mxu0 %v4021
    %4069 = vmatprep.subr.bf16.mxu0 0
    %4070 = vmatpush1.bf16.msra.mxu0 %v4022
    %4071 = vmatprep.mubr.bf16.mxu0 %v3909
    %4072 = vmatmul.mubr.bf16.gmra.mrb[0].mxu0 %v3908
    %v4073 = vpop.f32.mrb[0].mxu0
    %v4074 = vadd.f32 0.0, %v4073
    %v4075 = vpop.f32.mrb[0].mxu0
    %v4076 = vpop.f32.mrb[0].mxu0
    %v4077 = vpop.f32.mrb[0].mxu0
    %4078 = vdwg.mxu0
    %v4079 = vadd.f32 %v2955, %v4074
    %s4080 = scalar_lea.vmem [#allocation8], 3072
    %v4081 = vld [vmem:[%s4080] sm:$0xff]
    %v4082 = vld [vmem:[%s4080 + $0x8] sm:$0xff]
    %v4083 = vld [vmem:[%s4080 + $0x10] sm:$0xff]
    %v4084 = vld [vmem:[%s4080 + $0x18] sm:$0xff]
    %v4085 = vld [vmem:[%s4080 + $0x20] sm:$0xff]
    %v4086 = vld [vmem:[%s4080 + $0x28] sm:$0xff]
    %v4087 = vld [vmem:[%s4080 + $0x30] sm:$0xff]
    %v4088 = vld [vmem:[%s4080 + $0x38] sm:$0xff]
    %v4089 = vld [vmem:[%s4080 + $0x40] sm:$0xff]
    %v4090 = vld [vmem:[%s4080 + $0x48] sm:$0xff]
    %v4091 = vld [vmem:[%s4080 + $0x50] sm:$0xff]
    %v4092 = vld [vmem:[%s4080 + $0x58] sm:$0xff]
    %v4093 = vld [vmem:[%s4080 + $0x60] sm:$0xff]
    %v4094 = vld [vmem:[%s4080 + $0x68] sm:$0xff]
    %v4095 = vld [vmem:[%s4080 + $0x70] sm:$0xff]
    %v4096 = vld [vmem:[%s4080 + $0x78] sm:$0xff]
    %v4097 = vld [vmem:[%s4080 + $0x80] sm:$0xff]
    %v4098 = vld [vmem:[%s4080 + $0x88] sm:$0xff]
    %v4099 = vld [vmem:[%s4080 + $0x90] sm:$0xff]
    %v4100 = vld [vmem:[%s4080 + $0x98] sm:$0xff]
    %v4101 = vld [vmem:[%s4080 + $0xa0] sm:$0xff]
    %v4102 = vld [vmem:[%s4080 + $0xa8] sm:$0xff]
    %v4103 = vld [vmem:[%s4080 + $0xb0] sm:$0xff]
    %v4104 = vld [vmem:[%s4080 + $0xb8] sm:$0xff]
    %v4105 = vld [vmem:[%s4080 + $0xc0] sm:$0xff]
    %v4106 = vld [vmem:[%s4080 + $0xc8] sm:$0xff]
    %v4107 = vld [vmem:[%s4080 + $0xd0] sm:$0xff]
    %v4108 = vld [vmem:[%s4080 + $0xd8] sm:$0xff]
    %v4109 = vld [vmem:[%s4080 + $0xe0] sm:$0xff]
    %v4110 = vld [vmem:[%s4080 + $0xe8] sm:$0xff]
    %v4111 = vld [vmem:[%s4080 + $0xf0] sm:$0xff]
    %v4112 = vld [vmem:[%s4080 + $0xf8] sm:$0xff]
    %v4113 = vld [vmem:[%s4080 + $0x100] sm:$0xff]
    %v4114 = vld [vmem:[%s4080 + $0x108] sm:$0xff]
    %v4115 = vld [vmem:[%s4080 + $0x110] sm:$0xff]
    %v4116 = vld [vmem:[%s4080 + $0x118] sm:$0xff]
    %v4117 = vld [vmem:[%s4080 + $0x120] sm:$0xff]
    %v4118 = vld [vmem:[%s4080 + $0x128] sm:$0xff]
    %v4119 = vld [vmem:[%s4080 + $0x130] sm:$0xff]
    %v4120 = vld [vmem:[%s4080 + $0x138] sm:$0xff]
    %v4121 = vld [vmem:[%s4080 + $0x140] sm:$0xff]
    %v4122 = vld [vmem:[%s4080 + $0x148] sm:$0xff]
    %v4123 = vld [vmem:[%s4080 + $0x150] sm:$0xff]
    %v4124 = vld [vmem:[%s4080 + $0x158] sm:$0xff]
    %v4125 = vld [vmem:[%s4080 + $0x160] sm:$0xff]
    %v4126 = vld [vmem:[%s4080 + $0x168] sm:$0xff]
    %v4127 = vld [vmem:[%s4080 + $0x170] sm:$0xff]
    %v4128 = vld [vmem:[%s4080 + $0x178] sm:$0xff]
    %v4129 = vld [vmem:[%s4080 + $0x180] sm:$0xff]
    %v4130 = vld [vmem:[%s4080 + $0x188] sm:$0xff]
    %v4131 = vld [vmem:[%s4080 + $0x190] sm:$0xff]
    %v4132 = vld [vmem:[%s4080 + $0x198] sm:$0xff]
    %v4133 = vld [vmem:[%s4080 + $0x1a0] sm:$0xff]
    %v4134 = vld [vmem:[%s4080 + $0x1a8] sm:$0xff]
    %v4135 = vld [vmem:[%s4080 + $0x1b0] sm:$0xff]
    %v4136 = vld [vmem:[%s4080 + $0x1b8] sm:$0xff]
    %v4137 = vld [vmem:[%s4080 + $0x1c0] sm:$0xff]
    %v4138 = vld [vmem:[%s4080 + $0x1c8] sm:$0xff]
    %v4139 = vld [vmem:[%s4080 + $0x1d0] sm:$0xff]
    %v4140 = vld [vmem:[%s4080 + $0x1d8] sm:$0xff]
    %v4141 = vld [vmem:[%s4080 + $0x1e0] sm:$0xff]
    %v4142 = vld [vmem:[%s4080 + $0x1e8] sm:$0xff]
    %v4143 = vld [vmem:[%s4080 + $0x1f0] sm:$0xff]
    %v4144 = vld [vmem:[%s4080 + $0x1f8] sm:$0xff]
    %v4145 = vld [vmem:[%s4080 + $0x200] sm:$0xff]
    %v4146 = vld [vmem:[%s4080 + $0x208] sm:$0xff]
    %v4147 = vld [vmem:[%s4080 + $0x210] sm:$0xff]
    %v4148 = vld [vmem:[%s4080 + $0x218] sm:$0xff]
    %v4149 = vld [vmem:[%s4080 + $0x220] sm:$0xff]
    %v4150 = vld [vmem:[%s4080 + $0x228] sm:$0xff]
    %v4151 = vld [vmem:[%s4080 + $0x230] sm:$0xff]
    %v4152 = vld [vmem:[%s4080 + $0x238] sm:$0xff]
    %v4153 = vld [vmem:[%s4080 + $0x240] sm:$0xff]
    %v4154 = vld [vmem:[%s4080 + $0x248] sm:$0xff]
    %v4155 = vld [vmem:[%s4080 + $0x250] sm:$0xff]
    %v4156 = vld [vmem:[%s4080 + $0x258] sm:$0xff]
    %v4157 = vld [vmem:[%s4080 + $0x260] sm:$0xff]
    %v4158 = vld [vmem:[%s4080 + $0x268] sm:$0xff]
    %v4159 = vld [vmem:[%s4080 + $0x270] sm:$0xff]
    %v4160 = vld [vmem:[%s4080 + $0x278] sm:$0xff]
    %v4161 = vld [vmem:[%s4080 + $0x280] sm:$0xff]
    %v4162 = vld [vmem:[%s4080 + $0x288] sm:$0xff]
    %v4163 = vld [vmem:[%s4080 + $0x290] sm:$0xff]
    %v4164 = vld [vmem:[%s4080 + $0x298] sm:$0xff]
    %v4165 = vld [vmem:[%s4080 + $0x2a0] sm:$0xff]
    %v4166 = vld [vmem:[%s4080 + $0x2a8] sm:$0xff]
    %v4167 = vld [vmem:[%s4080 + $0x2b0] sm:$0xff]
    %v4168 = vld [vmem:[%s4080 + $0x2b8] sm:$0xff]
    %v4169 = vld [vmem:[%s4080 + $0x2c0] sm:$0xff]
    %v4170 = vld [vmem:[%s4080 + $0x2c8] sm:$0xff]
    %v4171 = vld [vmem:[%s4080 + $0x2d0] sm:$0xff]
    %v4172 = vld [vmem:[%s4080 + $0x2d8] sm:$0xff]
    %v4173 = vld [vmem:[%s4080 + $0x2e0] sm:$0xff]
    %v4174 = vld [vmem:[%s4080 + $0x2e8] sm:$0xff]
    %v4175 = vld [vmem:[%s4080 + $0x2f0] sm:$0xff]
    %v4176 = vld [vmem:[%s4080 + $0x2f8] sm:$0xff]
    %v4177 = vld [vmem:[%s4080 + $0x300] sm:$0xff]
    %v4178 = vld [vmem:[%s4080 + $0x308] sm:$0xff]
    %v4179 = vld [vmem:[%s4080 + $0x310] sm:$0xff]
    %v4180 = vld [vmem:[%s4080 + $0x318] sm:$0xff]
    %v4181 = vld [vmem:[%s4080 + $0x320] sm:$0xff]
    %v4182 = vld [vmem:[%s4080 + $0x328] sm:$0xff]
    %v4183 = vld [vmem:[%s4080 + $0x330] sm:$0xff]
    %v4184 = vld [vmem:[%s4080 + $0x338] sm:$0xff]
    %v4185 = vld [vmem:[%s4080 + $0x340] sm:$0xff]
    %v4186 = vld [vmem:[%s4080 + $0x348] sm:$0xff]
    %v4187 = vld [vmem:[%s4080 + $0x350] sm:$0xff]
    %v4188 = vld [vmem:[%s4080 + $0x358] sm:$0xff]
    %v4189 = vld [vmem:[%s4080 + $0x360] sm:$0xff]
    %v4190 = vld [vmem:[%s4080 + $0x368] sm:$0xff]
    %v4191 = vld [vmem:[%s4080 + $0x370] sm:$0xff]
    %v4192 = vld [vmem:[%s4080 + $0x378] sm:$0xff]
    %v4193 = vld [vmem:[%s4080 + $0x380] sm:$0xff]
    %v4194 = vld [vmem:[%s4080 + $0x388] sm:$0xff]
    %v4195 = vld [vmem:[%s4080 + $0x390] sm:$0xff]
    %v4196 = vld [vmem:[%s4080 + $0x398] sm:$0xff]
    %v4197 = vld [vmem:[%s4080 + $0x3a0] sm:$0xff]
    %v4198 = vld [vmem:[%s4080 + $0x3a8] sm:$0xff]
    %v4199 = vld [vmem:[%s4080 + $0x3b0] sm:$0xff]
    %v4200 = vld [vmem:[%s4080 + $0x3b8] sm:$0xff]
    %v4201 = vld [vmem:[%s4080 + $0x3c0] sm:$0xff]
    %v4202 = vld [vmem:[%s4080 + $0x3c8] sm:$0xff]
    %v4203 = vld [vmem:[%s4080 + $0x3d0] sm:$0xff]
    %v4204 = vld [vmem:[%s4080 + $0x3d8] sm:$0xff]
    %v4205 = vld [vmem:[%s4080 + $0x3e0] sm:$0xff]
    %v4206 = vld [vmem:[%s4080 + $0x3e8] sm:$0xff]
    %v4207 = vld [vmem:[%s4080 + $0x3f0] sm:$0xff]
    %v4208 = vld [vmem:[%s4080 + $0x3f8] sm:$0xff]
    %s4209 = scalar_lea.vmem [#allocation10], 6
    %v4210 = vld [vmem:[%s4209] sm:$0x3]
    %v4212 = vlaneseq
    %v4213 = vshrl.u32 %v4212, 7
    %v4214 = vsub.s32 0, %v4213
    %v4215 = vrot.slane %v4210, %v4214
    %v4216 = vlaneseq
    %v4217 = vshrl.u32 %v4216, 7
    %v4218 = vsub.s32 1, %v4217
    %v4219 = vrot.slane %v4210, %v4218
    %v4350 = vunpack.c.l.b16 %v4081
    %v4351 = vunpack.c.h.b16 %v4081
    %v4352 = vunpack.c.l.b16 %v4082
    %v4353 = vunpack.c.h.b16 %v4082
    %v4354 = vunpack.c.l.b16 %v4083
    %v4355 = vunpack.c.h.b16 %v4083
    %v4356 = vunpack.c.l.b16 %v4084
    %v4357 = vunpack.c.h.b16 %v4084
    %v4358 = vunpack.c.l.b16 %v4085
    %v4359 = vunpack.c.h.b16 %v4085
    %v4360 = vunpack.c.l.b16 %v4086
    %v4361 = vunpack.c.h.b16 %v4086
    %v4362 = vunpack.c.l.b16 %v4087
    %v4363 = vunpack.c.h.b16 %v4087
    %v4364 = vunpack.c.l.b16 %v4088
    %v4365 = vunpack.c.h.b16 %v4088
    %v4366 = vunpack.c.l.b16 %v4089
    %v4367 = vunpack.c.h.b16 %v4089
    %v4368 = vunpack.c.l.b16 %v4090
    %v4369 = vunpack.c.h.b16 %v4090
    %v4370 = vunpack.c.l.b16 %v4091
    %v4371 = vunpack.c.h.b16 %v4091
    %v4372 = vunpack.c.l.b16 %v4092
    %v4373 = vunpack.c.h.b16 %v4092
    %v4374 = vunpack.c.l.b16 %v4093
    %v4375 = vunpack.c.h.b16 %v4093
    %v4376 = vunpack.c.l.b16 %v4094
    %v4377 = vunpack.c.h.b16 %v4094
    %v4378 = vunpack.c.l.b16 %v4095
    %v4379 = vunpack.c.h.b16 %v4095
    %v4380 = vunpack.c.l.b16 %v4096
    %v4381 = vunpack.c.h.b16 %v4096
    %v4382 = vunpack.c.l.b16 %v4097
    %v4383 = vunpack.c.h.b16 %v4097
    %v4384 = vunpack.c.l.b16 %v4098
    %v4385 = vunpack.c.h.b16 %v4098
    %v4386 = vunpack.c.l.b16 %v4099
    %v4387 = vunpack.c.h.b16 %v4099
    %v4388 = vunpack.c.l.b16 %v4100
    %v4389 = vunpack.c.h.b16 %v4100
    %v4390 = vunpack.c.l.b16 %v4101
    %v4391 = vunpack.c.h.b16 %v4101
    %v4392 = vunpack.c.l.b16 %v4102
    %v4393 = vunpack.c.h.b16 %v4102
    %v4394 = vunpack.c.l.b16 %v4103
    %v4395 = vunpack.c.h.b16 %v4103
    %v4396 = vunpack.c.l.b16 %v4104
    %v4397 = vunpack.c.h.b16 %v4104
    %v4398 = vunpack.c.l.b16 %v4105
    %v4399 = vunpack.c.h.b16 %v4105
    %v4400 = vunpack.c.l.b16 %v4106
    %v4401 = vunpack.c.h.b16 %v4106
    %v4402 = vunpack.c.l.b16 %v4107
    %v4403 = vunpack.c.h.b16 %v4107
    %v4404 = vunpack.c.l.b16 %v4108
    %v4405 = vunpack.c.h.b16 %v4108
    %v4406 = vunpack.c.l.b16 %v4109
    %v4407 = vunpack.c.h.b16 %v4109
    %v4408 = vunpack.c.l.b16 %v4110
    %v4409 = vunpack.c.h.b16 %v4110
    %v4410 = vunpack.c.l.b16 %v4111
    %v4411 = vunpack.c.h.b16 %v4111
    %v4412 = vunpack.c.l.b16 %v4112
    %v4413 = vunpack.c.h.b16 %v4112
    %v4414 = vunpack.c.l.b16 %v4113
    %v4415 = vunpack.c.h.b16 %v4113
    %v4416 = vunpack.c.l.b16 %v4114
    %v4417 = vunpack.c.h.b16 %v4114
    %v4418 = vunpack.c.l.b16 %v4115
    %v4419 = vunpack.c.h.b16 %v4115
    %v4420 = vunpack.c.l.b16 %v4116
    %v4421 = vunpack.c.h.b16 %v4116
    %v4422 = vunpack.c.l.b16 %v4117
    %v4423 = vunpack.c.h.b16 %v4117
    %v4424 = vunpack.c.l.b16 %v4118
    %v4425 = vunpack.c.h.b16 %v4118
    %v4426 = vunpack.c.l.b16 %v4119
    %v4427 = vunpack.c.h.b16 %v4119
    %v4428 = vunpack.c.l.b16 %v4120
    %v4429 = vunpack.c.h.b16 %v4120
    %v4430 = vunpack.c.l.b16 %v4121
    %v4431 = vunpack.c.h.b16 %v4121
    %v4432 = vunpack.c.l.b16 %v4122
    %v4433 = vunpack.c.h.b16 %v4122
    %v4434 = vunpack.c.l.b16 %v4123
    %v4435 = vunpack.c.h.b16 %v4123
    %v4436 = vunpack.c.l.b16 %v4124
    %v4437 = vunpack.c.h.b16 %v4124
    %v4438 = vunpack.c.l.b16 %v4125
    %v4439 = vunpack.c.h.b16 %v4125
    %v4440 = vunpack.c.l.b16 %v4126
    %v4441 = vunpack.c.h.b16 %v4126
    %v4442 = vunpack.c.l.b16 %v4127
    %v4443 = vunpack.c.h.b16 %v4127
    %v4444 = vunpack.c.l.b16 %v4128
    %v4445 = vunpack.c.h.b16 %v4128
    %v4446 = vunpack.c.l.b16 %v4129
    %v4447 = vunpack.c.h.b16 %v4129
    %v4448 = vunpack.c.l.b16 %v4130
    %v4449 = vunpack.c.h.b16 %v4130
    %v4450 = vunpack.c.l.b16 %v4131
    %v4451 = vunpack.c.h.b16 %v4131
    %v4452 = vunpack.c.l.b16 %v4132
    %v4453 = vunpack.c.h.b16 %v4132
    %v4454 = vunpack.c.l.b16 %v4133
    %v4455 = vunpack.c.h.b16 %v4133
    %v4456 = vunpack.c.l.b16 %v4134
    %v4457 = vunpack.c.h.b16 %v4134
    %v4458 = vunpack.c.l.b16 %v4135
    %v4459 = vunpack.c.h.b16 %v4135
    %v4460 = vunpack.c.l.b16 %v4136
    %v4461 = vunpack.c.h.b16 %v4136
    %v4462 = vunpack.c.l.b16 %v4137
    %v4463 = vunpack.c.h.b16 %v4137
    %v4464 = vunpack.c.l.b16 %v4138
    %v4465 = vunpack.c.h.b16 %v4138
    %v4466 = vunpack.c.l.b16 %v4139
    %v4467 = vunpack.c.h.b16 %v4139
    %v4468 = vunpack.c.l.b16 %v4140
    %v4469 = vunpack.c.h.b16 %v4140
    %v4470 = vunpack.c.l.b16 %v4141
    %v4471 = vunpack.c.h.b16 %v4141
    %v4472 = vunpack.c.l.b16 %v4142
    %v4473 = vunpack.c.h.b16 %v4142
    %v4474 = vunpack.c.l.b16 %v4143
    %v4475 = vunpack.c.h.b16 %v4143
    %v4476 = vunpack.c.l.b16 %v4144
    %v4477 = vunpack.c.h.b16 %v4144
    %v4478 = vunpack.c.l.b16 %v4145
    %v4479 = vunpack.c.h.b16 %v4145
    %v4480 = vunpack.c.l.b16 %v4146
    %v4481 = vunpack.c.h.b16 %v4146
    %v4482 = vunpack.c.l.b16 %v4147
    %v4483 = vunpack.c.h.b16 %v4147
    %v4484 = vunpack.c.l.b16 %v4148
    %v4485 = vunpack.c.h.b16 %v4148
    %v4486 = vunpack.c.l.b16 %v4149
    %v4487 = vunpack.c.h.b16 %v4149
    %v4488 = vunpack.c.l.b16 %v4150
    %v4489 = vunpack.c.h.b16 %v4150
    %v4490 = vunpack.c.l.b16 %v4151
    %v4491 = vunpack.c.h.b16 %v4151
    %v4492 = vunpack.c.l.b16 %v4152
    %v4493 = vunpack.c.h.b16 %v4152
    %v4494 = vunpack.c.l.b16 %v4153
    %v4495 = vunpack.c.h.b16 %v4153
    %v4496 = vunpack.c.l.b16 %v4154
    %v4497 = vunpack.c.h.b16 %v4154
    %v4498 = vunpack.c.l.b16 %v4155
    %v4499 = vunpack.c.h.b16 %v4155
    %v4500 = vunpack.c.l.b16 %v4156
    %v4501 = vunpack.c.h.b16 %v4156
    %v4502 = vunpack.c.l.b16 %v4157
    %v4503 = vunpack.c.h.b16 %v4157
    %v4504 = vunpack.c.l.b16 %v4158
    %v4505 = vunpack.c.h.b16 %v4158
    %v4506 = vunpack.c.l.b16 %v4159
    %v4507 = vunpack.c.h.b16 %v4159
    %v4508 = vunpack.c.l.b16 %v4160
    %v4509 = vunpack.c.h.b16 %v4160
    %v4510 = vunpack.c.l.b16 %v4161
    %v4511 = vunpack.c.h.b16 %v4161
    %v4512 = vunpack.c.l.b16 %v4162
    %v4513 = vunpack.c.h.b16 %v4162
    %v4514 = vunpack.c.l.b16 %v4163
    %v4515 = vunpack.c.h.b16 %v4163
    %v4516 = vunpack.c.l.b16 %v4164
    %v4517 = vunpack.c.h.b16 %v4164
    %v4518 = vunpack.c.l.b16 %v4165
    %v4519 = vunpack.c.h.b16 %v4165
    %v4520 = vunpack.c.l.b16 %v4166
    %v4521 = vunpack.c.h.b16 %v4166
    %v4522 = vunpack.c.l.b16 %v4167
    %v4523 = vunpack.c.h.b16 %v4167
    %v4524 = vunpack.c.l.b16 %v4168
    %v4525 = vunpack.c.h.b16 %v4168
    %v4526 = vunpack.c.l.b16 %v4169
    %v4527 = vunpack.c.h.b16 %v4169
    %v4528 = vunpack.c.l.b16 %v4170
    %v4529 = vunpack.c.h.b16 %v4170
    %v4530 = vunpack.c.l.b16 %v4171
    %v4531 = vunpack.c.h.b16 %v4171
    %v4532 = vunpack.c.l.b16 %v4172
    %v4533 = vunpack.c.h.b16 %v4172
    %v4534 = vunpack.c.l.b16 %v4173
    %v4535 = vunpack.c.h.b16 %v4173
    %v4536 = vunpack.c.l.b16 %v4174
    %v4537 = vunpack.c.h.b16 %v4174
    %v4538 = vunpack.c.l.b16 %v4175
    %v4539 = vunpack.c.h.b16 %v4175
    %v4540 = vunpack.c.l.b16 %v4176
    %v4541 = vunpack.c.h.b16 %v4176
    %v4542 = vunpack.c.l.b16 %v4177
    %v4543 = vunpack.c.h.b16 %v4177
    %v4544 = vunpack.c.l.b16 %v4178
    %v4545 = vunpack.c.h.b16 %v4178
    %v4546 = vunpack.c.l.b16 %v4179
    %v4547 = vunpack.c.h.b16 %v4179
    %v4548 = vunpack.c.l.b16 %v4180
    %v4549 = vunpack.c.h.b16 %v4180
    %v4550 = vunpack.c.l.b16 %v4181
    %v4551 = vunpack.c.h.b16 %v4181
    %v4552 = vunpack.c.l.b16 %v4182
    %v4553 = vunpack.c.h.b16 %v4182
    %v4554 = vunpack.c.l.b16 %v4183
    %v4555 = vunpack.c.h.b16 %v4183
    %v4556 = vunpack.c.l.b16 %v4184
    %v4557 = vunpack.c.h.b16 %v4184
    %v4558 = vunpack.c.l.b16 %v4185
    %v4559 = vunpack.c.h.b16 %v4185
    %v4560 = vunpack.c.l.b16 %v4186
    %v4561 = vunpack.c.h.b16 %v4186
    %v4562 = vunpack.c.l.b16 %v4187
    %v4563 = vunpack.c.h.b16 %v4187
    %v4564 = vunpack.c.l.b16 %v4188
    %v4565 = vunpack.c.h.b16 %v4188
    %v4566 = vunpack.c.l.b16 %v4189
    %v4567 = vunpack.c.h.b16 %v4189
    %v4568 = vunpack.c.l.b16 %v4190
    %v4569 = vunpack.c.h.b16 %v4190
    %v4570 = vunpack.c.l.b16 %v4191
    %v4571 = vunpack.c.h.b16 %v4191
    %v4572 = vunpack.c.l.b16 %v4192
    %v4573 = vunpack.c.h.b16 %v4192
    %v4574 = vunpack.c.l.b16 %v4193
    %v4575 = vunpack.c.h.b16 %v4193
    %v4576 = vunpack.c.l.b16 %v4194
    %v4577 = vunpack.c.h.b16 %v4194
    %v4578 = vunpack.c.l.b16 %v4195
    %v4579 = vunpack.c.h.b16 %v4195
    %v4580 = vunpack.c.l.b16 %v4196
    %v4581 = vunpack.c.h.b16 %v4196
    %v4582 = vunpack.c.l.b16 %v4197
    %v4583 = vunpack.c.h.b16 %v4197
    %v4584 = vunpack.c.l.b16 %v4198
    %v4585 = vunpack.c.h.b16 %v4198
    %v4586 = vunpack.c.l.b16 %v4199
    %v4587 = vunpack.c.h.b16 %v4199
    %v4588 = vunpack.c.l.b16 %v4200
    %v4589 = vunpack.c.h.b16 %v4200
    %v4590 = vunpack.c.l.b16 %v4201
    %v4591 = vunpack.c.h.b16 %v4201
    %v4592 = vunpack.c.l.b16 %v4202
    %v4593 = vunpack.c.h.b16 %v4202
    %v4594 = vunpack.c.l.b16 %v4203
    %v4595 = vunpack.c.h.b16 %v4203
    %v4596 = vunpack.c.l.b16 %v4204
    %v4597 = vunpack.c.h.b16 %v4204
    %v4598 = vunpack.c.l.b16 %v4205
    %v4599 = vunpack.c.h.b16 %v4205
    %v4600 = vunpack.c.l.b16 %v4206
    %v4601 = vunpack.c.h.b16 %v4206
    %v4602 = vunpack.c.l.b16 %v4207
    %v4603 = vunpack.c.h.b16 %v4207
    %v4604 = vunpack.c.l.b16 %v4208
    %v4605 = vunpack.c.h.b16 %v4208
    %v4606 = vpack.c.b16 %v4352, %v4350
    %v4607 = vpack.c.b16 %v4353, %v4351
    %v4608 = vpack.c.b16 %v4356, %v4354
    %v4609 = vpack.c.b16 %v4357, %v4355
    %v4610 = vpack.c.b16 %v4360, %v4358
    %v4611 = vpack.c.b16 %v4361, %v4359
    %v4612 = vpack.c.b16 %v4364, %v4362
    %v4613 = vpack.c.b16 %v4365, %v4363
    %v4614 = vpack.c.b16 %v4368, %v4366
    %v4615 = vpack.c.b16 %v4369, %v4367
    %v4616 = vpack.c.b16 %v4372, %v4370
    %v4617 = vpack.c.b16 %v4373, %v4371
    %v4618 = vpack.c.b16 %v4376, %v4374
    %v4619 = vpack.c.b16 %v4377, %v4375
    %v4620 = vpack.c.b16 %v4380, %v4378
    %v4621 = vpack.c.b16 %v4381, %v4379
    %v4622 = vpack.c.b16 %v4384, %v4382
    %v4623 = vpack.c.b16 %v4385, %v4383
    %v4624 = vpack.c.b16 %v4388, %v4386
    %v4625 = vpack.c.b16 %v4389, %v4387
    %v4626 = vpack.c.b16 %v4392, %v4390
    %v4627 = vpack.c.b16 %v4393, %v4391
    %v4628 = vpack.c.b16 %v4396, %v4394
    %v4629 = vpack.c.b16 %v4397, %v4395
    %v4630 = vpack.c.b16 %v4400, %v4398
    %v4631 = vpack.c.b16 %v4401, %v4399
    %v4632 = vpack.c.b16 %v4404, %v4402
    %v4633 = vpack.c.b16 %v4405, %v4403
    %v4634 = vpack.c.b16 %v4408, %v4406
    %v4635 = vpack.c.b16 %v4409, %v4407
    %v4636 = vpack.c.b16 %v4412, %v4410
    %v4637 = vpack.c.b16 %v4413, %v4411
    %v4638 = vpack.c.b16 %v4416, %v4414
    %v4639 = vpack.c.b16 %v4417, %v4415
    %v4640 = vpack.c.b16 %v4420, %v4418
    %v4641 = vpack.c.b16 %v4421, %v4419
    %v4642 = vpack.c.b16 %v4424, %v4422
    %v4643 = vpack.c.b16 %v4425, %v4423
    %v4644 = vpack.c.b16 %v4428, %v4426
    %v4645 = vpack.c.b16 %v4429, %v4427
    %v4646 = vpack.c.b16 %v4432, %v4430
    %v4647 = vpack.c.b16 %v4433, %v4431
    %v4648 = vpack.c.b16 %v4436, %v4434
    %v4649 = vpack.c.b16 %v4437, %v4435
    %v4650 = vpack.c.b16 %v4440, %v4438
    %v4651 = vpack.c.b16 %v4441, %v4439
    %v4652 = vpack.c.b16 %v4444, %v4442
    %v4653 = vpack.c.b16 %v4445, %v4443
    %v4654 = vpack.c.b16 %v4448, %v4446
    %v4655 = vpack.c.b16 %v4449, %v4447
    %v4656 = vpack.c.b16 %v4452, %v4450
    %v4657 = vpack.c.b16 %v4453, %v4451
    %v4658 = vpack.c.b16 %v4456, %v4454
    %v4659 = vpack.c.b16 %v4457, %v4455
    %v4660 = vpack.c.b16 %v4460, %v4458
    %v4661 = vpack.c.b16 %v4461, %v4459
    %v4662 = vpack.c.b16 %v4464, %v4462
    %v4663 = vpack.c.b16 %v4465, %v4463
    %v4664 = vpack.c.b16 %v4468, %v4466
    %v4665 = vpack.c.b16 %v4469, %v4467
    %v4666 = vpack.c.b16 %v4472, %v4470
    %v4667 = vpack.c.b16 %v4473, %v4471
    %v4668 = vpack.c.b16 %v4476, %v4474
    %v4669 = vpack.c.b16 %v4477, %v4475
    %v4670 = vpack.c.b16 %v4480, %v4478
    %v4671 = vpack.c.b16 %v4481, %v4479
    %v4672 = vpack.c.b16 %v4484, %v4482
    %v4673 = vpack.c.b16 %v4485, %v4483
    %v4674 = vpack.c.b16 %v4488, %v4486
    %v4675 = vpack.c.b16 %v4489, %v4487
    %v4676 = vpack.c.b16 %v4492, %v4490
    %v4677 = vpack.c.b16 %v4493, %v4491
    %v4678 = vpack.c.b16 %v4496, %v4494
    %v4679 = vpack.c.b16 %v4497, %v4495
    %v4680 = vpack.c.b16 %v4500, %v4498
    %v4681 = vpack.c.b16 %v4501, %v4499
    %v4682 = vpack.c.b16 %v4504, %v4502
    %v4683 = vpack.c.b16 %v4505, %v4503
    %v4684 = vpack.c.b16 %v4508, %v4506
    %v4685 = vpack.c.b16 %v4509, %v4507
    %v4686 = vpack.c.b16 %v4512, %v4510
    %v4687 = vpack.c.b16 %v4513, %v4511
    %v4688 = vpack.c.b16 %v4516, %v4514
    %v4689 = vpack.c.b16 %v4517, %v4515
    %v4690 = vpack.c.b16 %v4520, %v4518
    %v4691 = vpack.c.b16 %v4521, %v4519
    %v4692 = vpack.c.b16 %v4524, %v4522
    %v4693 = vpack.c.b16 %v4525, %v4523
    %v4694 = vpack.c.b16 %v4528, %v4526
    %v4695 = vpack.c.b16 %v4529, %v4527
    %v4696 = vpack.c.b16 %v4532, %v4530
    %v4697 = vpack.c.b16 %v4533, %v4531
    %v4698 = vpack.c.b16 %v4536, %v4534
    %v4699 = vpack.c.b16 %v4537, %v4535
    %v4700 = vpack.c.b16 %v4540, %v4538
    %v4701 = vpack.c.b16 %v4541, %v4539
    %v4702 = vpack.c.b16 %v4544, %v4542
    %v4703 = vpack.c.b16 %v4545, %v4543
    %v4704 = vpack.c.b16 %v4548, %v4546
    %v4705 = vpack.c.b16 %v4549, %v4547
    %v4706 = vpack.c.b16 %v4552, %v4550
    %v4707 = vpack.c.b16 %v4553, %v4551
    %v4708 = vpack.c.b16 %v4556, %v4554
    %v4709 = vpack.c.b16 %v4557, %v4555
    %v4710 = vpack.c.b16 %v4560, %v4558
    %v4711 = vpack.c.b16 %v4561, %v4559
    %v4712 = vpack.c.b16 %v4564, %v4562
    %v4713 = vpack.c.b16 %v4565, %v4563
    %v4714 = vpack.c.b16 %v4568, %v4566
    %v4715 = vpack.c.b16 %v4569, %v4567
    %v4716 = vpack.c.b16 %v4572, %v4570
    %v4717 = vpack.c.b16 %v4573, %v4571
    %v4718 = vpack.c.b16 %v4576, %v4574
    %v4719 = vpack.c.b16 %v4577, %v4575
    %v4720 = vpack.c.b16 %v4580, %v4578
    %v4721 = vpack.c.b16 %v4581, %v4579
    %v4722 = vpack.c.b16 %v4584, %v4582
    %v4723 = vpack.c.b16 %v4585, %v4583
    %v4724 = vpack.c.b16 %v4588, %v4586
    %v4725 = vpack.c.b16 %v4589, %v4587
    %v4726 = vpack.c.b16 %v4592, %v4590
    %v4727 = vpack.c.b16 %v4593, %v4591
    %v4728 = vpack.c.b16 %v4596, %v4594
    %v4729 = vpack.c.b16 %v4597, %v4595
    %v4730 = vpack.c.b16 %v4600, %v4598
    %v4731 = vpack.c.b16 %v4601, %v4599
    %v4732 = vpack.c.b16 %v4604, %v4602
    %v4733 = vpack.c.b16 %v4605, %v4603
    %4862 = vmatprep.subr.bf16.mxu0 %v4607
    %4863 = vmatpush1.bf16.msra.mxu0 %v4606
    %4864 = vmatprep.subr.bf16.mxu0 %v4609
    %4865 = vmatpush1.bf16.msra.mxu0 %v4608
    %4866 = vmatprep.subr.bf16.mxu0 %v4611
    %4867 = vmatpush1.bf16.msra.mxu0 %v4610
    %4868 = vmatprep.subr.bf16.mxu0 %v4613
    %4869 = vmatpush1.bf16.msra.mxu0 %v4612
    %4870 = vmatprep.subr.bf16.mxu0 %v4615
    %4871 = vmatpush1.bf16.msra.mxu0 %v4614
    %4872 = vmatprep.subr.bf16.mxu0 %v4617
    %4873 = vmatpush1.bf16.msra.mxu0 %v4616
    %4874 = vmatprep.subr.bf16.mxu0 %v4619
    %4875 = vmatpush1.bf16.msra.mxu0 %v4618
    %4876 = vmatprep.subr.bf16.mxu0 %v4621
    %4877 = vmatpush1.bf16.msra.mxu0 %v4620
    %4878 = vmatprep.subr.bf16.mxu0 %v4623
    %4879 = vmatpush1.bf16.msra.mxu0 %v4622
    %4880 = vmatprep.subr.bf16.mxu0 %v4625
    %4881 = vmatpush1.bf16.msra.mxu0 %v4624
    %4882 = vmatprep.subr.bf16.mxu0 %v4627
    %4883 = vmatpush1.bf16.msra.mxu0 %v4626
    %4884 = vmatprep.subr.bf16.mxu0 %v4629
    %4885 = vmatpush1.bf16.msra.mxu0 %v4628
    %4886 = vmatprep.subr.bf16.mxu0 %v4631
    %4887 = vmatpush1.bf16.msra.mxu0 %v4630
    %4888 = vmatprep.subr.bf16.mxu0 %v4633
    %4889 = vmatpush1.bf16.msra.mxu0 %v4632
    %4890 = vmatprep.subr.bf16.mxu0 %v4635
    %4891 = vmatpush1.bf16.msra.mxu0 %v4634
    %4892 = vmatprep.subr.bf16.mxu0 %v4637
    %4893 = vmatpush1.bf16.msra.mxu0 %v4636
    %4894 = vmatprep.mubr.bf16.mxu0 %v718
    %4895 = vmatmul.mubr.bf16.gmra.mrb[0].mxu0 %v717
    %v4896 = vpop.f32.mrb[0].mxu0
    %v4897 = vadd.f32 %v4215, %v4896
    %v4898 = vpop.f32.mrb[0].mxu0
    %v4899 = vadd.f32 %v4219, %v4898
    %v4900 = vpop.f32.mrb[0].mxu0
    %v4901 = vpop.f32.mrb[0].mxu0
    %4902 = vdwg.mxu0
    %4903 = vmatprep.subr.bf16.mxu0 %v4639
    %4904 = vmatpush1.bf16.msra.mxu0 %v4638
    %4905 = vmatprep.subr.bf16.mxu0 %v4641
    %4906 = vmatpush1.bf16.msra.mxu0 %v4640
    %4907 = vmatprep.subr.bf16.mxu0 %v4643
    %4908 = vmatpush1.bf16.msra.mxu0 %v4642
    %4909 = vmatprep.subr.bf16.mxu0 %v4645
    %4910 = vmatpush1.bf16.msra.mxu0 %v4644
    %4911 = vmatprep.subr.bf16.mxu0 %v4647
    %4912 = vmatpush1.bf16.msra.mxu0 %v4646
    %4913 = vmatprep.subr.bf16.mxu0 %v4649
    %4914 = vmatpush1.bf16.msra.mxu0 %v4648
    %4915 = vmatprep.subr.bf16.mxu0 %v4651
    %4916 = vmatpush1.bf16.msra.mxu0 %v4650
    %4917 = vmatprep.subr.bf16.mxu0 %v4653
    %4918 = vmatpush1.bf16.msra.mxu0 %v4652
    %4919 = vmatprep.subr.bf16.mxu0 %v4655
    %4920 = vmatpush1.bf16.msra.mxu0 %v4654
    %4921 = vmatprep.subr.bf16.mxu0 %v4657
    %4922 = vmatpush1.bf16.msra.mxu0 %v4656
    %4923 = vmatprep.subr.bf16.mxu0 %v4659
    %4924 = vmatpush1.bf16.msra.mxu0 %v4658
    %4925 = vmatprep.subr.bf16.mxu0 %v4661
    %4926 = vmatpush1.bf16.msra.mxu0 %v4660
    %4927 = vmatprep.subr.bf16.mxu0 %v4663
    %4928 = vmatpush1.bf16.msra.mxu0 %v4662
    %4929 = vmatprep.subr.bf16.mxu0 %v4665
    %4930 = vmatpush1.bf16.msra.mxu0 %v4664
    %4931 = vmatprep.subr.bf16.mxu0 %v4667
    %4932 = vmatpush1.bf16.msra.mxu0 %v4666
    %4933 = vmatprep.subr.bf16.mxu0 %v4669
    %4934 = vmatpush1.bf16.msra.mxu0 %v4668
    %4935 = vmatprep.mubr.bf16.mxu0 %v720
    %4936 = vmatmul.mubr.bf16.gmra.mrb[0].mxu0 %v719
    %v4937 = vpop.f32.mrb[0].mxu0
    %v4938 = vadd.f32 %v4897, %v4937
    %v4939 = vpop.f32.mrb[0].mxu0
    %v4940 = vadd.f32 %v4899, %v4939
    %v4941 = vpop.f32.mrb[0].mxu0
    %v4942 = vpop.f32.mrb[0].mxu0
    %4943 = vdwg.mxu0
    %4944 = vmatprep.subr.bf16.mxu0 %v4671
    %4945 = vmatpush1.bf16.msra.mxu0 %v4670
    %4946 = vmatprep.subr.bf16.mxu0 %v4673
    %4947 = vmatpush1.bf16.msra.mxu0 %v4672
    %4948 = vmatprep.subr.bf16.mxu0 %v4675
    %4949 = vmatpush1.bf16.msra.mxu0 %v4674
    %4950 = vmatprep.subr.bf16.mxu0 %v4677
    %4951 = vmatpush1.bf16.msra.mxu0 %v4676
    %4952 = vmatprep.subr.bf16.mxu0 %v4679
    %4953 = vmatpush1.bf16.msra.mxu0 %v4678
    %4954 = vmatprep.subr.bf16.mxu0 %v4681
    %4955 = vmatpush1.bf16.msra.mxu0 %v4680
    %4956 = vmatprep.subr.bf16.mxu0 %v4683
    %4957 = vmatpush1.bf16.msra.mxu0 %v4682
    %4958 = vmatprep.subr.bf16.mxu0 %v4685
    %4959 = vmatpush1.bf16.msra.mxu0 %v4684
    %4960 = vmatprep.subr.bf16.mxu0 %v4687
    %4961 = vmatpush1.bf16.msra.mxu0 %v4686
    %4962 = vmatprep.subr.bf16.mxu0 %v4689
    %4963 = vmatpush1.bf16.msra.mxu0 %v4688
    %4964 = vmatprep.subr.bf16.mxu0 %v4691
    %4965 = vmatpush1.bf16.msra.mxu0 %v4690
    %4966 = vmatprep.subr.bf16.mxu0 %v4693
    %4967 = vmatpush1.bf16.msra.mxu0 %v4692
    %4968 = vmatprep.subr.bf16.mxu0 %v4695
    %4969 = vmatpush1.bf16.msra.mxu0 %v4694
    %4970 = vmatprep.subr.bf16.mxu0 %v4697
    %4971 = vmatpush1.bf16.msra.mxu0 %v4696
    %4972 = vmatprep.subr.bf16.mxu0 %v4699
    %4973 = vmatpush1.bf16.msra.mxu0 %v4698
    %4974 = vmatprep.subr.bf16.mxu0 %v4701
    %4975 = vmatpush1.bf16.msra.mxu0 %v4700
    %4976 = vmatprep.mubr.bf16.mxu0 %v722
    %4977 = vmatmul.mubr.bf16.gmra.mrb[0].mxu0 %v721
    %v4978 = vpop.f32.mrb[0].mxu0
    %v4979 = vadd.f32 %v4938, %v4978
    %v4980 = vpop.f32.mrb[0].mxu0
    %v4981 = vadd.f32 %v4940, %v4980
    %v4982 = vpop.f32.mrb[0].mxu0
    %v4983 = vpop.f32.mrb[0].mxu0
    %4984 = vdwg.mxu0
    %4985 = vmatprep.subr.bf16.mxu0 %v4703
    %4986 = vmatpush1.bf16.msra.mxu0 %v4702
    %4987 = vmatprep.subr.bf16.mxu0 %v4705
    %4988 = vmatpush1.bf16.msra.mxu0 %v4704
    %4989 = vmatprep.subr.bf16.mxu0 %v4707
    %4990 = vmatpush1.bf16.msra.mxu0 %v4706
    %4991 = vmatprep.subr.bf16.mxu0 %v4709
    %4992 = vmatpush1.bf16.msra.mxu0 %v4708
    %4993 = vmatprep.subr.bf16.mxu0 %v4711
    %4994 = vmatpush1.bf16.msra.mxu0 %v4710
    %4995 = vmatprep.subr.bf16.mxu0 %v4713
    %4996 = vmatpush1.bf16.msra.mxu0 %v4712
    %4997 = vmatprep.subr.bf16.mxu0 %v4715
    %4998 = vmatpush1.bf16.msra.mxu0 %v4714
    %4999 = vmatprep.subr.bf16.mxu0 %v4717
    %5000 = vmatpush1.bf16.msra.mxu0 %v4716
    %5001 = vmatprep.subr.bf16.mxu0 %v4719
    %5002 = vmatpush1.bf16.msra.mxu0 %v4718
    %5003 = vmatprep.subr.bf16.mxu0 %v4721
    %5004 = vmatpush1.bf16.msra.mxu0 %v4720
    %5005 = vmatprep.subr.bf16.mxu0 %v4723
    %5006 = vmatpush1.bf16.msra.mxu0 %v4722
    %5007 = vmatprep.subr.bf16.mxu0 %v4725
    %5008 = vmatpush1.bf16.msra.mxu0 %v4724
    %5009 = vmatprep.subr.bf16.mxu0 %v4727
    %5010 = vmatpush1.bf16.msra.mxu0 %v4726
    %5011 = vmatprep.subr.bf16.mxu0 %v4729
    %5012 = vmatpush1.bf16.msra.mxu0 %v4728
    %5013 = vmatprep.subr.bf16.mxu0 %v4731
    %5014 = vmatpush1.bf16.msra.mxu0 %v4730
    %5015 = vmatprep.subr.bf16.mxu0 %v4733
    %5016 = vmatpush1.bf16.msra.mxu0 %v4732
    %5017 = vmatprep.mubr.bf16.mxu0 %v724
    %5018 = vmatmul.mubr.bf16.gmra.mrb[0].mxu0 %v723
    %v5019 = vpop.f32.mrb[0].mxu0
    %v5020 = vadd.f32 %v4979, %v5019
    %v5021 = vpop.f32.mrb[0].mxu0
    %v5022 = vadd.f32 %v4981, %v5021
    %v5023 = vpop.f32.mrb[0].mxu0
    %v5024 = vpop.f32.mrb[0].mxu0
    %5025 = vdwg.mxu0
    %v5026 = vmax.f32 %v5020, 0.0
    %v5027 = vmax.f32 %v5022, 0.0
    %v5028 = vpack.c.bf16 %v5026, %v5026
    %v5029 = vpack.c.bf16 %v5027, %v5027
    %s5030 = scalar_lea.vmem [#allocation11], 384
    %v5031 = vld [vmem:[%s5030] sm:$0xf]
    %v5032 = vld [vmem:[%s5030 + $0x4] sm:$0xf]
    %v5033 = vld [vmem:[%s5030 + $0x8] sm:$0xf]
    %v5034 = vld [vmem:[%s5030 + $0xc] sm:$0xf]
    %v5035 = vld [vmem:[%s5030 + $0x10] sm:$0xf]
    %v5036 = vld [vmem:[%s5030 + $0x14] sm:$0xf]
    %v5037 = vld [vmem:[%s5030 + $0x18] sm:$0xf]
    %v5038 = vld [vmem:[%s5030 + $0x1c] sm:$0xf]
    %v5039 = vld [vmem:[%s5030 + $0x20] sm:$0xf]
    %v5040 = vld [vmem:[%s5030 + $0x24] sm:$0xf]
    %v5041 = vld [vmem:[%s5030 + $0x28] sm:$0xf]
    %v5042 = vld [vmem:[%s5030 + $0x2c] sm:$0xf]
    %v5043 = vld [vmem:[%s5030 + $0x30] sm:$0xf]
    %v5044 = vld [vmem:[%s5030 + $0x34] sm:$0xf]
    %v5045 = vld [vmem:[%s5030 + $0x38] sm:$0xf]
    %v5046 = vld [vmem:[%s5030 + $0x3c] sm:$0xf]
    %v5047 = vld [vmem:[%s5030 + $0x40] sm:$0xf]
    %v5048 = vld [vmem:[%s5030 + $0x44] sm:$0xf]
    %v5049 = vld [vmem:[%s5030 + $0x48] sm:$0xf]
    %v5050 = vld [vmem:[%s5030 + $0x4c] sm:$0xf]
    %v5051 = vld [vmem:[%s5030 + $0x50] sm:$0xf]
    %v5052 = vld [vmem:[%s5030 + $0x54] sm:$0xf]
    %v5053 = vld [vmem:[%s5030 + $0x58] sm:$0xf]
    %v5054 = vld [vmem:[%s5030 + $0x5c] sm:$0xf]
    %v5055 = vld [vmem:[%s5030 + $0x60] sm:$0xf]
    %v5056 = vld [vmem:[%s5030 + $0x64] sm:$0xf]
    %v5057 = vld [vmem:[%s5030 + $0x68] sm:$0xf]
    %v5058 = vld [vmem:[%s5030 + $0x6c] sm:$0xf]
    %v5059 = vld [vmem:[%s5030 + $0x70] sm:$0xf]
    %v5060 = vld [vmem:[%s5030 + $0x74] sm:$0xf]
    %v5061 = vld [vmem:[%s5030 + $0x78] sm:$0xf]
    %v5062 = vld [vmem:[%s5030 + $0x7c] sm:$0xf]
    %v5095 = vunpack.c.l.b16 %v5031
    %v5096 = vunpack.c.l.b16 %v5032
    %v5097 = vunpack.c.l.b16 %v5033
    %v5098 = vunpack.c.l.b16 %v5034
    %v5099 = vunpack.c.l.b16 %v5035
    %v5100 = vunpack.c.l.b16 %v5036
    %v5101 = vunpack.c.l.b16 %v5037
    %v5102 = vunpack.c.l.b16 %v5038
    %v5103 = vunpack.c.l.b16 %v5039
    %v5104 = vunpack.c.l.b16 %v5040
    %v5105 = vunpack.c.l.b16 %v5041
    %v5106 = vunpack.c.l.b16 %v5042
    %v5107 = vunpack.c.l.b16 %v5043
    %v5108 = vunpack.c.l.b16 %v5044
    %v5109 = vunpack.c.l.b16 %v5045
    %v5110 = vunpack.c.l.b16 %v5046
    %v5111 = vunpack.c.l.b16 %v5047
    %v5112 = vunpack.c.l.b16 %v5048
    %v5113 = vunpack.c.l.b16 %v5049
    %v5114 = vunpack.c.l.b16 %v5050
    %v5115 = vunpack.c.l.b16 %v5051
    %v5116 = vunpack.c.l.b16 %v5052
    %v5117 = vunpack.c.l.b16 %v5053
    %v5118 = vunpack.c.l.b16 %v5054
    %v5119 = vunpack.c.l.b16 %v5055
    %v5120 = vunpack.c.l.b16 %v5056
    %v5121 = vunpack.c.l.b16 %v5057
    %v5122 = vunpack.c.l.b16 %v5058
    %v5123 = vunpack.c.l.b16 %v5059
    %v5124 = vunpack.c.l.b16 %v5060
    %v5125 = vunpack.c.l.b16 %v5061
    %v5126 = vunpack.c.l.b16 %v5062
    %v5127 = vpack.c.b16 %v5096, %v5095
    %v5128 = vpack.c.b16 %v5098, %v5097
    %v5129 = vpack.c.b16 %v5100, %v5099
    %v5130 = vpack.c.b16 %v5102, %v5101
    %v5131 = vpack.c.b16 %v5104, %v5103
    %v5132 = vpack.c.b16 %v5106, %v5105
    %v5133 = vpack.c.b16 %v5108, %v5107
    %v5134 = vpack.c.b16 %v5110, %v5109
    %v5135 = vpack.c.b16 %v5112, %v5111
    %v5136 = vpack.c.b16 %v5114, %v5113
    %v5137 = vpack.c.b16 %v5116, %v5115
    %v5138 = vpack.c.b16 %v5118, %v5117
    %v5139 = vpack.c.b16 %v5120, %v5119
    %v5140 = vpack.c.b16 %v5122, %v5121
    %v5141 = vpack.c.b16 %v5124, %v5123
    %v5142 = vpack.c.b16 %v5126, %v5125
    %5159 = vmatprep.subr.bf16.mxu0 0
    %5160 = vmatpush1.bf16.msra.mxu0 %v5127
    %5161 = vmatprep.subr.bf16.mxu0 0
    %5162 = vmatpush1.bf16.msra.mxu0 %v5128
    %5163 = vmatprep.subr.bf16.mxu0 0
    %5164 = vmatpush1.bf16.msra.mxu0 %v5129
    %5165 = vmatprep.subr.bf16.mxu0 0
    %5166 = vmatpush1.bf16.msra.mxu0 %v5130
    %5167 = vmatprep.subr.bf16.mxu0 0
    %5168 = vmatpush1.bf16.msra.mxu0 %v5131
    %5169 = vmatprep.subr.bf16.mxu0 0
    %5170 = vmatpush1.bf16.msra.mxu0 %v5132
    %5171 = vmatprep.subr.bf16.mxu0 0
    %5172 = vmatpush1.bf16.msra.mxu0 %v5133
    %5173 = vmatprep.subr.bf16.mxu0 0
    %5174 = vmatpush1.bf16.msra.mxu0 %v5134
    %5175 = vmatprep.subr.bf16.mxu0 0
    %5176 = vmatpush1.bf16.msra.mxu0 %v5135
    %5177 = vmatprep.subr.bf16.mxu0 0
    %5178 = vmatpush1.bf16.msra.mxu0 %v5136
    %5179 = vmatprep.subr.bf16.mxu0 0
    %5180 = vmatpush1.bf16.msra.mxu0 %v5137
    %5181 = vmatprep.subr.bf16.mxu0 0
    %5182 = vmatpush1.bf16.msra.mxu0 %v5138
    %5183 = vmatprep.subr.bf16.mxu0 0
    %5184 = vmatpush1.bf16.msra.mxu0 %v5139
    %5185 = vmatprep.subr.bf16.mxu0 0
    %5186 = vmatpush1.bf16.msra.mxu0 %v5140
    %5187 = vmatprep.subr.bf16.mxu0 0
    %5188 = vmatpush1.bf16.msra.mxu0 %v5141
    %5189 = vmatprep.subr.bf16.mxu0 0
    %5190 = vmatpush1.bf16.msra.mxu0 %v5142
    %5191 = vmatprep.mubr.bf16.mxu0 %v5029
    %5192 = vmatmul.mubr.bf16.gmra.mrb[0].mxu0 %v5028
    %v5193 = vpop.f32.mrb[0].mxu0
    %v5194 = vadd.f32 0.0, %v5193
    %v5195 = vpop.f32.mrb[0].mxu0
    %v5196 = vpop.f32.mrb[0].mxu0
    %v5197 = vpop.f32.mrb[0].mxu0
    %5198 = vdwg.mxu0
    %v5199 = vadd.f32 %v4079, %v5194
    %v5200 = vld [vmem:[#allocation13] sm:$0x1]
    %v5202 = vlaneseq
    %v5203 = vshrl.u32 %v5202, 7
    %v5204 = vsub.s32 0, %v5203
    %v5205 = vrot.slane %v5200, %v5204
    %v5207 = vadd.f32 %v5199, %v5205
    %v5208 = vtanh.pop %v5207
    %5209 = vst [vmem:[#allocation14] sm:$0xff] %v5208
    // Predicated region
    $region58: #{tpu_custom_call.1} parent=1 // pred_check
      _
    $region59: #{tpu_custom_call.1} parent=1 // pred_check_branch
      %5211 = sbr.rel (0) target = $region61
    $region60: #{tpu_custom_call.1} parent=1 // pred_region
      %s5213 = ssub.s32 128, 128
      %5214 = vsyncadd [#allocation4], %s5213
      %s5216 = sshll.u32 [#allocation14], 4
      %s5217 = int_to_ptr.vmem [resolvable:$true] %s5216
      %5219 = dma.vmem_to_hbm [thread:$0]  %s5217, 128, %s7, [#allocation4]
    $region61: #{tpu_custom_call.1} parent=1 // pred_fallthru
      _
    // Predicated region
    $region62: #{tpu_custom_call.1} parent=1 // pred_check
      _
    $region63: #{tpu_custom_call.1} parent=1 // pred_check_branch
      %5221 = sbr.rel (0) target = $region65
    $region64: #{tpu_custom_call.1} parent=1 // pred_region
      %5222 = dma.done [#allocation4], 128
    $region65: #{tpu_custom_call.1} parent=1 // pred_fallthru
      _
    %5223 = vsyncpa [#allocation3], 1
    %5224 = vsyncpa [#allocation6], 1
    %5225 = vsyncpa [#allocation9], 1
    %5226 = vsyncpa [#allocation12], 1
    %5227 = vsyncpa [#allocation4], 1

</llo_original>
